<compile_context>
chip_gen: v5e
topology: v5e:2x2
jax: 0.10.0
libtpu: 0.0.40
codegen_flags: <defaults>
</compile_context>

<pallas_src>
import math
import jax
import jax.numpy as jnp
from jax import lax
from jax.experimental import pallas as pl
from jax.experimental.pallas import tpu as pltpu

# GhostModule hyper-parameters (PyTorch defaults)
INP = 4                                   # input channels
OUP = 8                                   # output channels
RATIO = 2
INIT_CH = math.ceil(OUP / RATIO)          # primary conv output channels
NEW_CH = INIT_CH * (RATIO - 1)            # cheap-op output channels
N_KEEP = OUP - INIT_CH                    # cheap-op channels kept after [:, :oup]
BN_EPS = 1e-5


def ghost_kernel(xp_ref, w1_ref, b1_ref, wd_ref, b2_ref, out_ref):
    """One batch element per grid step.

    xp_ref : (1, INP, D+2, H+2, W+2)  VMEM  -- spatially zero-padded input
    w1_ref : (INIT_CH, INP)           SMEM  -- 1x1x1 conv weights * BN1 scale
    b1_ref : (INIT_CH,)               SMEM  -- folded BN1 bias
    wd_ref : (NEW_CH, 27)             SMEM  -- depthwise 3x3x3 weights * BN2 scale
    b2_ref : (NEW_CH,)                SMEM  -- folded BN2 bias
    out_ref: (1, OUP, D, H, W)        VMEM
    """
    _, c_in, dp, hp, wp = xp_ref.shape
    _, oup, d, h, w = out_ref.shape
    init_ch = w1_ref.shape[0]
    n_keep = oup - init_ch

    # Interior mask over the padded domain: 1 inside, 0 on the 1-wide halo.
    # H/W part via 2-D broadcasted_iota (sublane/lane), D part via concat.
    hi = lax.broadcasted_iota(jnp.int32, (hp, wp), 0)
    wi = lax.broadcasted_iota(jnp.int32, (hp, wp), 1)
    mask_hw = ((hi >= 1) & (hi <= h) & (wi >= 1) & (wi <= w)).astype(jnp.float32)
    zero_plane = jnp.zeros((1, hp, wp), jnp.float32)
    mask3 = jnp.concatenate(
        [zero_plane, jnp.broadcast_to(mask_hw, (d, hp, wp)), zero_plane], axis=0)

    # ---- primary conv (1x1x1) + folded BN + ReLU -------------------------------
    x1_halo = []
    for co in range(init_ch):
        acc = jnp.zeros((dp, hp, wp), jnp.float32)
        for ci in range(c_in):
            acc = acc + w1_ref[co, ci] * xp_ref[0, ci]
        x1_p = jnp.maximum(acc + b1_ref[co], 0.0)          # over padded domain
        out_ref[0, co] = x1_p[1:d + 1, 1:h + 1, 1:w + 1]   # x1 -> output chans [0:init)
        x1_halo.append(x1_p * mask3)                       # exact zero halo for the dw conv

    # ---- cheap operation: depthwise 3x3x3 + folded BN + ReLU -------------------
    for c in range(n_keep):
        src = x1_halo[c]                                   # group c reads x1 channel c
        acc = jnp.zeros((d, h, w), jnp.float32)
        for kd in range(3):
            for kh in range(3):
                for kw in range(3):
                    tap = wd_ref[c, kd * 9 + kh * 3 + kw]
                    acc = acc + tap * src[kd:kd + d, kh:kh + h, kw:kw + w]
        out_ref[0, init_ch + c] = jnp.maximum(acc + b2_ref[c], 0.0)


def init_params(key):
    """Deterministic synthetic params matching the PyTorch module's shapes."""
    ks = jax.random.split(key, 10)

    def u(k, shape, lo, hi):
        return jax.random.uniform(k, shape, jnp.float32, lo, hi)

    return dict(
        w1=u(ks[0], (INIT_CH, INP, 1, 1, 1), -0.5, 0.5),   # Conv3d 1x1x1, no bias
        g1=u(ks[1], (INIT_CH,), 0.5, 1.5),                 # BN1 gamma
        be1=u(ks[2], (INIT_CH,), -0.3, 0.3),               # BN1 beta
        m1=u(ks[3], (INIT_CH,), -0.3, 0.3),                # BN1 running mean
        v1=u(ks[4], (INIT_CH,), 0.5, 1.5),                 # BN1 running var
        wd=u(ks[5], (NEW_CH, 1, 3, 3, 3), -0.5, 0.5),      # depthwise Conv3d, no bias
        g2=u(ks[6], (NEW_CH,), 0.5, 1.5),
        be2=u(ks[7], (NEW_CH,), -0.3, 0.3),
        m2=u(ks[8], (NEW_CH,), -0.3, 0.3),
        v2=u(ks[9], (NEW_CH,), 0.5, 1.5),
    )


def ghost_module_forward(x, p):
    """x: (N, INP, D, H, W) float32 -> (N, OUP, D, H, W)."""
    n, c_in, d, h, w = x.shape
    assert c_in == INP

    # TODO(synk): BatchNorm3d is implemented in inference mode (running stats
    # folded into conv scale/bias); training-mode batch statistics are not done.
    s1 = p["g1"] / jnp.sqrt(p["v1"] + BN_EPS)
    w1_f = p["w1"][:, :, 0, 0, 0] * s1[:, None]                 # (INIT_CH, INP)
    b1_f = p["be1"] - p["m1"] * s1                              # (INIT_CH,)
    s2 = p["g2"] / jnp.sqrt(p["v2"] + BN_EPS)
    wd_f = (p["wd"][:, 0] * s2[:, None, None, None]).reshape(NEW_CH, 27)
    b2_f = p["be2"] - p["m2"] * s2                              # (NEW_CH,)

    # Zero-pad spatial dims by 1 (depthwise 3x3x3, padding=1).
    x_p = jnp.pad(x, ((0, 0), (0, 0), (1, 1), (1, 1), (1, 1)))

    smem = pl.BlockSpec(memory_space=pltpu.MemorySpace.SMEM)
    out = pl.pallas_call(
        ghost_kernel,
        out_shape=jax.ShapeDtypeStruct((n, OUP, d, h, w), jnp.float32),
        grid=(n,),
        in_specs=[
            pl.BlockSpec((1, c_in, d + 2, h + 2, w + 2),
                         lambda b: (b, 0, 0, 0, 0)),
            smem, smem, smem, smem,
        ],
        out_specs=pl.BlockSpec((1, OUP, d, h, w), lambda b: (b, 0, 0, 0, 0)),
        compiler_params=pltpu.CompilerParams(
            dimension_semantics=("parallel",)),
    )(x_p, w1_f, b1_f, wd_f, b2_f)
    return out


def reference_forward(x, p):
    """Pure-JAX reference mirroring the PyTorch forward (inference-mode BN)."""
    s1 = p["g1"] / jnp.sqrt(p["v1"] + BN_EPS)
    x1 = jnp.einsum("oc,ncdhw->nodhw", p["w1"][:, :, 0, 0, 0], x)
    x1 = x1 * s1[None, :, None, None, None] \
        + (p["be1"] - p["m1"] * s1)[None, :, None, None, None]
    x1 = jnp.maximum(x1, 0.0)

    x2 = lax.conv_general_dilated(
        x1, p["wd"], window_strides=(1, 1, 1),
        padding=((1, 1), (1, 1), (1, 1)),
        dimension_numbers=("NCDHW", "OIDHW", "NCDHW"),
        feature_group_count=INIT_CH)
    s2 = p["g2"] / jnp.sqrt(p["v2"] + BN_EPS)
    x2 = x2 * s2[None, :, None, None, None] \
        + (p["be2"] - p["m2"] * s2)[None, :, None, None, None]
    x2 = jnp.maximum(x2, 0.0)

    out = jnp.concatenate([x1, x2], axis=1)
    return out[:, :OUP]


if __name__ == "__main__":
    key = jax.random.PRNGKey(0)
    k_param, k_x = jax.random.split(key)

    N, D, H, W = 2, 4, 8, 32
    x = jax.random.normal(k_x, (N, INP, D, H, W), jnp.float32)
    params = init_params(k_param)

    fwd = jax.jit(ghost_module_forward)
    out = jax.block_until_ready(fwd(x, params))

    ref = reference_forward(x, params)
    assert out.shape == (N, OUP, D, H, W)
    assert jnp.allclose(out, ref, atol=1e-4, rtol=1e-4), "mismatch vs reference"

    print("KERNEL_OK")
</pallas_src>

<mosaic_0001>
module attributes {stable_mosaic.version = 11 : i64} {
  func.func @ghost_kernel(%arg0: i32, %arg1: memref<1x4x6x10x34xf32, #tpu.memory_space<vmem>>, %arg2: memref<4x4xf32, #tpu.memory_space<smem>>, %arg3: memref<4xf32, #tpu.memory_space<smem>>, %arg4: memref<4x27xf32, #tpu.memory_space<smem>>, %arg5: memref<4xf32, #tpu.memory_space<smem>>, %arg6: memref<1x8x4x8x32xf32, #tpu.memory_space<vmem>>) attributes {dimension_semantics = [#tpu.dimension_semantics<parallel>], iteration_bounds = array<i64: 2>, scalar_prefetch = 0 : i64, scratch_operands = 0 : i64, tpu.core_type = #tpu.core_type<tc>, window_params = [{transform_indices = @transform_0, window_bounds = array<i64: 1, 4, 6, 10, 34>}, {transform_indices = @transform_1, window_bounds = array<i64: 4, 4>}, {transform_indices = @transform_2, window_bounds = array<i64: 4>}, {transform_indices = @transform_3, window_bounds = array<i64: 4, 27>}, {transform_indices = @transform_4, window_bounds = array<i64: 4>}, {transform_indices = @transform_5, window_bounds = array<i64: 1, 8, 4, 8, 32>}]} {
    %0 = tpu.iota {dimensions = array<i32: 0>} : vector<10x34xi32>
    %1 = tpu.iota {dimensions = array<i32: 1>} : vector<10x34xi32>
    %c1_i32 = arith.constant 1 : i32
    %2 = vector.broadcast %c1_i32 : i32 to vector<10x34xi32>
    %3 = arith.cmpi sge, %0, %2 : vector<10x34xi32>
    %c8_i32 = arith.constant 8 : i32
    %4 = vector.broadcast %c8_i32 : i32 to vector<10x34xi32>
    %5 = arith.cmpi sle, %0, %4 : vector<10x34xi32>
    %6 = arith.andi %3, %5 : vector<10x34xi1>
    %c1_i32_0 = arith.constant 1 : i32
    %7 = vector.broadcast %c1_i32_0 : i32 to vector<10x34xi32>
    %8 = arith.cmpi sge, %1, %7 : vector<10x34xi32>
    %9 = arith.andi %6, %8 : vector<10x34xi1>
    %c32_i32 = arith.constant 32 : i32
    %10 = vector.broadcast %c32_i32 : i32 to vector<10x34xi32>
    %11 = arith.cmpi sle, %1, %10 : vector<10x34xi32>
    %12 = arith.andi %9, %11 : vector<10x34xi1>
    %13 = arith.extui %12 : vector<10x34xi1> to vector<10x34xi32>
    %14 = arith.sitofp %13 : vector<10x34xi32> to vector<10x34xf32>
    %cst = arith.constant 0.000000e+00 : f32
    %15 = vector.broadcast %cst : f32 to vector<1x10x34xf32>
    %16 = vector.shape_cast %14 : vector<10x34xf32> to vector<1x10x34xf32>
    %17 = vector.broadcast %16 : vector<1x10x34xf32> to vector<4x10x34xf32>
    %18 = tpu.concatenate %15, %17, %15 in 0 : vector<1x10x34xf32>, vector<4x10x34xf32>, vector<1x10x34xf32> -> vector<6x10x34xf32>
    %cst_1 = arith.constant 0.000000e+00 : f32
    %19 = vector.broadcast %cst_1 : f32 to vector<6x10x34xf32>
    %c0 = arith.constant 0 : index
    %c0_2 = arith.constant 0 : index
    %20 = memref.load %arg2[%c0, %c0_2] : memref<4x4xf32, #tpu.memory_space<smem>>
    %c0_3 = arith.constant 0 : index
    %c0_4 = arith.constant 0 : index
    %c0_5 = arith.constant 0 : index
    %c0_6 = arith.constant 0 : index
    %c0_7 = arith.constant 0 : index
    %21 = vector.load %arg1[%c0_3, %c0_4, %c0_5, %c0_6, %c0_7] : memref<1x4x6x10x34xf32, #tpu.memory_space<vmem>>, vector<1x1x6x10x34xf32>
    %22 = vector.shape_cast %21 : vector<1x1x6x10x34xf32> to vector<6x10x34xf32>
    %23 = vector.broadcast %20 : f32 to vector<6x10x34xf32>
    %24 = arith.mulf %23, %22 : vector<6x10x34xf32>
    %25 = arith.addf %19, %24 : vector<6x10x34xf32>
    %c0_8 = arith.constant 0 : index
    %c1 = arith.constant 1 : index
    %26 = memref.load %arg2[%c0_8, %c1] : memref<4x4xf32, #tpu.memory_space<smem>>
    %c0_9 = arith.constant 0 : index
    %c1_10 = arith.constant 1 : index
    %c0_11 = arith.constant 0 : index
    %c0_12 = arith.constant 0 : index
    %c0_13 = arith.constant 0 : index
    %27 = vector.load %arg1[%c0_9, %c1_10, %c0_11, %c0_12, %c0_13] : memref<1x4x6x10x34xf32, #tpu.memory_space<vmem>>, vector<1x1x6x10x34xf32>
    %28 = vector.shape_cast %27 : vector<1x1x6x10x34xf32> to vector<6x10x34xf32>
    %29 = vector.broadcast %26 : f32 to vector<6x10x34xf32>
    %30 = arith.mulf %29, %28 : vector<6x10x34xf32>
    %31 = arith.addf %25, %30 : vector<6x10x34xf32>
    %c0_14 = arith.constant 0 : index
    %c2 = arith.constant 2 : index
    %32 = memref.load %arg2[%c0_14, %c2] : memref<4x4xf32, #tpu.memory_space<smem>>
    %c0_15 = arith.constant 0 : index
    %c2_16 = arith.constant 2 : index
    %c0_17 = arith.constant 0 : index
    %c0_18 = arith.constant 0 : index
    %c0_19 = arith.constant 0 : index
    %33 = vector.load %arg1[%c0_15, %c2_16, %c0_17, %c0_18, %c0_19] : memref<1x4x6x10x34xf32, #tpu.memory_space<vmem>>, vector<1x1x6x10x34xf32>
    %34 = vector.shape_cast %33 : vector<1x1x6x10x34xf32> to vector<6x10x34xf32>
    %35 = vector.broadcast %32 : f32 to vector<6x10x34xf32>
    %36 = arith.mulf %35, %34 : vector<6x10x34xf32>
    %37 = arith.addf %31, %36 : vector<6x10x34xf32>
    %c0_20 = arith.constant 0 : index
    %c3 = arith.constant 3 : index
    %38 = memref.load %arg2[%c0_20, %c3] : memref<4x4xf32, #tpu.memory_space<smem>>
    %c0_21 = arith.constant 0 : index
    %c3_22 = arith.constant 3 : index
    %c0_23 = arith.constant 0 : index
    %c0_24 = arith.constant 0 : index
    %c0_25 = arith.constant 0 : index
    %39 = vector.load %arg1[%c0_21, %c3_22, %c0_23, %c0_24, %c0_25] : memref<1x4x6x10x34xf32, #tpu.memory_space<vmem>>, vector<1x1x6x10x34xf32>
    %40 = vector.shape_cast %39 : vector<1x1x6x10x34xf32> to vector<6x10x34xf32>
    %41 = vector.broadcast %38 : f32 to vector<6x10x34xf32>
    %42 = arith.mulf %41, %40 : vector<6x10x34xf32>
    %43 = arith.addf %37, %42 : vector<6x10x34xf32>
    %c0_26 = arith.constant 0 : index
    %44 = memref.load %arg3[%c0_26] : memref<4xf32, #tpu.memory_space<smem>>
    %45 = vector.broadcast %44 : f32 to vector<6x10x34xf32>
    %46 = arith.addf %43, %45 : vector<6x10x34xf32>
    %cst_27 = arith.constant 0.000000e+00 : f32
    %47 = vector.broadcast %cst_27 : f32 to vector<6x10x34xf32>
    %48 = arith.maximumf %46, %47 : vector<6x10x34xf32>
    %49 = vector.extract_strided_slice %48 {offsets = [1, 1, 1], sizes = [4, 8, 32], strides = [1, 1, 1]} : vector<6x10x34xf32> to vector<4x8x32xf32>
    %c0_28 = arith.constant 0 : index
    %c0_29 = arith.constant 0 : index
    %c0_30 = arith.constant 0 : index
    %c0_31 = arith.constant 0 : index
    %c0_32 = arith.constant 0 : index
    %50 = vector.load %arg6[%c0_28, %c0_29, %c0_30, %c0_31, %c0_32] : memref<1x8x4x8x32xf32, #tpu.memory_space<vmem>>, vector<1x1x4x8x32xf32>
    %51 = vector.shape_cast %50 : vector<1x1x4x8x32xf32> to vector<4x8x32xf32>
    %52 = vector.shape_cast %49 : vector<4x8x32xf32> to vector<1x1x4x8x32xf32>
    tpu.vector_store %arg6[%c0_28, %c0_29, %c0_30, %c0_31, %c0_32], %52 {strides = array<i32>} : memref<1x8x4x8x32xf32, #tpu.memory_space<vmem>>, vector<1x1x4x8x32xf32>,
    %53 = arith.mulf %48, %18 : vector<6x10x34xf32>
    %cst_33 = arith.constant 0.000000e+00 : f32
    %54 = vector.broadcast %cst_33 : f32 to vector<6x10x34xf32>
    %c1_34 = arith.constant 1 : index
    %c0_35 = arith.constant 0 : index
    %55 = memref.load %arg2[%c1_34, %c0_35] : memref<4x4xf32, #tpu.memory_space<smem>>
    %c0_36 = arith.constant 0 : index
    %c0_37 = arith.constant 0 : index
    %c0_38 = arith.constant 0 : index
    %c0_39 = arith.constant 0 : index
    %c0_40 = arith.constant 0 : index
    %56 = vector.load %arg1[%c0_36, %c0_37, %c0_38, %c0_39, %c0_40] : memref<1x4x6x10x34xf32, #tpu.memory_space<vmem>>, vector<1x1x6x10x34xf32>
    %57 = vector.shape_cast %56 : vector<1x1x6x10x34xf32> to vector<6x10x34xf32>
    %58 = vector.broadcast %55 : f32 to vector<6x10x34xf32>
    %59 = arith.mulf %58, %57 : vector<6x10x34xf32>
    %60 = arith.addf %54, %59 : vector<6x10x34xf32>
    %c1_41 = arith.constant 1 : index
    %c1_42 = arith.constant 1 : index
    %61 = memref.load %arg2[%c1_41, %c1_42] : memref<4x4xf32, #tpu.memory_space<smem>>
    %c0_43 = arith.constant 0 : index
    %c1_44 = arith.constant 1 : index
    %c0_45 = arith.constant 0 : index
    %c0_46 = arith.constant 0 : index
    %c0_47 = arith.constant 0 : index
    %62 = vector.load %arg1[%c0_43, %c1_44, %c0_45, %c0_46, %c0_47] : memref<1x4x6x10x34xf32, #tpu.memory_space<vmem>>, vector<1x1x6x10x34xf32>
    %63 = vector.shape_cast %62 : vector<1x1x6x10x34xf32> to vector<6x10x34xf32>
    %64 = vector.broadcast %61 : f32 to vector<6x10x34xf32>
    %65 = arith.mulf %64, %63 : vector<6x10x34xf32>
    %66 = arith.addf %60, %65 : vector<6x10x34xf32>
    %c1_48 = arith.constant 1 : index
    %c2_49 = arith.constant 2 : index
    %67 = memref.load %arg2[%c1_48, %c2_49] : memref<4x4xf32, #tpu.memory_space<smem>>
    %c0_50 = arith.constant 0 : index
    %c2_51 = arith.constant 2 : index
    %c0_52 = arith.constant 0 : index
    %c0_53 = arith.constant 0 : index
    %c0_54 = arith.constant 0 : index
    %68 = vector.load %arg1[%c0_50, %c2_51, %c0_52, %c0_53, %c0_54] : memref<1x4x6x10x34xf32, #tpu.memory_space<vmem>>, vector<1x1x6x10x34xf32>
    %69 = vector.shape_cast %68 : vector<1x1x6x10x34xf32> to vector<6x10x34xf32>
    %70 = vector.broadcast %67 : f32 to vector<6x10x34xf32>
    %71 = arith.mulf %70, %69 : vector<6x10x34xf32>
    %72 = arith.addf %66, %71 : vector<6x10x34xf32>
    %c1_55 = arith.constant 1 : index
    %c3_56 = arith.constant 3 : index
    %73 = memref.load %arg2[%c1_55, %c3_56] : memref<4x4xf32, #tpu.memory_space<smem>>
    %c0_57 = arith.constant 0 : index
    %c3_58 = arith.constant 3 : index
    %c0_59 = arith.constant 0 : index
    %c0_60 = arith.constant 0 : index
    %c0_61 = arith.constant 0 : index
    %74 = vector.load %arg1[%c0_57, %c3_58, %c0_59, %c0_60, %c0_61] : memref<1x4x6x10x34xf32, #tpu.memory_space<vmem>>, vector<1x1x6x10x34xf32>
    %75 = vector.shape_cast %74 : vector<1x1x6x10x34xf32> to vector<6x10x34xf32>
    %76 = vector.broadcast %73 : f32 to vector<6x10x34xf32>
    %77 = arith.mulf %76, %75 : vector<6x10x34xf32>
    %78 = arith.addf %72, %77 : vector<6x10x34xf32>
    %c1_62 = arith.constant 1 : index
    %79 = memref.load %arg3[%c1_62] : memref<4xf32, #tpu.memory_space<smem>>
    %80 = vector.broadcast %79 : f32 to vector<6x10x34xf32>
    %81 = arith.addf %78, %80 : vector<6x10x34xf32>
    %cst_63 = arith.constant 0.000000e+00 : f32
    %82 = vector.broadcast %cst_63 : f32 to vector<6x10x34xf32>
    %83 = arith.maximumf %81, %82 : vector<6x10x34xf32>
    %84 = vector.extract_strided_slice %83 {offsets = [1, 1, 1], sizes = [4, 8, 32], strides = [1, 1, 1]} : vector<6x10x34xf32> to vector<4x8x32xf32>
    %c0_64 = arith.constant 0 : index
    %c1_65 = arith.constant 1 : index
    %c0_66 = arith.constant 0 : index
    %c0_67 = arith.constant 0 : index
    %c0_68 = arith.constant 0 : index
    %85 = vector.load %arg6[%c0_64, %c1_65, %c0_66, %c0_67, %c0_68] : memref<1x8x4x8x32xf32, #tpu.memory_space<vmem>>, vector<1x1x4x8x32xf32>
    %86 = vector.shape_cast %85 : vector<1x1x4x8x32xf32> to vector<4x8x32xf32>
    %87 = vector.shape_cast %84 : vector<4x8x32xf32> to vector<1x1x4x8x32xf32>
    tpu.vector_store %arg6[%c0_64, %c1_65, %c0_66, %c0_67, %c0_68], %87 {strides = array<i32>} : memref<1x8x4x8x32xf32, #tpu.memory_space<vmem>>, vector<1x1x4x8x32xf32>,
    %88 = arith.mulf %83, %18 : vector<6x10x34xf32>
    %cst_69 = arith.constant 0.000000e+00 : f32
    %89 = vector.broadcast %cst_69 : f32 to vector<6x10x34xf32>
    %c2_70 = arith.constant 2 : index
    %c0_71 = arith.constant 0 : index
    %90 = memref.load %arg2[%c2_70, %c0_71] : memref<4x4xf32, #tpu.memory_space<smem>>
    %c0_72 = arith.constant 0 : index
    %c0_73 = arith.constant 0 : index
    %c0_74 = arith.constant 0 : index
    %c0_75 = arith.constant 0 : index
    %c0_76 = arith.constant 0 : index
    %91 = vector.load %arg1[%c0_72, %c0_73, %c0_74, %c0_75, %c0_76] : memref<1x4x6x10x34xf32, #tpu.memory_space<vmem>>, vector<1x1x6x10x34xf32>
    %92 = vector.shape_cast %91 : vector<1x1x6x10x34xf32> to vector<6x10x34xf32>
    %93 = vector.broadcast %90 : f32 to vector<6x10x34xf32>
    %94 = arith.mulf %93, %92 : vector<6x10x34xf32>
    %95 = arith.addf %89, %94 : vector<6x10x34xf32>
    %c2_77 = arith.constant 2 : index
    %c1_78 = arith.constant 1 : index
    %96 = memref.load %arg2[%c2_77, %c1_78] : memref<4x4xf32, #tpu.memory_space<smem>>
    %c0_79 = arith.constant 0 : index
    %c1_80 = arith.constant 1 : index
    %c0_81 = arith.constant 0 : index
    %c0_82 = arith.constant 0 : index
    %c0_83 = arith.constant 0 : index
    %97 = vector.load %arg1[%c0_79, %c1_80, %c0_81, %c0_82, %c0_83] : memref<1x4x6x10x34xf32, #tpu.memory_space<vmem>>, vector<1x1x6x10x34xf32>
    %98 = vector.shape_cast %97 : vector<1x1x6x10x34xf32> to vector<6x10x34xf32>
    %99 = vector.broadcast %96 : f32 to vector<6x10x34xf32>
    %100 = arith.mulf %99, %98 : vector<6x10x34xf32>
    %101 = arith.addf %95, %100 : vector<6x10x34xf32>
    %c2_84 = arith.constant 2 : index
    %c2_85 = arith.constant 2 : index
    %102 = memref.load %arg2[%c2_84, %c2_85] : memref<4x4xf32, #tpu.memory_space<smem>>
    %c0_86 = arith.constant 0 : index
    %c2_87 = arith.constant 2 : index
    %c0_88 = arith.constant 0 : index
    %c0_89 = arith.constant 0 : index
    %c0_90 = arith.constant 0 : index
    %103 = vector.load %arg1[%c0_86, %c2_87, %c0_88, %c0_89, %c0_90] : memref<1x4x6x10x34xf32, #tpu.memory_space<vmem>>, vector<1x1x6x10x34xf32>
    %104 = vector.shape_cast %103 : vector<1x1x6x10x34xf32> to vector<6x10x34xf32>
    %105 = vector.broadcast %102 : f32 to vector<6x10x34xf32>
    %106 = arith.mulf %105, %104 : vector<6x10x34xf32>
    %107 = arith.addf %101, %106 : vector<6x10x34xf32>
    %c2_91 = arith.constant 2 : index
    %c3_92 = arith.constant 3 : index
    %108 = memref.load %arg2[%c2_91, %c3_92] : memref<4x4xf32, #tpu.memory_space<smem>>
    %c0_93 = arith.constant 0 : index
    %c3_94 = arith.constant 3 : index
    %c0_95 = arith.constant 0 : index
    %c0_96 = arith.constant 0 : index
    %c0_97 = arith.constant 0 : index
    %109 = vector.load %arg1[%c0_93, %c3_94, %c0_95, %c0_96, %c0_97] : memref<1x4x6x10x34xf32, #tpu.memory_space<vmem>>, vector<1x1x6x10x34xf32>
    %110 = vector.shape_cast %109 : vector<1x1x6x10x34xf32> to vector<6x10x34xf32>
    %111 = vector.broadcast %108 : f32 to vector<6x10x34xf32>
    %112 = arith.mulf %111, %110 : vector<6x10x34xf32>
    %113 = arith.addf %107, %112 : vector<6x10x34xf32>
    %c2_98 = arith.constant 2 : index
    %114 = memref.load %arg3[%c2_98] : memref<4xf32, #tpu.memory_space<smem>>
    %115 = vector.broadcast %114 : f32 to vector<6x10x34xf32>
    %116 = arith.addf %113, %115 : vector<6x10x34xf32>
    %cst_99 = arith.constant 0.000000e+00 : f32
    %117 = vector.broadcast %cst_99 : f32 to vector<6x10x34xf32>
    %118 = arith.maximumf %116, %117 : vector<6x10x34xf32>
    %119 = vector.extract_strided_slice %118 {offsets = [1, 1, 1], sizes = [4, 8, 32], strides = [1, 1, 1]} : vector<6x10x34xf32> to vector<4x8x32xf32>
    %c0_100 = arith.constant 0 : index
    %c2_101 = arith.constant 2 : index
    %c0_102 = arith.constant 0 : index
    %c0_103 = arith.constant 0 : index
    %c0_104 = arith.constant 0 : index
    %120 = vector.load %arg6[%c0_100, %c2_101, %c0_102, %c0_103, %c0_104] : memref<1x8x4x8x32xf32, #tpu.memory_space<vmem>>, vector<1x1x4x8x32xf32>
    %121 = vector.shape_cast %120 : vector<1x1x4x8x32xf32> to vector<4x8x32xf32>
    %122 = vector.shape_cast %119 : vector<4x8x32xf32> to vector<1x1x4x8x32xf32>
    tpu.vector_store %arg6[%c0_100, %c2_101, %c0_102, %c0_103, %c0_104], %122 {strides = array<i32>} : memref<1x8x4x8x32xf32, #tpu.memory_space<vmem>>, vector<1x1x4x8x32xf32>,
    %123 = arith.mulf %118, %18 : vector<6x10x34xf32>
    %cst_105 = arith.constant 0.000000e+00 : f32
    %124 = vector.broadcast %cst_105 : f32 to vector<6x10x34xf32>
    %c3_106 = arith.constant 3 : index
    %c0_107 = arith.constant 0 : index
    %125 = memref.load %arg2[%c3_106, %c0_107] : memref<4x4xf32, #tpu.memory_space<smem>>
    %c0_108 = arith.constant 0 : index
    %c0_109 = arith.constant 0 : index
    %c0_110 = arith.constant 0 : index
    %c0_111 = arith.constant 0 : index
    %c0_112 = arith.constant 0 : index
    %126 = vector.load %arg1[%c0_108, %c0_109, %c0_110, %c0_111, %c0_112] : memref<1x4x6x10x34xf32, #tpu.memory_space<vmem>>, vector<1x1x6x10x34xf32>
    %127 = vector.shape_cast %126 : vector<1x1x6x10x34xf32> to vector<6x10x34xf32>
    %128 = vector.broadcast %125 : f32 to vector<6x10x34xf32>
    %129 = arith.mulf %128, %127 : vector<6x10x34xf32>
    %130 = arith.addf %124, %129 : vector<6x10x34xf32>
    %c3_113 = arith.constant 3 : index
    %c1_114 = arith.constant 1 : index
    %131 = memref.load %arg2[%c3_113, %c1_114] : memref<4x4xf32, #tpu.memory_space<smem>>
    %c0_115 = arith.constant 0 : index
    %c1_116 = arith.constant 1 : index
    %c0_117 = arith.constant 0 : index
    %c0_118 = arith.constant 0 : index
    %c0_119 = arith.constant 0 : index
    %132 = vector.load %arg1[%c0_115, %c1_116, %c0_117, %c0_118, %c0_119] : memref<1x4x6x10x34xf32, #tpu.memory_space<vmem>>, vector<1x1x6x10x34xf32>
    %133 = vector.shape_cast %132 : vector<1x1x6x10x34xf32> to vector<6x10x34xf32>
    %134 = vector.broadcast %131 : f32 to vector<6x10x34xf32>
    %135 = arith.mulf %134, %133 : vector<6x10x34xf32>
    %136 = arith.addf %130, %135 : vector<6x10x34xf32>
    %c3_120 = arith.constant 3 : index
    %c2_121 = arith.constant 2 : index
    %137 = memref.load %arg2[%c3_120, %c2_121] : memref<4x4xf32, #tpu.memory_space<smem>>
    %c0_122 = arith.constant 0 : index
    %c2_123 = arith.constant 2 : index
    %c0_124 = arith.constant 0 : index
    %c0_125 = arith.constant 0 : index
    %c0_126 = arith.constant 0 : index
    %138 = vector.load %arg1[%c0_122, %c2_123, %c0_124, %c0_125, %c0_126] : memref<1x4x6x10x34xf32, #tpu.memory_space<vmem>>, vector<1x1x6x10x34xf32>
    %139 = vector.shape_cast %138 : vector<1x1x6x10x34xf32> to vector<6x10x34xf32>
    %140 = vector.broadcast %137 : f32 to vector<6x10x34xf32>
    %141 = arith.mulf %140, %139 : vector<6x10x34xf32>
    %142 = arith.addf %136, %141 : vector<6x10x34xf32>
    %c3_127 = arith.constant 3 : index
    %c3_128 = arith.constant 3 : index
    %143 = memref.load %arg2[%c3_127, %c3_128] : memref<4x4xf32, #tpu.memory_space<smem>>
    %c0_129 = arith.constant 0 : index
    %c3_130 = arith.constant 3 : index
    %c0_131 = arith.constant 0 : index
    %c0_132 = arith.constant 0 : index
    %c0_133 = arith.constant 0 : index
    %144 = vector.load %arg1[%c0_129, %c3_130, %c0_131, %c0_132, %c0_133] : memref<1x4x6x10x34xf32, #tpu.memory_space<vmem>>, vector<1x1x6x10x34xf32>
    %145 = vector.shape_cast %144 : vector<1x1x6x10x34xf32> to vector<6x10x34xf32>
    %146 = vector.broadcast %143 : f32 to vector<6x10x34xf32>
    %147 = arith.mulf %146, %145 : vector<6x10x34xf32>
    %148 = arith.addf %142, %147 : vector<6x10x34xf32>
    %c3_134 = arith.constant 3 : index
    %149 = memref.load %arg3[%c3_134] : memref<4xf32, #tpu.memory_space<smem>>
    %150 = vector.broadcast %149 : f32 to vector<6x10x34xf32>
    %151 = arith.addf %148, %150 : vector<6x10x34xf32>
    %cst_135 = arith.constant 0.000000e+00 : f32
    %152 = vector.broadcast %cst_135 : f32 to vector<6x10x34xf32>
    %153 = arith.maximumf %151, %152 : vector<6x10x34xf32>
    %154 = vector.extract_strided_slice %153 {offsets = [1, 1, 1], sizes = [4, 8, 32], strides = [1, 1, 1]} : vector<6x10x34xf32> to vector<4x8x32xf32>
    %c0_136 = arith.constant 0 : index
    %c3_137 = arith.constant 3 : index
    %c0_138 = arith.constant 0 : index
    %c0_139 = arith.constant 0 : index
    %c0_140 = arith.constant 0 : index
    %155 = vector.load %arg6[%c0_136, %c3_137, %c0_138, %c0_139, %c0_140] : memref<1x8x4x8x32xf32, #tpu.memory_space<vmem>>, vector<1x1x4x8x32xf32>
    %156 = vector.shape_cast %155 : vector<1x1x4x8x32xf32> to vector<4x8x32xf32>
    %157 = vector.shape_cast %154 : vector<4x8x32xf32> to vector<1x1x4x8x32xf32>
    tpu.vector_store %arg6[%c0_136, %c3_137, %c0_138, %c0_139, %c0_140], %157 {strides = array<i32>} : memref<1x8x4x8x32xf32, #tpu.memory_space<vmem>>, vector<1x1x4x8x32xf32>,
    %158 = arith.mulf %153, %18 : vector<6x10x34xf32>
    %cst_141 = arith.constant 0.000000e+00 : f32
    %159 = vector.broadcast %cst_141 : f32 to vector<4x8x32xf32>
    %c0_142 = arith.constant 0 : index
    %c0_143 = arith.constant 0 : index
    %160 = memref.load %arg4[%c0_142, %c0_143] : memref<4x27xf32, #tpu.memory_space<smem>>
    %161 = vector.extract_strided_slice %53 {offsets = [0, 0, 0], sizes = [4, 8, 32], strides = [1, 1, 1]} : vector<6x10x34xf32> to vector<4x8x32xf32>
    %162 = vector.broadcast %160 : f32 to vector<4x8x32xf32>
    %163 = arith.mulf %162, %161 : vector<4x8x32xf32>
    %164 = arith.addf %159, %163 : vector<4x8x32xf32>
    %c0_144 = arith.constant 0 : index
    %c1_145 = arith.constant 1 : index
    %165 = memref.load %arg4[%c0_144, %c1_145] : memref<4x27xf32, #tpu.memory_space<smem>>
    %166 = vector.extract_strided_slice %53 {offsets = [0, 0, 1], sizes = [4, 8, 32], strides = [1, 1, 1]} : vector<6x10x34xf32> to vector<4x8x32xf32>
    %167 = vector.broadcast %165 : f32 to vector<4x8x32xf32>
    %168 = arith.mulf %167, %166 : vector<4x8x32xf32>
    %169 = arith.addf %164, %168 : vector<4x8x32xf32>
    %c0_146 = arith.constant 0 : index
    %c2_147 = arith.constant 2 : index
    %170 = memref.load %arg4[%c0_146, %c2_147] : memref<4x27xf32, #tpu.memory_space<smem>>
    %171 = vector.extract_strided_slice %53 {offsets = [0, 0, 2], sizes = [4, 8, 32], strides = [1, 1, 1]} : vector<6x10x34xf32> to vector<4x8x32xf32>
    %172 = vector.broadcast %170 : f32 to vector<4x8x32xf32>
    %173 = arith.mulf %172, %171 : vector<4x8x32xf32>
    %174 = arith.addf %169, %173 : vector<4x8x32xf32>
    %c0_148 = arith.constant 0 : index
    %c3_149 = arith.constant 3 : index
    %175 = memref.load %arg4[%c0_148, %c3_149] : memref<4x27xf32, #tpu.memory_space<smem>>
    %176 = vector.extract_strided_slice %53 {offsets = [0, 1, 0], sizes = [4, 8, 32], strides = [1, 1, 1]} : vector<6x10x34xf32> to vector<4x8x32xf32>
    %177 = vector.broadcast %175 : f32 to vector<4x8x32xf32>
    %178 = arith.mulf %177, %176 : vector<4x8x32xf32>
    %179 = arith.addf %174, %178 : vector<4x8x32xf32>
    %c0_150 = arith.constant 0 : index
    %c4 = arith.constant 4 : index
    %180 = memref.load %arg4[%c0_150, %c4] : memref<4x27xf32, #tpu.memory_space<smem>>
    %181 = vector.extract_strided_slice %53 {offsets = [0, 1, 1], sizes = [4, 8, 32], strides = [1, 1, 1]} : vector<6x10x34xf32> to vector<4x8x32xf32>
    %182 = vector.broadcast %180 : f32 to vector<4x8x32xf32>
    %183 = arith.mulf %182, %181 : vector<4x8x32xf32>
    %184 = arith.addf %179, %183 : vector<4x8x32xf32>
    %c0_151 = arith.constant 0 : index
    %c5 = arith.constant 5 : index
    %185 = memref.load %arg4[%c0_151, %c5] : memref<4x27xf32, #tpu.memory_space<smem>>
    %186 = vector.extract_strided_slice %53 {offsets = [0, 1, 2], sizes = [4, 8, 32], strides = [1, 1, 1]} : vector<6x10x34xf32> to vector<4x8x32xf32>
    %187 = vector.broadcast %185 : f32 to vector<4x8x32xf32>
    %188 = arith.mulf %187, %186 : vector<4x8x32xf32>
    %189 = arith.addf %184, %188 : vector<4x8x32xf32>
    %c0_152 = arith.constant 0 : index
    %c6 = arith.constant 6 : index
    %190 = memref.load %arg4[%c0_152, %c6] : memref<4x27xf32, #tpu.memory_space<smem>>
    %191 = vector.extract_strided_slice %53 {offsets = [0, 2, 0], sizes = [4, 8, 32], strides = [1, 1, 1]} : vector<6x10x34xf32> to vector<4x8x32xf32>
    %192 = vector.broadcast %190 : f32 to vector<4x8x32xf32>
    %193 = arith.mulf %192, %191 : vector<4x8x32xf32>
    %194 = arith.addf %189, %193 : vector<4x8x32xf32>
    %c0_153 = arith.constant 0 : index
    %c7 = arith.constant 7 : index
    %195 = memref.load %arg4[%c0_153, %c7] : memref<4x27xf32, #tpu.memory_space<smem>>
    %196 = vector.extract_strided_slice %53 {offsets = [0, 2, 1], sizes = [4, 8, 32], strides = [1, 1, 1]} : vector<6x10x34xf32> to vector<4x8x32xf32>
    %197 = vector.broadcast %195 : f32 to vector<4x8x32xf32>
    %198 = arith.mulf %197, %196 : vector<4x8x32xf32>
    %199 = arith.addf %194, %198 : vector<4x8x32xf32>
    %c0_154 = arith.constant 0 : index
    %c8 = arith.constant 8 : index
    %200 = memref.load %arg4[%c0_154, %c8] : memref<4x27xf32, #tpu.memory_space<smem>>
    %201 = vector.extract_strided_slice %53 {offsets = [0, 2, 2], sizes = [4, 8, 32], strides = [1, 1, 1]} : vector<6x10x34xf32> to vector<4x8x32xf32>
    %202 = vector.broadcast %200 : f32 to vector<4x8x32xf32>
    %203 = arith.mulf %202, %201 : vector<4x8x32xf32>
    %204 = arith.addf %199, %203 : vector<4x8x32xf32>
    %c0_155 = arith.constant 0 : index
    %c9 = arith.constant 9 : index
    %205 = memref.load %arg4[%c0_155, %c9] : memref<4x27xf32, #tpu.memory_space<smem>>
    %206 = vector.extract_strided_slice %53 {offsets = [1, 0, 0], sizes = [4, 8, 32], strides = [1, 1, 1]} : vector<6x10x34xf32> to vector<4x8x32xf32>
    %207 = vector.broadcast %205 : f32 to vector<4x8x32xf32>
    %208 = arith.mulf %207, %206 : vector<4x8x32xf32>
    %209 = arith.addf %204, %208 : vector<4x8x32xf32>
    %c0_156 = arith.constant 0 : index
    %c10 = arith.constant 10 : index
    %210 = memref.load %arg4[%c0_156, %c10] : memref<4x27xf32, #tpu.memory_space<smem>>
    %211 = vector.extract_strided_slice %53 {offsets = [1, 0, 1], sizes = [4, 8, 32], strides = [1, 1, 1]} : vector<6x10x34xf32> to vector<4x8x32xf32>
    %212 = vector.broadcast %210 : f32 to vector<4x8x32xf32>
    %213 = arith.mulf %212, %211 : vector<4x8x32xf32>
    %214 = arith.addf %209, %213 : vector<4x8x32xf32>
    %c0_157 = arith.constant 0 : index
    %c11 = arith.constant 11 : index
    %215 = memref.load %arg4[%c0_157, %c11] : memref<4x27xf32, #tpu.memory_space<smem>>
    %216 = vector.extract_strided_slice %53 {offsets = [1, 0, 2], sizes = [4, 8, 32], strides = [1, 1, 1]} : vector<6x10x34xf32> to vector<4x8x32xf32>
    %217 = vector.broadcast %215 : f32 to vector<4x8x32xf32>
    %218 = arith.mulf %217, %216 : vector<4x8x32xf32>
    %219 = arith.addf %214, %218 : vector<4x8x32xf32>
    %c0_158 = arith.constant 0 : index
    %c12 = arith.constant 12 : index
    %220 = memref.load %arg4[%c0_158, %c12] : memref<4x27xf32, #tpu.memory_space<smem>>
    %221 = vector.extract_strided_slice %53 {offsets = [1, 1, 0], sizes = [4, 8, 32], strides = [1, 1, 1]} : vector<6x10x34xf32> to vector<4x8x32xf32>
    %222 = vector.broadcast %220 : f32 to vector<4x8x32xf32>
    %223 = arith.mulf %222, %221 : vector<4x8x32xf32>
    %224 = arith.addf %219, %223 : vector<4x8x32xf32>
    %c0_159 = arith.constant 0 : index
    %c13 = arith.constant 13 : index
    %225 = memref.load %arg4[%c0_159, %c13] : memref<4x27xf32, #tpu.memory_space<smem>>
    %226 = vector.extract_strided_slice %53 {offsets = [1, 1, 1], sizes = [4, 8, 32], strides = [1, 1, 1]} : vector<6x10x34xf32> to vector<4x8x32xf32>
    %227 = vector.broadcast %225 : f32 to vector<4x8x32xf32>
    %228 = arith.mulf %227, %226 : vector<4x8x32xf32>
    %229 = arith.addf %224, %228 : vector<4x8x32xf32>
    %c0_160 = arith.constant 0 : index
    %c14 = arith.constant 14 : index
    %230 = memref.load %arg4[%c0_160, %c14] : memref<4x27xf32, #tpu.memory_space<smem>>
    %231 = vector.extract_strided_slice %53 {offsets = [1, 1, 2], sizes = [4, 8, 32], strides = [1, 1, 1]} : vector<6x10x34xf32> to vector<4x8x32xf32>
    %232 = vector.broadcast %230 : f32 to vector<4x8x32xf32>
    %233 = arith.mulf %232, %231 : vector<4x8x32xf32>
    %234 = arith.addf %229, %233 : vector<4x8x32xf32>
    %c0_161 = arith.constant 0 : index
    %c15 = arith.constant 15 : index
    %235 = memref.load %arg4[%c0_161, %c15] : memref<4x27xf32, #tpu.memory_space<smem>>
    %236 = vector.extract_strided_slice %53 {offsets = [1, 2, 0], sizes = [4, 8, 32], strides = [1, 1, 1]} : vector<6x10x34xf32> to vector<4x8x32xf32>
    %237 = vector.broadcast %235 : f32 to vector<4x8x32xf32>
    %238 = arith.mulf %237, %236 : vector<4x8x32xf32>
    %239 = arith.addf %234, %238 : vector<4x8x32xf32>
    %c0_162 = arith.constant 0 : index
    %c16 = arith.constant 16 : index
    %240 = memref.load %arg4[%c0_162, %c16] : memref<4x27xf32, #tpu.memory_space<smem>>
    %241 = vector.extract_strided_slice %53 {offsets = [1, 2, 1], sizes = [4, 8, 32], strides = [1, 1, 1]} : vector<6x10x34xf32> to vector<4x8x32xf32>
    %242 = vector.broadcast %240 : f32 to vector<4x8x32xf32>
    %243 = arith.mulf %242, %241 : vector<4x8x32xf32>
    %244 = arith.addf %239, %243 : vector<4x8x32xf32>
    %c0_163 = arith.constant 0 : index
    %c17 = arith.constant 17 : index
    %245 = memref.load %arg4[%c0_163, %c17] : memref<4x27xf32, #tpu.memory_space<smem>>
    %246 = vector.extract_strided_slice %53 {offsets = [1, 2, 2], sizes = [4, 8, 32], strides = [1, 1, 1]} : vector<6x10x34xf32> to vector<4x8x32xf32>
    %247 = vector.broadcast %245 : f32 to vector<4x8x32xf32>
    %248 = arith.mulf %247, %246 : vector<4x8x32xf32>
    %249 = arith.addf %244, %248 : vector<4x8x32xf32>
    %c0_164 = arith.constant 0 : index
    %c18 = arith.constant 18 : index
    %250 = memref.load %arg4[%c0_164, %c18] : memref<4x27xf32, #tpu.memory_space<smem>>
    %251 = vector.extract_strided_slice %53 {offsets = [2, 0, 0], sizes = [4, 8, 32], strides = [1, 1, 1]} : vector<6x10x34xf32> to vector<4x8x32xf32>
    %252 = vector.broadcast %250 : f32 to vector<4x8x32xf32>
    %253 = arith.mulf %252, %251 : vector<4x8x32xf32>
    %254 = arith.addf %249, %253 : vector<4x8x32xf32>
    %c0_165 = arith.constant 0 : index
    %c19 = arith.constant 19 : index
    %255 = memref.load %arg4[%c0_165, %c19] : memref<4x27xf32, #tpu.memory_space<smem>>
    %256 = vector.extract_strided_slice %53 {offsets = [2, 0, 1], sizes = [4, 8, 32], strides = [1, 1, 1]} : vector<6x10x34xf32> to vector<4x8x32xf32>
    %257 = vector.broadcast %255 : f32 to vector<4x8x32xf32>
    %258 = arith.mulf %257, %256 : vector<4x8x32xf32>
    %259 = arith.addf %254, %258 : vector<4x8x32xf32>
    %c0_166 = arith.constant 0 : index
    %c20 = arith.constant 20 : index
    %260 = memref.load %arg4[%c0_166, %c20] : memref<4x27xf32, #tpu.memory_space<smem>>
    %261 = vector.extract_strided_slice %53 {offsets = [2, 0, 2], sizes = [4, 8, 32], strides = [1, 1, 1]} : vector<6x10x34xf32> to vector<4x8x32xf32>
    %262 = vector.broadcast %260 : f32 to vector<4x8x32xf32>
    %263 = arith.mulf %262, %261 : vector<4x8x32xf32>
    %264 = arith.addf %259, %263 : vector<4x8x32xf32>
    %c0_167 = arith.constant 0 : index
    %c21 = arith.constant 21 : index
    %265 = memref.load %arg4[%c0_167, %c21] : memref<4x27xf32, #tpu.memory_space<smem>>
    %266 = vector.extract_strided_slice %53 {offsets = [2, 1, 0], sizes = [4, 8, 32], strides = [1, 1, 1]} : vector<6x10x34xf32> to vector<4x8x32xf32>
    %267 = vector.broadcast %265 : f32 to vector<4x8x32xf32>
    %268 = arith.mulf %267, %266 : vector<4x8x32xf32>
    %269 = arith.addf %264, %268 : vector<4x8x32xf32>
    %c0_168 = arith.constant 0 : index
    %c22 = arith.constant 22 : index
    %270 = memref.load %arg4[%c0_168, %c22] : memref<4x27xf32, #tpu.memory_space<smem>>
    %271 = vector.extract_strided_slice %53 {offsets = [2, 1, 1], sizes = [4, 8, 32], strides = [1, 1, 1]} : vector<6x10x34xf32> to vector<4x8x32xf32>
    %272 = vector.broadcast %270 : f32 to vector<4x8x32xf32>
    %273 = arith.mulf %272, %271 : vector<4x8x32xf32>
    %274 = arith.addf %269, %273 : vector<4x8x32xf32>
    %c0_169 = arith.constant 0 : index
    %c23 = arith.constant 23 : index
    %275 = memref.load %arg4[%c0_169, %c23] : memref<4x27xf32, #tpu.memory_space<smem>>
    %276 = vector.extract_strided_slice %53 {offsets = [2, 1, 2], sizes = [4, 8, 32], strides = [1, 1, 1]} : vector<6x10x34xf32> to vector<4x8x32xf32>
    %277 = vector.broadcast %275 : f32 to vector<4x8x32xf32>
    %278 = arith.mulf %277, %276 : vector<4x8x32xf32>
    %279 = arith.addf %274, %278 : vector<4x8x32xf32>
    %c0_170 = arith.constant 0 : index
    %c24 = arith.constant 24 : index
    %280 = memref.load %arg4[%c0_170, %c24] : memref<4x27xf32, #tpu.memory_space<smem>>
    %281 = vector.extract_strided_slice %53 {offsets = [2, 2, 0], sizes = [4, 8, 32], strides = [1, 1, 1]} : vector<6x10x34xf32> to vector<4x8x32xf32>
    %282 = vector.broadcast %280 : f32 to vector<4x8x32xf32>
    %283 = arith.mulf %282, %281 : vector<4x8x32xf32>
    %284 = arith.addf %279, %283 : vector<4x8x32xf32>
    %c0_171 = arith.constant 0 : index
    %c25 = arith.constant 25 : index
    %285 = memref.load %arg4[%c0_171, %c25] : memref<4x27xf32, #tpu.memory_space<smem>>
    %286 = vector.extract_strided_slice %53 {offsets = [2, 2, 1], sizes = [4, 8, 32], strides = [1, 1, 1]} : vector<6x10x34xf32> to vector<4x8x32xf32>
    %287 = vector.broadcast %285 : f32 to vector<4x8x32xf32>
    %288 = arith.mulf %287, %286 : vector<4x8x32xf32>
    %289 = arith.addf %284, %288 : vector<4x8x32xf32>
    %c0_172 = arith.constant 0 : index
    %c26 = arith.constant 26 : index
    %290 = memref.load %arg4[%c0_172, %c26] : memref<4x27xf32, #tpu.memory_space<smem>>
    %291 = vector.extract_strided_slice %53 {offsets = [2, 2, 2], sizes = [4, 8, 32], strides = [1, 1, 1]} : vector<6x10x34xf32> to vector<4x8x32xf32>
    %292 = vector.broadcast %290 : f32 to vector<4x8x32xf32>
    %293 = arith.mulf %292, %291 : vector<4x8x32xf32>
    %294 = arith.addf %289, %293 : vector<4x8x32xf32>
    %c0_173 = arith.constant 0 : index
    %295 = memref.load %arg5[%c0_173] : memref<4xf32, #tpu.memory_space<smem>>
    %296 = vector.broadcast %295 : f32 to vector<4x8x32xf32>
    %297 = arith.addf %294, %296 : vector<4x8x32xf32>
    %cst_174 = arith.constant 0.000000e+00 : f32
    %298 = vector.broadcast %cst_174 : f32 to vector<4x8x32xf32>
    %299 = arith.maximumf %297, %298 : vector<4x8x32xf32>
    %c0_175 = arith.constant 0 : index
    %c4_176 = arith.constant 4 : index
    %c0_177 = arith.constant 0 : index
    %c0_178 = arith.constant 0 : index
    %c0_179 = arith.constant 0 : index
    %300 = vector.load %arg6[%c0_175, %c4_176, %c0_177, %c0_178, %c0_179] : memref<1x8x4x8x32xf32, #tpu.memory_space<vmem>>, vector<1x1x4x8x32xf32>
    %301 = vector.shape_cast %300 : vector<1x1x4x8x32xf32> to vector<4x8x32xf32>
    %302 = vector.shape_cast %299 : vector<4x8x32xf32> to vector<1x1x4x8x32xf32>
    tpu.vector_store %arg6[%c0_175, %c4_176, %c0_177, %c0_178, %c0_179], %302 {strides = array<i32>} : memref<1x8x4x8x32xf32, #tpu.memory_space<vmem>>, vector<1x1x4x8x32xf32>,
    %cst_180 = arith.constant 0.000000e+00 : f32
    %303 = vector.broadcast %cst_180 : f32 to vector<4x8x32xf32>
    %c1_181 = arith.constant 1 : index
    %c0_182 = arith.constant 0 : index
    %304 = memref.load %arg4[%c1_181, %c0_182] : memref<4x27xf32, #tpu.memory_space<smem>>
    %305 = vector.extract_strided_slice %88 {offsets = [0, 0, 0], sizes = [4, 8, 32], strides = [1, 1, 1]} : vector<6x10x34xf32> to vector<4x8x32xf32>
    %306 = vector.broadcast %304 : f32 to vector<4x8x32xf32>
    %307 = arith.mulf %306, %305 : vector<4x8x32xf32>
    %308 = arith.addf %303, %307 : vector<4x8x32xf32>
    %c1_183 = arith.constant 1 : index
    %c1_184 = arith.constant 1 : index
    %309 = memref.load %arg4[%c1_183, %c1_184] : memref<4x27xf32, #tpu.memory_space<smem>>
    %310 = vector.extract_strided_slice %88 {offsets = [0, 0, 1], sizes = [4, 8, 32], strides = [1, 1, 1]} : vector<6x10x34xf32> to vector<4x8x32xf32>
    %311 = vector.broadcast %309 : f32 to vector<4x8x32xf32>
    %312 = arith.mulf %311, %310 : vector<4x8x32xf32>
    %313 = arith.addf %308, %312 : vector<4x8x32xf32>
    %c1_185 = arith.constant 1 : index
    %c2_186 = arith.constant 2 : index
    %314 = memref.load %arg4[%c1_185, %c2_186] : memref<4x27xf32, #tpu.memory_space<smem>>
    %315 = vector.extract_strided_slice %88 {offsets = [0, 0, 2], sizes = [4, 8, 32], strides = [1, 1, 1]} : vector<6x10x34xf32> to vector<4x8x32xf32>
    %316 = vector.broadcast %314 : f32 to vector<4x8x32xf32>
    %317 = arith.mulf %316, %315 : vector<4x8x32xf32>
    %318 = arith.addf %313, %317 : vector<4x8x32xf32>
    %c1_187 = arith.constant 1 : index
    %c3_188 = arith.constant 3 : index
    %319 = memref.load %arg4[%c1_187, %c3_188] : memref<4x27xf32, #tpu.memory_space<smem>>
    %320 = vector.extract_strided_slice %88 {offsets = [0, 1, 0], sizes = [4, 8, 32], strides = [1, 1, 1]} : vector<6x10x34xf32> to vector<4x8x32xf32>
    %321 = vector.broadcast %319 : f32 to vector<4x8x32xf32>
    %322 = arith.mulf %321, %320 : vector<4x8x32xf32>
    %323 = arith.addf %318, %322 : vector<4x8x32xf32>
    %c1_189 = arith.constant 1 : index
    %c4_190 = arith.constant 4 : index
    %324 = memref.load %arg4[%c1_189, %c4_190] : memref<4x27xf32, #tpu.memory_space<smem>>
    %325 = vector.extract_strided_slice %88 {offsets = [0, 1, 1], sizes = [4, 8, 32], strides = [1, 1, 1]} : vector<6x10x34xf32> to vector<4x8x32xf32>
    %326 = vector.broadcast %324 : f32 to vector<4x8x32xf32>
    %327 = arith.mulf %326, %325 : vector<4x8x32xf32>
    %328 = arith.addf %323, %327 : vector<4x8x32xf32>
    %c1_191 = arith.constant 1 : index
    %c5_192 = arith.constant 5 : index
    %329 = memref.load %arg4[%c1_191, %c5_192] : memref<4x27xf32, #tpu.memory_space<smem>>
    %330 = vector.extract_strided_slice %88 {offsets = [0, 1, 2], sizes = [4, 8, 32], strides = [1, 1, 1]} : vector<6x10x34xf32> to vector<4x8x32xf32>
    %331 = vector.broadcast %329 : f32 to vector<4x8x32xf32>
    %332 = arith.mulf %331, %330 : vector<4x8x32xf32>
    %333 = arith.addf %328, %332 : vector<4x8x32xf32>
    %c1_193 = arith.constant 1 : index
    %c6_194 = arith.constant 6 : index
    %334 = memref.load %arg4[%c1_193, %c6_194] : memref<4x27xf32, #tpu.memory_space<smem>>
    %335 = vector.extract_strided_slice %88 {offsets = [0, 2, 0], sizes = [4, 8, 32], strides = [1, 1, 1]} : vector<6x10x34xf32> to vector<4x8x32xf32>
    %336 = vector.broadcast %334 : f32 to vector<4x8x32xf32>
    %337 = arith.mulf %336, %335 : vector<4x8x32xf32>
    %338 = arith.addf %333, %337 : vector<4x8x32xf32>
    %c1_195 = arith.constant 1 : index
    %c7_196 = arith.constant 7 : index
    %339 = memref.load %arg4[%c1_195, %c7_196] : memref<4x27xf32, #tpu.memory_space<smem>>
    %340 = vector.extract_strided_slice %88 {offsets = [0, 2, 1], sizes = [4, 8, 32], strides = [1, 1, 1]} : vector<6x10x34xf32> to vector<4x8x32xf32>
    %341 = vector.broadcast %339 : f32 to vector<4x8x32xf32>
    %342 = arith.mulf %341, %340 : vector<4x8x32xf32>
    %343 = arith.addf %338, %342 : vector<4x8x32xf32>
    %c1_197 = arith.constant 1 : index
    %c8_198 = arith.constant 8 : index
    %344 = memref.load %arg4[%c1_197, %c8_198] : memref<4x27xf32, #tpu.memory_space<smem>>
    %345 = vector.extract_strided_slice %88 {offsets = [0, 2, 2], sizes = [4, 8, 32], strides = [1, 1, 1]} : vector<6x10x34xf32> to vector<4x8x32xf32>
    %346 = vector.broadcast %344 : f32 to vector<4x8x32xf32>
    %347 = arith.mulf %346, %345 : vector<4x8x32xf32>
    %348 = arith.addf %343, %347 : vector<4x8x32xf32>
    %c1_199 = arith.constant 1 : index
    %c9_200 = arith.constant 9 : index
    %349 = memref.load %arg4[%c1_199, %c9_200] : memref<4x27xf32, #tpu.memory_space<smem>>
    %350 = vector.extract_strided_slice %88 {offsets = [1, 0, 0], sizes = [4, 8, 32], strides = [1, 1, 1]} : vector<6x10x34xf32> to vector<4x8x32xf32>
    %351 = vector.broadcast %349 : f32 to vector<4x8x32xf32>
    %352 = arith.mulf %351, %350 : vector<4x8x32xf32>
    %353 = arith.addf %348, %352 : vector<4x8x32xf32>
    %c1_201 = arith.constant 1 : index
    %c10_202 = arith.constant 10 : index
    %354 = memref.load %arg4[%c1_201, %c10_202] : memref<4x27xf32, #tpu.memory_space<smem>>
    %355 = vector.extract_strided_slice %88 {offsets = [1, 0, 1], sizes = [4, 8, 32], strides = [1, 1, 1]} : vector<6x10x34xf32> to vector<4x8x32xf32>
    %356 = vector.broadcast %354 : f32 to vector<4x8x32xf32>
    %357 = arith.mulf %356, %355 : vector<4x8x32xf32>
    %358 = arith.addf %353, %357 : vector<4x8x32xf32>
    %c1_203 = arith.constant 1 : index
    %c11_204 = arith.constant 11 : index
    %359 = memref.load %arg4[%c1_203, %c11_204] : memref<4x27xf32, #tpu.memory_space<smem>>
    %360 = vector.extract_strided_slice %88 {offsets = [1, 0, 2], sizes = [4, 8, 32], strides = [1, 1, 1]} : vector<6x10x34xf32> to vector<4x8x32xf32>
    %361 = vector.broadcast %359 : f32 to vector<4x8x32xf32>
    %362 = arith.mulf %361, %360 : vector<4x8x32xf32>
    %363 = arith.addf %358, %362 : vector<4x8x32xf32>
    %c1_205 = arith.constant 1 : index
    %c12_206 = arith.constant 12 : index
    %364 = memref.load %arg4[%c1_205, %c12_206] : memref<4x27xf32, #tpu.memory_space<smem>>
    %365 = vector.extract_strided_slice %88 {offsets = [1, 1, 0], sizes = [4, 8, 32], strides = [1, 1, 1]} : vector<6x10x34xf32> to vector<4x8x32xf32>
    %366 = vector.broadcast %364 : f32 to vector<4x8x32xf32>
    %367 = arith.mulf %366, %365 : vector<4x8x32xf32>
    %368 = arith.addf %363, %367 : vector<4x8x32xf32>
    %c1_207 = arith.constant 1 : index
    %c13_208 = arith.constant 13 : index
    %369 = memref.load %arg4[%c1_207, %c13_208] : memref<4x27xf32, #tpu.memory_space<smem>>
    %370 = vector.extract_strided_slice %88 {offsets = [1, 1, 1], sizes = [4, 8, 32], strides = [1, 1, 1]} : vector<6x10x34xf32> to vector<4x8x32xf32>
    %371 = vector.broadcast %369 : f32 to vector<4x8x32xf32>
    %372 = arith.mulf %371, %370 : vector<4x8x32xf32>
    %373 = arith.addf %368, %372 : vector<4x8x32xf32>
    %c1_209 = arith.constant 1 : index
    %c14_210 = arith.constant 14 : index
    %374 = memref.load %arg4[%c1_209, %c14_210] : memref<4x27xf32, #tpu.memory_space<smem>>
    %375 = vector.extract_strided_slice %88 {offsets = [1, 1, 2], sizes = [4, 8, 32], strides = [1, 1, 1]} : vector<6x10x34xf32> to vector<4x8x32xf32>
    %376 = vector.broadcast %374 : f32 to vector<4x8x32xf32>
    %377 = arith.mulf %376, %375 : vector<4x8x32xf32>
    %378 = arith.addf %373, %377 : vector<4x8x32xf32>
    %c1_211 = arith.constant 1 : index
    %c15_212 = arith.constant 15 : index
    %379 = memref.load %arg4[%c1_211, %c15_212] : memref<4x27xf32, #tpu.memory_space<smem>>
    %380 = vector.extract_strided_slice %88 {offsets = [1, 2, 0], sizes = [4, 8, 32], strides = [1, 1, 1]} : vector<6x10x34xf32> to vector<4x8x32xf32>
    %381 = vector.broadcast %379 : f32 to vector<4x8x32xf32>
    %382 = arith.mulf %381, %380 : vector<4x8x32xf32>
    %383 = arith.addf %378, %382 : vector<4x8x32xf32>
    %c1_213 = arith.constant 1 : index
    %c16_214 = arith.constant 16 : index
    %384 = memref.load %arg4[%c1_213, %c16_214] : memref<4x27xf32, #tpu.memory_space<smem>>
    %385 = vector.extract_strided_slice %88 {offsets = [1, 2, 1], sizes = [4, 8, 32], strides = [1, 1, 1]} : vector<6x10x34xf32> to vector<4x8x32xf32>
    %386 = vector.broadcast %384 : f32 to vector<4x8x32xf32>
    %387 = arith.mulf %386, %385 : vector<4x8x32xf32>
    %388 = arith.addf %383, %387 : vector<4x8x32xf32>
    %c1_215 = arith.constant 1 : index
    %c17_216 = arith.constant 17 : index
    %389 = memref.load %arg4[%c1_215, %c17_216] : memref<4x27xf32, #tpu.memory_space<smem>>
    %390 = vector.extract_strided_slice %88 {offsets = [1, 2, 2], sizes = [4, 8, 32], strides = [1, 1, 1]} : vector<6x10x34xf32> to vector<4x8x32xf32>
    %391 = vector.broadcast %389 : f32 to vector<4x8x32xf32>
    %392 = arith.mulf %391, %390 : vector<4x8x32xf32>
    %393 = arith.addf %388, %392 : vector<4x8x32xf32>
    %c1_217 = arith.constant 1 : index
    %c18_218 = arith.constant 18 : index
    %394 = memref.load %arg4[%c1_217, %c18_218] : memref<4x27xf32, #tpu.memory_space<smem>>
    %395 = vector.extract_strided_slice %88 {offsets = [2, 0, 0], sizes = [4, 8, 32], strides = [1, 1, 1]} : vector<6x10x34xf32> to vector<4x8x32xf32>
    %396 = vector.broadcast %394 : f32 to vector<4x8x32xf32>
    %397 = arith.mulf %396, %395 : vector<4x8x32xf32>
    %398 = arith.addf %393, %397 : vector<4x8x32xf32>
    %c1_219 = arith.constant 1 : index
    %c19_220 = arith.constant 19 : index
    %399 = memref.load %arg4[%c1_219, %c19_220] : memref<4x27xf32, #tpu.memory_space<smem>>
    %400 = vector.extract_strided_slice %88 {offsets = [2, 0, 1], sizes = [4, 8, 32], strides = [1, 1, 1]} : vector<6x10x34xf32> to vector<4x8x32xf32>
    %401 = vector.broadcast %399 : f32 to vector<4x8x32xf32>
    %402 = arith.mulf %401, %400 : vector<4x8x32xf32>
    %403 = arith.addf %398, %402 : vector<4x8x32xf32>
    %c1_221 = arith.constant 1 : index
    %c20_222 = arith.constant 20 : index
    %404 = memref.load %arg4[%c1_221, %c20_222] : memref<4x27xf32, #tpu.memory_space<smem>>
    %405 = vector.extract_strided_slice %88 {offsets = [2, 0, 2], sizes = [4, 8, 32], strides = [1, 1, 1]} : vector<6x10x34xf32> to vector<4x8x32xf32>
    %406 = vector.broadcast %404 : f32 to vector<4x8x32xf32>
    %407 = arith.mulf %406, %405 : vector<4x8x32xf32>
    %408 = arith.addf %403, %407 : vector<4x8x32xf32>
    %c1_223 = arith.constant 1 : index
    %c21_224 = arith.constant 21 : index
    %409 = memref.load %arg4[%c1_223, %c21_224] : memref<4x27xf32, #tpu.memory_space<smem>>
    %410 = vector.extract_strided_slice %88 {offsets = [2, 1, 0], sizes = [4, 8, 32], strides = [1, 1, 1]} : vector<6x10x34xf32> to vector<4x8x32xf32>
    %411 = vector.broadcast %409 : f32 to vector<4x8x32xf32>
    %412 = arith.mulf %411, %410 : vector<4x8x32xf32>
    %413 = arith.addf %408, %412 : vector<4x8x32xf32>
    %c1_225 = arith.constant 1 : index
    %c22_226 = arith.constant 22 : index
    %414 = memref.load %arg4[%c1_225, %c22_226] : memref<4x27xf32, #tpu.memory_space<smem>>
    %415 = vector.extract_strided_slice %88 {offsets = [2, 1, 1], sizes = [4, 8, 32], strides = [1, 1, 1]} : vector<6x10x34xf32> to vector<4x8x32xf32>
    %416 = vector.broadcast %414 : f32 to vector<4x8x32xf32>
    %417 = arith.mulf %416, %415 : vector<4x8x32xf32>
    %418 = arith.addf %413, %417 : vector<4x8x32xf32>
    %c1_227 = arith.constant 1 : index
    %c23_228 = arith.constant 23 : index
    %419 = memref.load %arg4[%c1_227, %c23_228] : memref<4x27xf32, #tpu.memory_space<smem>>
    %420 = vector.extract_strided_slice %88 {offsets = [2, 1, 2], sizes = [4, 8, 32], strides = [1, 1, 1]} : vector<6x10x34xf32> to vector<4x8x32xf32>
    %421 = vector.broadcast %419 : f32 to vector<4x8x32xf32>
    %422 = arith.mulf %421, %420 : vector<4x8x32xf32>
    %423 = arith.addf %418, %422 : vector<4x8x32xf32>
    %c1_229 = arith.constant 1 : index
    %c24_230 = arith.constant 24 : index
    %424 = memref.load %arg4[%c1_229, %c24_230] : memref<4x27xf32, #tpu.memory_space<smem>>
    %425 = vector.extract_strided_slice %88 {offsets = [2, 2, 0], sizes = [4, 8, 32], strides = [1, 1, 1]} : vector<6x10x34xf32> to vector<4x8x32xf32>
    %426 = vector.broadcast %424 : f32 to vector<4x8x32xf32>
    %427 = arith.mulf %426, %425 : vector<4x8x32xf32>
    %428 = arith.addf %423, %427 : vector<4x8x32xf32>
    %c1_231 = arith.constant 1 : index
    %c25_232 = arith.constant 25 : index
    %429 = memref.load %arg4[%c1_231, %c25_232] : memref<4x27xf32, #tpu.memory_space<smem>>
    %430 = vector.extract_strided_slice %88 {offsets = [2, 2, 1], sizes = [4, 8, 32], strides = [1, 1, 1]} : vector<6x10x34xf32> to vector<4x8x32xf32>
    %431 = vector.broadcast %429 : f32 to vector<4x8x32xf32>
    %432 = arith.mulf %431, %430 : vector<4x8x32xf32>
    %433 = arith.addf %428, %432 : vector<4x8x32xf32>
    %c1_233 = arith.constant 1 : index
    %c26_234 = arith.constant 26 : index
    %434 = memref.load %arg4[%c1_233, %c26_234] : memref<4x27xf32, #tpu.memory_space<smem>>
    %435 = vector.extract_strided_slice %88 {offsets = [2, 2, 2], sizes = [4, 8, 32], strides = [1, 1, 1]} : vector<6x10x34xf32> to vector<4x8x32xf32>
    %436 = vector.broadcast %434 : f32 to vector<4x8x32xf32>
    %437 = arith.mulf %436, %435 : vector<4x8x32xf32>
    %438 = arith.addf %433, %437 : vector<4x8x32xf32>
    %c1_235 = arith.constant 1 : index
    %439 = memref.load %arg5[%c1_235] : memref<4xf32, #tpu.memory_space<smem>>
    %440 = vector.broadcast %439 : f32 to vector<4x8x32xf32>
    %441 = arith.addf %438, %440 : vector<4x8x32xf32>
    %cst_236 = arith.constant 0.000000e+00 : f32
    %442 = vector.broadcast %cst_236 : f32 to vector<4x8x32xf32>
    %443 = arith.maximumf %441, %442 : vector<4x8x32xf32>
    %c0_237 = arith.constant 0 : index
    %c5_238 = arith.constant 5 : index
    %c0_239 = arith.constant 0 : index
    %c0_240 = arith.constant 0 : index
    %c0_241 = arith.constant 0 : index
    %444 = vector.load %arg6[%c0_237, %c5_238, %c0_239, %c0_240, %c0_241] : memref<1x8x4x8x32xf32, #tpu.memory_space<vmem>>, vector<1x1x4x8x32xf32>
    %445 = vector.shape_cast %444 : vector<1x1x4x8x32xf32> to vector<4x8x32xf32>
    %446 = vector.shape_cast %443 : vector<4x8x32xf32> to vector<1x1x4x8x32xf32>
    tpu.vector_store %arg6[%c0_237, %c5_238, %c0_239, %c0_240, %c0_241], %446 {strides = array<i32>} : memref<1x8x4x8x32xf32, #tpu.memory_space<vmem>>, vector<1x1x4x8x32xf32>,
    %cst_242 = arith.constant 0.000000e+00 : f32
    %447 = vector.broadcast %cst_242 : f32 to vector<4x8x32xf32>
    %c2_243 = arith.constant 2 : index
    %c0_244 = arith.constant 0 : index
    %448 = memref.load %arg4[%c2_243, %c0_244] : memref<4x27xf32, #tpu.memory_space<smem>>
    %449 = vector.extract_strided_slice %123 {offsets = [0, 0, 0], sizes = [4, 8, 32], strides = [1, 1, 1]} : vector<6x10x34xf32> to vector<4x8x32xf32>
    %450 = vector.broadcast %448 : f32 to vector<4x8x32xf32>
    %451 = arith.mulf %450, %449 : vector<4x8x32xf32>
    %452 = arith.addf %447, %451 : vector<4x8x32xf32>
    %c2_245 = arith.constant 2 : index
    %c1_246 = arith.constant 1 : index
    %453 = memref.load %arg4[%c2_245, %c1_246] : memref<4x27xf32, #tpu.memory_space<smem>>
    %454 = vector.extract_strided_slice %123 {offsets = [0, 0, 1], sizes = [4, 8, 32], strides = [1, 1, 1]} : vector<6x10x34xf32> to vector<4x8x32xf32>
    %455 = vector.broadcast %453 : f32 to vector<4x8x32xf32>
    %456 = arith.mulf %455, %454 : vector<4x8x32xf32>
    %457 = arith.addf %452, %456 : vector<4x8x32xf32>
    %c2_247 = arith.constant 2 : index
    %c2_248 = arith.constant 2 : index
    %458 = memref.load %arg4[%c2_247, %c2_248] : memref<4x27xf32, #tpu.memory_space<smem>>
    %459 = vector.extract_strided_slice %123 {offsets = [0, 0, 2], sizes = [4, 8, 32], strides = [1, 1, 1]} : vector<6x10x34xf32> to vector<4x8x32xf32>
    %460 = vector.broadcast %458 : f32 to vector<4x8x32xf32>
    %461 = arith.mulf %460, %459 : vector<4x8x32xf32>
    %462 = arith.addf %457, %461 : vector<4x8x32xf32>
    %c2_249 = arith.constant 2 : index
    %c3_250 = arith.constant 3 : index
    %463 = memref.load %arg4[%c2_249, %c3_250] : memref<4x27xf32, #tpu.memory_space<smem>>
    %464 = vector.extract_strided_slice %123 {offsets = [0, 1, 0], sizes = [4, 8, 32], strides = [1, 1, 1]} : vector<6x10x34xf32> to vector<4x8x32xf32>
    %465 = vector.broadcast %463 : f32 to vector<4x8x32xf32>
    %466 = arith.mulf %465, %464 : vector<4x8x32xf32>
    %467 = arith.addf %462, %466 : vector<4x8x32xf32>
    %c2_251 = arith.constant 2 : index
    %c4_252 = arith.constant 4 : index
    %468 = memref.load %arg4[%c2_251, %c4_252] : memref<4x27xf32, #tpu.memory_space<smem>>
    %469 = vector.extract_strided_slice %123 {offsets = [0, 1, 1], sizes = [4, 8, 32], strides = [1, 1, 1]} : vector<6x10x34xf32> to vector<4x8x32xf32>
    %470 = vector.broadcast %468 : f32 to vector<4x8x32xf32>
    %471 = arith.mulf %470, %469 : vector<4x8x32xf32>
    %472 = arith.addf %467, %471 : vector<4x8x32xf32>
    %c2_253 = arith.constant 2 : index
    %c5_254 = arith.constant 5 : index
    %473 = memref.load %arg4[%c2_253, %c5_254] : memref<4x27xf32, #tpu.memory_space<smem>>
    %474 = vector.extract_strided_slice %123 {offsets = [0, 1, 2], sizes = [4, 8, 32], strides = [1, 1, 1]} : vector<6x10x34xf32> to vector<4x8x32xf32>
    %475 = vector.broadcast %473 : f32 to vector<4x8x32xf32>
    %476 = arith.mulf %475, %474 : vector<4x8x32xf32>
    %477 = arith.addf %472, %476 : vector<4x8x32xf32>
    %c2_255 = arith.constant 2 : index
    %c6_256 = arith.constant 6 : index
    %478 = memref.load %arg4[%c2_255, %c6_256] : memref<4x27xf32, #tpu.memory_space<smem>>
    %479 = vector.extract_strided_slice %123 {offsets = [0, 2, 0], sizes = [4, 8, 32], strides = [1, 1, 1]} : vector<6x10x34xf32> to vector<4x8x32xf32>
    %480 = vector.broadcast %478 : f32 to vector<4x8x32xf32>
    %481 = arith.mulf %480, %479 : vector<4x8x32xf32>
    %482 = arith.addf %477, %481 : vector<4x8x32xf32>
    %c2_257 = arith.constant 2 : index
    %c7_258 = arith.constant 7 : index
    %483 = memref.load %arg4[%c2_257, %c7_258] : memref<4x27xf32, #tpu.memory_space<smem>>
    %484 = vector.extract_strided_slice %123 {offsets = [0, 2, 1], sizes = [4, 8, 32], strides = [1, 1, 1]} : vector<6x10x34xf32> to vector<4x8x32xf32>
    %485 = vector.broadcast %483 : f32 to vector<4x8x32xf32>
    %486 = arith.mulf %485, %484 : vector<4x8x32xf32>
    %487 = arith.addf %482, %486 : vector<4x8x32xf32>
    %c2_259 = arith.constant 2 : index
    %c8_260 = arith.constant 8 : index
    %488 = memref.load %arg4[%c2_259, %c8_260] : memref<4x27xf32, #tpu.memory_space<smem>>
    %489 = vector.extract_strided_slice %123 {offsets = [0, 2, 2], sizes = [4, 8, 32], strides = [1, 1, 1]} : vector<6x10x34xf32> to vector<4x8x32xf32>
    %490 = vector.broadcast %488 : f32 to vector<4x8x32xf32>
    %491 = arith.mulf %490, %489 : vector<4x8x32xf32>
    %492 = arith.addf %487, %491 : vector<4x8x32xf32>
    %c2_261 = arith.constant 2 : index
    %c9_262 = arith.constant 9 : index
    %493 = memref.load %arg4[%c2_261, %c9_262] : memref<4x27xf32, #tpu.memory_space<smem>>
    %494 = vector.extract_strided_slice %123 {offsets = [1, 0, 0], sizes = [4, 8, 32], strides = [1, 1, 1]} : vector<6x10x34xf32> to vector<4x8x32xf32>
    %495 = vector.broadcast %493 : f32 to vector<4x8x32xf32>
    %496 = arith.mulf %495, %494 : vector<4x8x32xf32>
    %497 = arith.addf %492, %496 : vector<4x8x32xf32>
    %c2_263 = arith.constant 2 : index
    %c10_264 = arith.constant 10 : index
    %498 = memref.load %arg4[%c2_263, %c10_264] : memref<4x27xf32, #tpu.memory_space<smem>>
    %499 = vector.extract_strided_slice %123 {offsets = [1, 0, 1], sizes = [4, 8, 32], strides = [1, 1, 1]} : vector<6x10x34xf32> to vector<4x8x32xf32>
    %500 = vector.broadcast %498 : f32 to vector<4x8x32xf32>
    %501 = arith.mulf %500, %499 : vector<4x8x32xf32>
    %502 = arith.addf %497, %501 : vector<4x8x32xf32>
    %c2_265 = arith.constant 2 : index
    %c11_266 = arith.constant 11 : index
    %503 = memref.load %arg4[%c2_265, %c11_266] : memref<4x27xf32, #tpu.memory_space<smem>>
    %504 = vector.extract_strided_slice %123 {offsets = [1, 0, 2], sizes = [4, 8, 32], strides = [1, 1, 1]} : vector<6x10x34xf32> to vector<4x8x32xf32>
    %505 = vector.broadcast %503 : f32 to vector<4x8x32xf32>
    %506 = arith.mulf %505, %504 : vector<4x8x32xf32>
    %507 = arith.addf %502, %506 : vector<4x8x32xf32>
    %c2_267 = arith.constant 2 : index
    %c12_268 = arith.constant 12 : index
    %508 = memref.load %arg4[%c2_267, %c12_268] : memref<4x27xf32, #tpu.memory_space<smem>>
    %509 = vector.extract_strided_slice %123 {offsets = [1, 1, 0], sizes = [4, 8, 32], strides = [1, 1, 1]} : vector<6x10x34xf32> to vector<4x8x32xf32>
    %510 = vector.broadcast %508 : f32 to vector<4x8x32xf32>
    %511 = arith.mulf %510, %509 : vector<4x8x32xf32>
    %512 = arith.addf %507, %511 : vector<4x8x32xf32>
    %c2_269 = arith.constant 2 : index
    %c13_270 = arith.constant 13 : index
    %513 = memref.load %arg4[%c2_269, %c13_270] : memref<4x27xf32, #tpu.memory_space<smem>>
    %514 = vector.extract_strided_slice %123 {offsets = [1, 1, 1], sizes = [4, 8, 32], strides = [1, 1, 1]} : vector<6x10x34xf32> to vector<4x8x32xf32>
    %515 = vector.broadcast %513 : f32 to vector<4x8x32xf32>
    %516 = arith.mulf %515, %514 : vector<4x8x32xf32>
    %517 = arith.addf %512, %516 : vector<4x8x32xf32>
    %c2_271 = arith.constant 2 : index
    %c14_272 = arith.constant 14 : index
    %518 = memref.load %arg4[%c2_271, %c14_272] : memref<4x27xf32, #tpu.memory_space<smem>>
    %519 = vector.extract_strided_slice %123 {offsets = [1, 1, 2], sizes = [4, 8, 32], strides = [1, 1, 1]} : vector<6x10x34xf32> to vector<4x8x32xf32>
    %520 = vector.broadcast %518 : f32 to vector<4x8x32xf32>
    %521 = arith.mulf %520, %519 : vector<4x8x32xf32>
    %522 = arith.addf %517, %521 : vector<4x8x32xf32>
    %c2_273 = arith.constant 2 : index
    %c15_274 = arith.constant 15 : index
    %523 = memref.load %arg4[%c2_273, %c15_274] : memref<4x27xf32, #tpu.memory_space<smem>>
    %524 = vector.extract_strided_slice %123 {offsets = [1, 2, 0], sizes = [4, 8, 32], strides = [1, 1, 1]} : vector<6x10x34xf32> to vector<4x8x32xf32>
    %525 = vector.broadcast %523 : f32 to vector<4x8x32xf32>
    %526 = arith.mulf %525, %524 : vector<4x8x32xf32>
    %527 = arith.addf %522, %526 : vector<4x8x32xf32>
    %c2_275 = arith.constant 2 : index
    %c16_276 = arith.constant 16 : index
    %528 = memref.load %arg4[%c2_275, %c16_276] : memref<4x27xf32, #tpu.memory_space<smem>>
    %529 = vector.extract_strided_slice %123 {offsets = [1, 2, 1], sizes = [4, 8, 32], strides = [1, 1, 1]} : vector<6x10x34xf32> to vector<4x8x32xf32>
    %530 = vector.broadcast %528 : f32 to vector<4x8x32xf32>
    %531 = arith.mulf %530, %529 : vector<4x8x32xf32>
    %532 = arith.addf %527, %531 : vector<4x8x32xf32>
    %c2_277 = arith.constant 2 : index
    %c17_278 = arith.constant 17 : index
    %533 = memref.load %arg4[%c2_277, %c17_278] : memref<4x27xf32, #tpu.memory_space<smem>>
    %534 = vector.extract_strided_slice %123 {offsets = [1, 2, 2], sizes = [4, 8, 32], strides = [1, 1, 1]} : vector<6x10x34xf32> to vector<4x8x32xf32>
    %535 = vector.broadcast %533 : f32 to vector<4x8x32xf32>
    %536 = arith.mulf %535, %534 : vector<4x8x32xf32>
    %537 = arith.addf %532, %536 : vector<4x8x32xf32>
    %c2_279 = arith.constant 2 : index
    %c18_280 = arith.constant 18 : index
    %538 = memref.load %arg4[%c2_279, %c18_280] : memref<4x27xf32, #tpu.memory_space<smem>>
    %539 = vector.extract_strided_slice %123 {offsets = [2, 0, 0], sizes = [4, 8, 32], strides = [1, 1, 1]} : vector<6x10x34xf32> to vector<4x8x32xf32>
    %540 = vector.broadcast %538 : f32 to vector<4x8x32xf32>
    %541 = arith.mulf %540, %539 : vector<4x8x32xf32>
    %542 = arith.addf %537, %541 : vector<4x8x32xf32>
    %c2_281 = arith.constant 2 : index
    %c19_282 = arith.constant 19 : index
    %543 = memref.load %arg4[%c2_281, %c19_282] : memref<4x27xf32, #tpu.memory_space<smem>>
    %544 = vector.extract_strided_slice %123 {offsets = [2, 0, 1], sizes = [4, 8, 32], strides = [1, 1, 1]} : vector<6x10x34xf32> to vector<4x8x32xf32>
    %545 = vector.broadcast %543 : f32 to vector<4x8x32xf32>
    %546 = arith.mulf %545, %544 : vector<4x8x32xf32>
    %547 = arith.addf %542, %546 : vector<4x8x32xf32>
    %c2_283 = arith.constant 2 : index
    %c20_284 = arith.constant 20 : index
    %548 = memref.load %arg4[%c2_283, %c20_284] : memref<4x27xf32, #tpu.memory_space<smem>>
    %549 = vector.extract_strided_slice %123 {offsets = [2, 0, 2], sizes = [4, 8, 32], strides = [1, 1, 1]} : vector<6x10x34xf32> to vector<4x8x32xf32>
    %550 = vector.broadcast %548 : f32 to vector<4x8x32xf32>
    %551 = arith.mulf %550, %549 : vector<4x8x32xf32>
    %552 = arith.addf %547, %551 : vector<4x8x32xf32>
    %c2_285 = arith.constant 2 : index
    %c21_286 = arith.constant 21 : index
    %553 = memref.load %arg4[%c2_285, %c21_286] : memref<4x27xf32, #tpu.memory_space<smem>>
    %554 = vector.extract_strided_slice %123 {offsets = [2, 1, 0], sizes = [4, 8, 32], strides = [1, 1, 1]} : vector<6x10x34xf32> to vector<4x8x32xf32>
    %555 = vector.broadcast %553 : f32 to vector<4x8x32xf32>
    %556 = arith.mulf %555, %554 : vector<4x8x32xf32>
    %557 = arith.addf %552, %556 : vector<4x8x32xf32>
    %c2_287 = arith.constant 2 : index
    %c22_288 = arith.constant 22 : index
    %558 = memref.load %arg4[%c2_287, %c22_288] : memref<4x27xf32, #tpu.memory_space<smem>>
    %559 = vector.extract_strided_slice %123 {offsets = [2, 1, 1], sizes = [4, 8, 32], strides = [1, 1, 1]} : vector<6x10x34xf32> to vector<4x8x32xf32>
    %560 = vector.broadcast %558 : f32 to vector<4x8x32xf32>
    %561 = arith.mulf %560, %559 : vector<4x8x32xf32>
    %562 = arith.addf %557, %561 : vector<4x8x32xf32>
    %c2_289 = arith.constant 2 : index
    %c23_290 = arith.constant 23 : index
    %563 = memref.load %arg4[%c2_289, %c23_290] : memref<4x27xf32, #tpu.memory_space<smem>>
    %564 = vector.extract_strided_slice %123 {offsets = [2, 1, 2], sizes = [4, 8, 32], strides = [1, 1, 1]} : vector<6x10x34xf32> to vector<4x8x32xf32>
    %565 = vector.broadcast %563 : f32 to vector<4x8x32xf32>
    %566 = arith.mulf %565, %564 : vector<4x8x32xf32>
    %567 = arith.addf %562, %566 : vector<4x8x32xf32>
    %c2_291 = arith.constant 2 : index
    %c24_292 = arith.constant 24 : index
    %568 = memref.load %arg4[%c2_291, %c24_292] : memref<4x27xf32, #tpu.memory_space<smem>>
    %569 = vector.extract_strided_slice %123 {offsets = [2, 2, 0], sizes = [4, 8, 32], strides = [1, 1, 1]} : vector<6x10x34xf32> to vector<4x8x32xf32>
    %570 = vector.broadcast %568 : f32 to vector<4x8x32xf32>
    %571 = arith.mulf %570, %569 : vector<4x8x32xf32>
    %572 = arith.addf %567, %571 : vector<4x8x32xf32>
    %c2_293 = arith.constant 2 : index
    %c25_294 = arith.constant 25 : index
    %573 = memref.load %arg4[%c2_293, %c25_294] : memref<4x27xf32, #tpu.memory_space<smem>>
    %574 = vector.extract_strided_slice %123 {offsets = [2, 2, 1], sizes = [4, 8, 32], strides = [1, 1, 1]} : vector<6x10x34xf32> to vector<4x8x32xf32>
    %575 = vector.broadcast %573 : f32 to vector<4x8x32xf32>
    %576 = arith.mulf %575, %574 : vector<4x8x32xf32>
    %577 = arith.addf %572, %576 : vector<4x8x32xf32>
    %c2_295 = arith.constant 2 : index
    %c26_296 = arith.constant 26 : index
    %578 = memref.load %arg4[%c2_295, %c26_296] : memref<4x27xf32, #tpu.memory_space<smem>>
    %579 = vector.extract_strided_slice %123 {offsets = [2, 2, 2], sizes = [4, 8, 32], strides = [1, 1, 1]} : vector<6x10x34xf32> to vector<4x8x32xf32>
    %580 = vector.broadcast %578 : f32 to vector<4x8x32xf32>
    %581 = arith.mulf %580, %579 : vector<4x8x32xf32>
    %582 = arith.addf %577, %581 : vector<4x8x32xf32>
    %c2_297 = arith.constant 2 : index
    %583 = memref.load %arg5[%c2_297] : memref<4xf32, #tpu.memory_space<smem>>
    %584 = vector.broadcast %583 : f32 to vector<4x8x32xf32>
    %585 = arith.addf %582, %584 : vector<4x8x32xf32>
    %cst_298 = arith.constant 0.000000e+00 : f32
    %586 = vector.broadcast %cst_298 : f32 to vector<4x8x32xf32>
    %587 = arith.maximumf %585, %586 : vector<4x8x32xf32>
    %c0_299 = arith.constant 0 : index
    %c6_300 = arith.constant 6 : index
    %c0_301 = arith.constant 0 : index
    %c0_302 = arith.constant 0 : index
    %c0_303 = arith.constant 0 : index
    %588 = vector.load %arg6[%c0_299, %c6_300, %c0_301, %c0_302, %c0_303] : memref<1x8x4x8x32xf32, #tpu.memory_space<vmem>>, vector<1x1x4x8x32xf32>
    %589 = vector.shape_cast %588 : vector<1x1x4x8x32xf32> to vector<4x8x32xf32>
    %590 = vector.shape_cast %587 : vector<4x8x32xf32> to vector<1x1x4x8x32xf32>
    tpu.vector_store %arg6[%c0_299, %c6_300, %c0_301, %c0_302, %c0_303], %590 {strides = array<i32>} : memref<1x8x4x8x32xf32, #tpu.memory_space<vmem>>, vector<1x1x4x8x32xf32>,
    %cst_304 = arith.constant 0.000000e+00 : f32
    %591 = vector.broadcast %cst_304 : f32 to vector<4x8x32xf32>
    %c3_305 = arith.constant 3 : index
    %c0_306 = arith.constant 0 : index
    %592 = memref.load %arg4[%c3_305, %c0_306] : memref<4x27xf32, #tpu.memory_space<smem>>
    %593 = vector.extract_strided_slice %158 {offsets = [0, 0, 0], sizes = [4, 8, 32], strides = [1, 1, 1]} : vector<6x10x34xf32> to vector<4x8x32xf32>
    %594 = vector.broadcast %592 : f32 to vector<4x8x32xf32>
    %595 = arith.mulf %594, %593 : vector<4x8x32xf32>
    %596 = arith.addf %591, %595 : vector<4x8x32xf32>
    %c3_307 = arith.constant 3 : index
    %c1_308 = arith.constant 1 : index
    %597 = memref.load %arg4[%c3_307, %c1_308] : memref<4x27xf32, #tpu.memory_space<smem>>
    %598 = vector.extract_strided_slice %158 {offsets = [0, 0, 1], sizes = [4, 8, 32], strides = [1, 1, 1]} : vector<6x10x34xf32> to vector<4x8x32xf32>
    %599 = vector.broadcast %597 : f32 to vector<4x8x32xf32>
    %600 = arith.mulf %599, %598 : vector<4x8x32xf32>
    %601 = arith.addf %596, %600 : vector<4x8x32xf32>
    %c3_309 = arith.constant 3 : index
    %c2_310 = arith.constant 2 : index
    %602 = memref.load %arg4[%c3_309, %c2_310] : memref<4x27xf32, #tpu.memory_space<smem>>
    %603 = vector.extract_strided_slice %158 {offsets = [0, 0, 2], sizes = [4, 8, 32], strides = [1, 1, 1]} : vector<6x10x34xf32> to vector<4x8x32xf32>
    %604 = vector.broadcast %602 : f32 to vector<4x8x32xf32>
    %605 = arith.mulf %604, %603 : vector<4x8x32xf32>
    %606 = arith.addf %601, %605 : vector<4x8x32xf32>
    %c3_311 = arith.constant 3 : index
    %c3_312 = arith.constant 3 : index
    %607 = memref.load %arg4[%c3_311, %c3_312] : memref<4x27xf32, #tpu.memory_space<smem>>
    %608 = vector.extract_strided_slice %158 {offsets = [0, 1, 0], sizes = [4, 8, 32], strides = [1, 1, 1]} : vector<6x10x34xf32> to vector<4x8x32xf32>
    %609 = vector.broadcast %607 : f32 to vector<4x8x32xf32>
    %610 = arith.mulf %609, %608 : vector<4x8x32xf32>
    %611 = arith.addf %606, %610 : vector<4x8x32xf32>
    %c3_313 = arith.constant 3 : index
    %c4_314 = arith.constant 4 : index
    %612 = memref.load %arg4[%c3_313, %c4_314] : memref<4x27xf32, #tpu.memory_space<smem>>
    %613 = vector.extract_strided_slice %158 {offsets = [0, 1, 1], sizes = [4, 8, 32], strides = [1, 1, 1]} : vector<6x10x34xf32> to vector<4x8x32xf32>
    %614 = vector.broadcast %612 : f32 to vector<4x8x32xf32>
    %615 = arith.mulf %614, %613 : vector<4x8x32xf32>
    %616 = arith.addf %611, %615 : vector<4x8x32xf32>
    %c3_315 = arith.constant 3 : index
    %c5_316 = arith.constant 5 : index
    %617 = memref.load %arg4[%c3_315, %c5_316] : memref<4x27xf32, #tpu.memory_space<smem>>
    %618 = vector.extract_strided_slice %158 {offsets = [0, 1, 2], sizes = [4, 8, 32], strides = [1, 1, 1]} : vector<6x10x34xf32> to vector<4x8x32xf32>
    %619 = vector.broadcast %617 : f32 to vector<4x8x32xf32>
    %620 = arith.mulf %619, %618 : vector<4x8x32xf32>
    %621 = arith.addf %616, %620 : vector<4x8x32xf32>
    %c3_317 = arith.constant 3 : index
    %c6_318 = arith.constant 6 : index
    %622 = memref.load %arg4[%c3_317, %c6_318] : memref<4x27xf32, #tpu.memory_space<smem>>
    %623 = vector.extract_strided_slice %158 {offsets = [0, 2, 0], sizes = [4, 8, 32], strides = [1, 1, 1]} : vector<6x10x34xf32> to vector<4x8x32xf32>
    %624 = vector.broadcast %622 : f32 to vector<4x8x32xf32>
    %625 = arith.mulf %624, %623 : vector<4x8x32xf32>
    %626 = arith.addf %621, %625 : vector<4x8x32xf32>
    %c3_319 = arith.constant 3 : index
    %c7_320 = arith.constant 7 : index
    %627 = memref.load %arg4[%c3_319, %c7_320] : memref<4x27xf32, #tpu.memory_space<smem>>
    %628 = vector.extract_strided_slice %158 {offsets = [0, 2, 1], sizes = [4, 8, 32], strides = [1, 1, 1]} : vector<6x10x34xf32> to vector<4x8x32xf32>
    %629 = vector.broadcast %627 : f32 to vector<4x8x32xf32>
    %630 = arith.mulf %629, %628 : vector<4x8x32xf32>
    %631 = arith.addf %626, %630 : vector<4x8x32xf32>
    %c3_321 = arith.constant 3 : index
    %c8_322 = arith.constant 8 : index
    %632 = memref.load %arg4[%c3_321, %c8_322] : memref<4x27xf32, #tpu.memory_space<smem>>
    %633 = vector.extract_strided_slice %158 {offsets = [0, 2, 2], sizes = [4, 8, 32], strides = [1, 1, 1]} : vector<6x10x34xf32> to vector<4x8x32xf32>
    %634 = vector.broadcast %632 : f32 to vector<4x8x32xf32>
    %635 = arith.mulf %634, %633 : vector<4x8x32xf32>
    %636 = arith.addf %631, %635 : vector<4x8x32xf32>
    %c3_323 = arith.constant 3 : index
    %c9_324 = arith.constant 9 : index
    %637 = memref.load %arg4[%c3_323, %c9_324] : memref<4x27xf32, #tpu.memory_space<smem>>
    %638 = vector.extract_strided_slice %158 {offsets = [1, 0, 0], sizes = [4, 8, 32], strides = [1, 1, 1]} : vector<6x10x34xf32> to vector<4x8x32xf32>
    %639 = vector.broadcast %637 : f32 to vector<4x8x32xf32>
    %640 = arith.mulf %639, %638 : vector<4x8x32xf32>
    %641 = arith.addf %636, %640 : vector<4x8x32xf32>
    %c3_325 = arith.constant 3 : index
    %c10_326 = arith.constant 10 : index
    %642 = memref.load %arg4[%c3_325, %c10_326] : memref<4x27xf32, #tpu.memory_space<smem>>
    %643 = vector.extract_strided_slice %158 {offsets = [1, 0, 1], sizes = [4, 8, 32], strides = [1, 1, 1]} : vector<6x10x34xf32> to vector<4x8x32xf32>
    %644 = vector.broadcast %642 : f32 to vector<4x8x32xf32>
    %645 = arith.mulf %644, %643 : vector<4x8x32xf32>
    %646 = arith.addf %641, %645 : vector<4x8x32xf32>
    %c3_327 = arith.constant 3 : index
    %c11_328 = arith.constant 11 : index
    %647 = memref.load %arg4[%c3_327, %c11_328] : memref<4x27xf32, #tpu.memory_space<smem>>
    %648 = vector.extract_strided_slice %158 {offsets = [1, 0, 2], sizes = [4, 8, 32], strides = [1, 1, 1]} : vector<6x10x34xf32> to vector<4x8x32xf32>
    %649 = vector.broadcast %647 : f32 to vector<4x8x32xf32>
    %650 = arith.mulf %649, %648 : vector<4x8x32xf32>
    %651 = arith.addf %646, %650 : vector<4x8x32xf32>
    %c3_329 = arith.constant 3 : index
    %c12_330 = arith.constant 12 : index
    %652 = memref.load %arg4[%c3_329, %c12_330] : memref<4x27xf32, #tpu.memory_space<smem>>
    %653 = vector.extract_strided_slice %158 {offsets = [1, 1, 0], sizes = [4, 8, 32], strides = [1, 1, 1]} : vector<6x10x34xf32> to vector<4x8x32xf32>
    %654 = vector.broadcast %652 : f32 to vector<4x8x32xf32>
    %655 = arith.mulf %654, %653 : vector<4x8x32xf32>
    %656 = arith.addf %651, %655 : vector<4x8x32xf32>
    %c3_331 = arith.constant 3 : index
    %c13_332 = arith.constant 13 : index
    %657 = memref.load %arg4[%c3_331, %c13_332] : memref<4x27xf32, #tpu.memory_space<smem>>
    %658 = vector.extract_strided_slice %158 {offsets = [1, 1, 1], sizes = [4, 8, 32], strides = [1, 1, 1]} : vector<6x10x34xf32> to vector<4x8x32xf32>
    %659 = vector.broadcast %657 : f32 to vector<4x8x32xf32>
    %660 = arith.mulf %659, %658 : vector<4x8x32xf32>
    %661 = arith.addf %656, %660 : vector<4x8x32xf32>
    %c3_333 = arith.constant 3 : index
    %c14_334 = arith.constant 14 : index
    %662 = memref.load %arg4[%c3_333, %c14_334] : memref<4x27xf32, #tpu.memory_space<smem>>
    %663 = vector.extract_strided_slice %158 {offsets = [1, 1, 2], sizes = [4, 8, 32], strides = [1, 1, 1]} : vector<6x10x34xf32> to vector<4x8x32xf32>
    %664 = vector.broadcast %662 : f32 to vector<4x8x32xf32>
    %665 = arith.mulf %664, %663 : vector<4x8x32xf32>
    %666 = arith.addf %661, %665 : vector<4x8x32xf32>
    %c3_335 = arith.constant 3 : index
    %c15_336 = arith.constant 15 : index
    %667 = memref.load %arg4[%c3_335, %c15_336] : memref<4x27xf32, #tpu.memory_space<smem>>
    %668 = vector.extract_strided_slice %158 {offsets = [1, 2, 0], sizes = [4, 8, 32], strides = [1, 1, 1]} : vector<6x10x34xf32> to vector<4x8x32xf32>
    %669 = vector.broadcast %667 : f32 to vector<4x8x32xf32>
    %670 = arith.mulf %669, %668 : vector<4x8x32xf32>
    %671 = arith.addf %666, %670 : vector<4x8x32xf32>
    %c3_337 = arith.constant 3 : index
    %c16_338 = arith.constant 16 : index
    %672 = memref.load %arg4[%c3_337, %c16_338] : memref<4x27xf32, #tpu.memory_space<smem>>
    %673 = vector.extract_strided_slice %158 {offsets = [1, 2, 1], sizes = [4, 8, 32], strides = [1, 1, 1]} : vector<6x10x34xf32> to vector<4x8x32xf32>
    %674 = vector.broadcast %672 : f32 to vector<4x8x32xf32>
    %675 = arith.mulf %674, %673 : vector<4x8x32xf32>
    %676 = arith.addf %671, %675 : vector<4x8x32xf32>
    %c3_339 = arith.constant 3 : index
    %c17_340 = arith.constant 17 : index
    %677 = memref.load %arg4[%c3_339, %c17_340] : memref<4x27xf32, #tpu.memory_space<smem>>
    %678 = vector.extract_strided_slice %158 {offsets = [1, 2, 2], sizes = [4, 8, 32], strides = [1, 1, 1]} : vector<6x10x34xf32> to vector<4x8x32xf32>
    %679 = vector.broadcast %677 : f32 to vector<4x8x32xf32>
    %680 = arith.mulf %679, %678 : vector<4x8x32xf32>
    %681 = arith.addf %676, %680 : vector<4x8x32xf32>
    %c3_341 = arith.constant 3 : index
    %c18_342 = arith.constant 18 : index
    %682 = memref.load %arg4[%c3_341, %c18_342] : memref<4x27xf32, #tpu.memory_space<smem>>
    %683 = vector.extract_strided_slice %158 {offsets = [2, 0, 0], sizes = [4, 8, 32], strides = [1, 1, 1]} : vector<6x10x34xf32> to vector<4x8x32xf32>
    %684 = vector.broadcast %682 : f32 to vector<4x8x32xf32>
    %685 = arith.mulf %684, %683 : vector<4x8x32xf32>
    %686 = arith.addf %681, %685 : vector<4x8x32xf32>
    %c3_343 = arith.constant 3 : index
    %c19_344 = arith.constant 19 : index
    %687 = memref.load %arg4[%c3_343, %c19_344] : memref<4x27xf32, #tpu.memory_space<smem>>
    %688 = vector.extract_strided_slice %158 {offsets = [2, 0, 1], sizes = [4, 8, 32], strides = [1, 1, 1]} : vector<6x10x34xf32> to vector<4x8x32xf32>
    %689 = vector.broadcast %687 : f32 to vector<4x8x32xf32>
    %690 = arith.mulf %689, %688 : vector<4x8x32xf32>
    %691 = arith.addf %686, %690 : vector<4x8x32xf32>
    %c3_345 = arith.constant 3 : index
    %c20_346 = arith.constant 20 : index
    %692 = memref.load %arg4[%c3_345, %c20_346] : memref<4x27xf32, #tpu.memory_space<smem>>
    %693 = vector.extract_strided_slice %158 {offsets = [2, 0, 2], sizes = [4, 8, 32], strides = [1, 1, 1]} : vector<6x10x34xf32> to vector<4x8x32xf32>
    %694 = vector.broadcast %692 : f32 to vector<4x8x32xf32>
    %695 = arith.mulf %694, %693 : vector<4x8x32xf32>
    %696 = arith.addf %691, %695 : vector<4x8x32xf32>
    %c3_347 = arith.constant 3 : index
    %c21_348 = arith.constant 21 : index
    %697 = memref.load %arg4[%c3_347, %c21_348] : memref<4x27xf32, #tpu.memory_space<smem>>
    %698 = vector.extract_strided_slice %158 {offsets = [2, 1, 0], sizes = [4, 8, 32], strides = [1, 1, 1]} : vector<6x10x34xf32> to vector<4x8x32xf32>
    %699 = vector.broadcast %697 : f32 to vector<4x8x32xf32>
    %700 = arith.mulf %699, %698 : vector<4x8x32xf32>
    %701 = arith.addf %696, %700 : vector<4x8x32xf32>
    %c3_349 = arith.constant 3 : index
    %c22_350 = arith.constant 22 : index
    %702 = memref.load %arg4[%c3_349, %c22_350] : memref<4x27xf32, #tpu.memory_space<smem>>
    %703 = vector.extract_strided_slice %158 {offsets = [2, 1, 1], sizes = [4, 8, 32], strides = [1, 1, 1]} : vector<6x10x34xf32> to vector<4x8x32xf32>
    %704 = vector.broadcast %702 : f32 to vector<4x8x32xf32>
    %705 = arith.mulf %704, %703 : vector<4x8x32xf32>
    %706 = arith.addf %701, %705 : vector<4x8x32xf32>
    %c3_351 = arith.constant 3 : index
    %c23_352 = arith.constant 23 : index
    %707 = memref.load %arg4[%c3_351, %c23_352] : memref<4x27xf32, #tpu.memory_space<smem>>
    %708 = vector.extract_strided_slice %158 {offsets = [2, 1, 2], sizes = [4, 8, 32], strides = [1, 1, 1]} : vector<6x10x34xf32> to vector<4x8x32xf32>
    %709 = vector.broadcast %707 : f32 to vector<4x8x32xf32>
    %710 = arith.mulf %709, %708 : vector<4x8x32xf32>
    %711 = arith.addf %706, %710 : vector<4x8x32xf32>
    %c3_353 = arith.constant 3 : index
    %c24_354 = arith.constant 24 : index
    %712 = memref.load %arg4[%c3_353, %c24_354] : memref<4x27xf32, #tpu.memory_space<smem>>
    %713 = vector.extract_strided_slice %158 {offsets = [2, 2, 0], sizes = [4, 8, 32], strides = [1, 1, 1]} : vector<6x10x34xf32> to vector<4x8x32xf32>
    %714 = vector.broadcast %712 : f32 to vector<4x8x32xf32>
    %715 = arith.mulf %714, %713 : vector<4x8x32xf32>
    %716 = arith.addf %711, %715 : vector<4x8x32xf32>
    %c3_355 = arith.constant 3 : index
    %c25_356 = arith.constant 25 : index
    %717 = memref.load %arg4[%c3_355, %c25_356] : memref<4x27xf32, #tpu.memory_space<smem>>
    %718 = vector.extract_strided_slice %158 {offsets = [2, 2, 1], sizes = [4, 8, 32], strides = [1, 1, 1]} : vector<6x10x34xf32> to vector<4x8x32xf32>
    %719 = vector.broadcast %717 : f32 to vector<4x8x32xf32>
    %720 = arith.mulf %719, %718 : vector<4x8x32xf32>
    %721 = arith.addf %716, %720 : vector<4x8x32xf32>
    %c3_357 = arith.constant 3 : index
    %c26_358 = arith.constant 26 : index
    %722 = memref.load %arg4[%c3_357, %c26_358] : memref<4x27xf32, #tpu.memory_space<smem>>
    %723 = vector.extract_strided_slice %158 {offsets = [2, 2, 2], sizes = [4, 8, 32], strides = [1, 1, 1]} : vector<6x10x34xf32> to vector<4x8x32xf32>
    %724 = vector.broadcast %722 : f32 to vector<4x8x32xf32>
    %725 = arith.mulf %724, %723 : vector<4x8x32xf32>
    %726 = arith.addf %721, %725 : vector<4x8x32xf32>
    %c3_359 = arith.constant 3 : index
    %727 = memref.load %arg5[%c3_359] : memref<4xf32, #tpu.memory_space<smem>>
    %728 = vector.broadcast %727 : f32 to vector<4x8x32xf32>
    %729 = arith.addf %726, %728 : vector<4x8x32xf32>
    %cst_360 = arith.constant 0.000000e+00 : f32
    %730 = vector.broadcast %cst_360 : f32 to vector<4x8x32xf32>
    %731 = arith.maximumf %729, %730 : vector<4x8x32xf32>
    %c0_361 = arith.constant 0 : index
    %c7_362 = arith.constant 7 : index
    %c0_363 = arith.constant 0 : index
    %c0_364 = arith.constant 0 : index
    %c0_365 = arith.constant 0 : index
    %732 = vector.load %arg6[%c0_361, %c7_362, %c0_363, %c0_364, %c0_365] : memref<1x8x4x8x32xf32, #tpu.memory_space<vmem>>, vector<1x1x4x8x32xf32>
    %733 = vector.shape_cast %732 : vector<1x1x4x8x32xf32> to vector<4x8x32xf32>
    %734 = vector.shape_cast %731 : vector<4x8x32xf32> to vector<1x1x4x8x32xf32>
    tpu.vector_store %arg6[%c0_361, %c7_362, %c0_363, %c0_364, %c0_365], %734 {strides = array<i32>} : memref<1x8x4x8x32xf32, #tpu.memory_space<vmem>>, vector<1x1x4x8x32xf32>,
    return
  }
  func.func @transform_0(%arg0: i32) -> (i32, i32, i32, i32, i32) {
    %c0_i32 = arith.constant 0 : i32
    %c0_i32_0 = arith.constant 0 : i32
    %c0_i32_1 = arith.constant 0 : i32
    %c0_i32_2 = arith.constant 0 : i32
    %c0_i32_3 = arith.constant 0 : i32
    return %arg0, %c0_i32, %c0_i32_0, %c0_i32_1, %c0_i32_2 : i32, i32, i32, i32, i32
  }
  func.func @transform_1(%arg0: i32) -> (i32, i32) {
    %c0_i32 = arith.constant 0 : i32
    %c0_i32_0 = arith.constant 0 : i32
    %c0_i32_1 = arith.constant 0 : i32
    return %c0_i32, %c0_i32_0 : i32, i32
  }
  func.func @transform_2(%arg0: i32) -> i32 {
    %c0_i32 = arith.constant 0 : i32
    %c0_i32_0 = arith.constant 0 : i32
    return %c0_i32 : i32
  }
  func.func @transform_3(%arg0: i32) -> (i32, i32) {
    %c0_i32 = arith.constant 0 : i32
    %c0_i32_0 = arith.constant 0 : i32
    %c0_i32_1 = arith.constant 0 : i32
    return %c0_i32, %c0_i32_0 : i32, i32
  }
  func.func @transform_4(%arg0: i32) -> i32 {
    %c0_i32 = arith.constant 0 : i32
    %c0_i32_0 = arith.constant 0 : i32
    return %c0_i32 : i32
  }
  func.func @transform_5(%arg0: i32) -> (i32, i32, i32, i32, i32) {
    %c0_i32 = arith.constant 0 : i32
    %c0_i32_0 = arith.constant 0 : i32
    %c0_i32_1 = arith.constant 0 : i32
    %c0_i32_2 = arith.constant 0 : i32
    %c0_i32_3 = arith.constant 0 : i32
    return %arg0, %c0_i32, %c0_i32_0, %c0_i32_1, %c0_i32_2 : i32, i32, i32, i32, i32
  }
}

</mosaic_0001>

<llo_original>
// kernel: ghost_module_forward.1
$region0: #{ghost_module_forward.1}
  #allocation0 [shape = 'u32[]', space=smem, size = 0x4, offset = 0x4, fixed_abs, tag = 'smem constant byte address 0x4 - core index']
  #allocation1 [shape = 'u32[72,128]{1,0:T(1,128)}', space=vmem, size = 0x9000, scoped, tag = 'internal scratch']
  %s0 = inlined_call_operand.vmem [shape: f32[2,4,6,10,34], index: 0, kind: input, shape index: {}]
  %s1 = inlined_call_operand.vmem [shape: f32[4,4], index: 1, kind: input, shape index: {}]
  %s2 = inlined_call_operand.vmem [shape: f32[4], index: 2, kind: input, shape index: {}]
  %s3 = inlined_call_operand.vmem [shape: f32[4,27], index: 3, kind: input, shape index: {}]
  %s4 = inlined_call_operand.vmem [shape: f32[4], index: 4, kind: input, shape index: {}]
  %s5 = inlined_call_operand.hbm [shape: f32[2,8,4,8,32], index: 5, kind: output, shape index: {}]
  %s6 = sld [smem:[#allocation0]]
  $region69: #{ghost_module_forward.1} parent=0
    _
  %s8 = ssub.s32 1, %s6
  %s9 = scalar_select 0, %s8, %s6
  $region1: #{ghost_module_forward.1} parent=0
    #allocation2 [shape = 'u8[2048]{0}', space=smem, size = 0x800, scoped, tag = 'input window, operand 1, single buffered']
    #allocation3 [shape = 's32[2]{0}', space=sflag, size = 0x8, scoped, tag = 'scoped memory for ghost_module_forward.1']
    #allocation4 [shape = 's32[2]{0}', space=sflag, size = 0x8, scoped, tag = 'scoped memory for ghost_module_forward.1']
    #allocation5 [shape = 'u8[512]{0}', space=smem, size = 0x200, scoped, tag = 'input window, operand 2, single buffered']
    #allocation6 [shape = 's32[1]{0}', space=sflag, size = 0x4, scoped, tag = 'scoped memory for ghost_module_forward.1']
    #allocation7 [shape = 'u8[2048]{0}', space=smem, size = 0x800, scoped, tag = 'input window, operand 3, single buffered']
    #allocation8 [shape = 'u8[512]{0}', space=smem, size = 0x200, scoped, tag = 'input window, operand 4, single buffered']
    #allocation9 [shape = 's32[1]{0}', space=sflag, size = 0x4, scoped, tag = 'scoped memory for ghost_module_forward.1']
    #allocation10 [shape = 'u8[262144]{0}', space=vmem, size = 0x40000, scoped, tag = 'output window, operand 0']
    %10 = vsyncpa [#allocation4], 0
    %11 = vsyncpa [#allocation6], 0
    %12 = vsyncpa [#allocation9], 0
    %13 = vsyncpa [#allocation3], 0
    %s14 = scalar_lea.sflag [#allocation3], 1
    %15 = vsyncpa %s14, 0
    loop: start=0, step=1, limit=4
    $region2: #{ghost_module_forward.1} parent=1 // loop_pre_header
      _
    $region3: #{ghost_module_forward.1} parent=1 // loop_header
      %s17 = sphi 0, %s21
      %p18 = scmp.ge.s32.totalorder %s17, 4
      %s27 = sphi 0, %s29
      %s30 = sphi 0, %s27
      %s31 = sphi 0, %s30
      %s47 = sphi 0, %s31
      %s51 = sphi 0, %s51
      %s53 = sphi 0, %s51
      %s54 = sphi 0, %s53
      %s68 = sphi 0, %s54
      %s72 = sphi 0, %s72
      %s74 = sphi 0, %s72
      %s75 = sphi 0, %s74
      %s89 = sphi 0, %s75
      %s93 = sphi 0, %s93
      %s95 = sphi 0, %s93
      %s96 = sphi 0, %s95
      %s110 = sphi 0, %s96
      %s114 = sphi 0, %s114
      %s116 = sphi 0, %s114
      %s117 = sphi 0, %s116
      %s131 = sphi 0, %s117
      %s137 = sphi 0, %s139
      %s140 = sphi 0, %s137
      %s141 = sphi 0, %s140
      %s157 = sphi 0, %s141
    $region4: #{ghost_module_forward.1} parent=1 // loop_header_branch
      %20 = sbr.rel (%p18) target = $region8
    $region5: #{ghost_module_forward.1} parent=1 // loop_body
      %s22 = ssub.s32 %s17, 1
      %s23 = ssub.s32 %s17, 2
      %s24 = sadd.s32 %s17, 1
      %s25 = ssub.s32 %s17, %s24
      %p26 = scmp.eq.s32.totalorder %s25, 0
      %s28 = sadd.s32 %s27, 1
      %s29 = scalar_select %p26, %s27, %s28
      %p32 = pneg %p26
      %p33 = scmp.eq.s32.totalorder %s17, 1
      %p34 = por %p32, %p33
      %p35 = scmp.ne.s32.totalorder %s27, %s30
      %p36 = scmp.eq.s32.totalorder %s17, 0
      %p37 = por %p35, %p36
      %p38 = scmp.ne.s32.totalorder %s27, %s30
      %p39 = scmp.eq.s32.totalorder %s22, 1
      %p40 = por %p38, %p39
      %p41 = scmp.ne.s32.totalorder %s30, %s31
      %p42 = scmp.eq.s32.totalorder %s22, 0
      %p43 = por %p41, %p42
      %p44 = scmp.ne.s32.totalorder %s30, %s31
      %p45 = scmp.eq.s32.totalorder %s23, 1
      %p46 = por %p44, %p45
      %p48 = scmp.ne.s32.totalorder %s31, %s47
      %p49 = scmp.eq.s32.totalorder %s23, 0
      %p50 = por %p48, %p49
      %s52 = sadd.s32 %s51, 1
      %p55 = scmp.eq.s32.totalorder %s17, 1
      %p56 = scmp.ne.s32.totalorder %s51, %s53
      %p57 = scmp.eq.s32.totalorder %s17, 0
      %p58 = por %p56, %p57
      %p59 = scmp.ne.s32.totalorder %s51, %s53
      %p60 = scmp.eq.s32.totalorder %s22, 1
      %p61 = por %p59, %p60
      %p62 = scmp.ne.s32.totalorder %s53, %s54
      %p63 = scmp.eq.s32.totalorder %s22, 0
      %p64 = por %p62, %p63
      %p65 = scmp.ne.s32.totalorder %s53, %s54
      %p66 = scmp.eq.s32.totalorder %s23, 1
      %p67 = por %p65, %p66
      %p69 = scmp.ne.s32.totalorder %s54, %s68
      %p70 = scmp.eq.s32.totalorder %s23, 0
      %p71 = por %p69, %p70
      %s73 = sadd.s32 %s72, 1
      %p76 = scmp.eq.s32.totalorder %s17, 1
      %p77 = scmp.ne.s32.totalorder %s72, %s74
      %p78 = scmp.eq.s32.totalorder %s17, 0
      %p79 = por %p77, %p78
      %p80 = scmp.ne.s32.totalorder %s72, %s74
      %p81 = scmp.eq.s32.totalorder %s22, 1
      %p82 = por %p80, %p81
      %p83 = scmp.ne.s32.totalorder %s74, %s75
      %p84 = scmp.eq.s32.totalorder %s22, 0
      %p85 = por %p83, %p84
      %p86 = scmp.ne.s32.totalorder %s74, %s75
      %p87 = scmp.eq.s32.totalorder %s23, 1
      %p88 = por %p86, %p87
      %p90 = scmp.ne.s32.totalorder %s75, %s89
      %p91 = scmp.eq.s32.totalorder %s23, 0
      %p92 = por %p90, %p91
      %s94 = sadd.s32 %s93, 1
      %p97 = scmp.eq.s32.totalorder %s17, 1
      %p98 = scmp.ne.s32.totalorder %s93, %s95
      %p99 = scmp.eq.s32.totalorder %s17, 0
      %p100 = por %p98, %p99
      %p101 = scmp.ne.s32.totalorder %s93, %s95
      %p102 = scmp.eq.s32.totalorder %s22, 1
      %p103 = por %p101, %p102
      %p104 = scmp.ne.s32.totalorder %s95, %s96
      %p105 = scmp.eq.s32.totalorder %s22, 0
      %p106 = por %p104, %p105
      %p107 = scmp.ne.s32.totalorder %s95, %s96
      %p108 = scmp.eq.s32.totalorder %s23, 1
      %p109 = por %p107, %p108
      %p111 = scmp.ne.s32.totalorder %s96, %s110
      %p112 = scmp.eq.s32.totalorder %s23, 0
      %p113 = por %p111, %p112
      %s115 = sadd.s32 %s114, 1
      %p118 = scmp.eq.s32.totalorder %s17, 1
      %p119 = scmp.ne.s32.totalorder %s114, %s116
      %p120 = scmp.eq.s32.totalorder %s17, 0
      %p121 = por %p119, %p120
      %p122 = scmp.ne.s32.totalorder %s114, %s116
      %p123 = scmp.eq.s32.totalorder %s22, 1
      %p124 = por %p122, %p123
      %p125 = scmp.ne.s32.totalorder %s116, %s117
      %p126 = scmp.eq.s32.totalorder %s22, 0
      %p127 = por %p125, %p126
      %p128 = scmp.ne.s32.totalorder %s116, %s117
      %p129 = scmp.eq.s32.totalorder %s23, 1
      %p130 = por %p128, %p129
      %p132 = scmp.ne.s32.totalorder %s117, %s131
      %p133 = scmp.eq.s32.totalorder %s23, 0
      %p134 = por %p132, %p133
      %s135 = ssub.s32 %s17, %s24
      %p136 = scmp.eq.s32.totalorder %s135, 0
      %s138 = sadd.s32 %s137, 1
      %s139 = scalar_select %p136, %s137, %s138
      %p142 = pneg %p136
      %p143 = scmp.eq.s32.totalorder %s17, 1
      %p144 = por %p142, %p143
      %p145 = scmp.ne.s32.totalorder %s137, %s140
      %p146 = scmp.eq.s32.totalorder %s17, 0
      %p147 = por %p145, %p146
      %p148 = scmp.ne.s32.totalorder %s137, %s140
      %p149 = scmp.eq.s32.totalorder %s22, 1
      %p150 = por %p148, %p149
      %p151 = scmp.ne.s32.totalorder %s140, %s141
      %p152 = scmp.eq.s32.totalorder %s22, 0
      %p153 = por %p151, %p152
      %p154 = scmp.ne.s32.totalorder %s140, %s141
      %p155 = scmp.eq.s32.totalorder %s23, 1
      %p156 = por %p154, %p155
      %p158 = scmp.ne.s32.totalorder %s141, %s157
      %p159 = scmp.eq.s32.totalorder %s23, 0
      %p160 = por %p158, %p159
      %p161 = scmp.le.s32.totalorder 1, %s17
      %p162 = scmp.lt.s32.totalorder %s17, 3
      %p163 = pnand %p161, %p162
      %p164 = pneg %p163
      // Predicated region
      $region9: #{ghost_module_forward.1} parent=5 // pred_check
        _
      $region10: #{ghost_module_forward.1} parent=5 // pred_check_branch
        %166 = sbr.rel (%p163) target = $region12
      $region11: #{ghost_module_forward.1} parent=5 // pred_region
        %s167 = ssub.s32 %s17, 1
        // Predicated region
        $region13: #{ghost_module_forward.1} parent=11 // pred_check
          %p168 = pneg %p64
        $region14: #{ghost_module_forward.1} parent=11 // pred_check_branch
          %170 = sbr.rel (%p168) target = $region16
        $region15: #{ghost_module_forward.1} parent=11 // pred_region
          %172 = vsyncadd [#allocation4], 0
          %s174 = sshll.u32 %s1, 4
          %s175 = int_to_ptr.vmem [resolvable:$true] %s174
          %177 = dma.vmem_to_smem %s175, 64, [#allocation2], [#allocation4]
        $region16: #{ghost_module_forward.1} parent=11 // pred_fallthru
          _
        // Predicated region
        $region17: #{ghost_module_forward.1} parent=11 // pred_check
          %p178 = pneg %p85
        $region18: #{ghost_module_forward.1} parent=11 // pred_check_branch
          %180 = sbr.rel (%p178) target = $region20
        $region19: #{ghost_module_forward.1} parent=11 // pred_region
          %182 = vsyncadd [#allocation6], 0
          %s184 = sshll.u32 %s2, 4
          %s185 = int_to_ptr.vmem [resolvable:$true] %s184
          %187 = dma.vmem_to_smem %s185, 16, [#allocation5], [#allocation6]
        $region20: #{ghost_module_forward.1} parent=11 // pred_fallthru
          _
        // Predicated region
        $region21: #{ghost_module_forward.1} parent=11 // pred_check
          %p188 = pneg %p106
        $region22: #{ghost_module_forward.1} parent=11 // pred_check_branch
          %190 = sbr.rel (%p188) target = $region24
        $region23: #{ghost_module_forward.1} parent=11 // pred_region
          %192 = vsyncadd [#allocation6], 0
          %s194 = sshll.u32 %s3, 4
          %s195 = int_to_ptr.vmem [resolvable:$true] %s194
          %197 = dma.vmem_to_smem %s195, 64, [#allocation7], [#allocation6]
        $region24: #{ghost_module_forward.1} parent=11 // pred_fallthru
          _
        // Predicated region
        $region25: #{ghost_module_forward.1} parent=11 // pred_check
          %p198 = pneg %p127
        $region26: #{ghost_module_forward.1} parent=11 // pred_check_branch
          %200 = sbr.rel (%p198) target = $region28
        $region27: #{ghost_module_forward.1} parent=11 // pred_region
          %202 = vsyncadd [#allocation9], 0
          %s204 = sshll.u32 %s4, 4
          %s205 = int_to_ptr.vmem [resolvable:$true] %s204
          %207 = dma.vmem_to_smem %s205, 16, [#allocation8], [#allocation9]
        $region28: #{ghost_module_forward.1} parent=11 // pred_fallthru
          _
      $region12: #{ghost_module_forward.1} parent=5 // pred_fallthru
        _
      %p208 = scmp.lt.s32.totalorder %s17, 2
      // Predicated region
      $region29: #{ghost_module_forward.1} parent=5 // pred_check
        %p209 = pneg %p208
      $region30: #{ghost_module_forward.1} parent=5 // pred_check_branch
        %211 = sbr.rel (%p209) target = $region32
      $region31: #{ghost_module_forward.1} parent=5 // pred_region
        // Predicated region
        $region33: #{ghost_module_forward.1} parent=31 // pred_check
          %p212 = pneg %p37
        $region34: #{ghost_module_forward.1} parent=31 // pred_check_branch
          %214 = sbr.rel (%p212) target = $region36
        $region35: #{ghost_module_forward.1} parent=31 // pred_region
          %p215 = scmp.lt.s32.totalorder %s17, 1
          %s216 = scalar_select %p215, %s17, 1
          %s217 = smul.addr %s216, 48
          %s218 = smul.addr %s217, 8
          %s219 = scalar_lea.vmem %s0, %s218
        $region36: #{ghost_module_forward.1} parent=31 // pred_fallthru
          _
      $region32: #{ghost_module_forward.1} parent=5 // pred_fallthru
        _
      %p220 = scmp.le.s32.totalorder 1, %s17
      %p221 = scmp.lt.s32.totalorder %s17, 3
      %p222 = pnand %p220, %p221
      %p223 = pneg %p222
      // Predicated region
      $region37: #{ghost_module_forward.1} parent=5 // pred_check
        _
      $region38: #{ghost_module_forward.1} parent=5 // pred_check_branch
        %225 = sbr.rel (%p222) target = $region40
      $region39: #{ghost_module_forward.1} parent=5 // pred_region
        %s226 = ssub.s32 %s17, 1
        // Predicated region
        $region41: #{ghost_module_forward.1} parent=39 // pred_check
          %p227 = pneg %p64
        $region42: #{ghost_module_forward.1} parent=39 // pred_check_branch
          %229 = sbr.rel (%p227) target = $region44
        $region43: #{ghost_module_forward.1} parent=39 // pred_region
          %231 = dma.done [#allocation4], 64
        $region44: #{ghost_module_forward.1} parent=39 // pred_fallthru
          _
        // Predicated region
        $region45: #{ghost_module_forward.1} parent=39 // pred_check
          %p232 = pneg %p85
        $region46: #{ghost_module_forward.1} parent=39 // pred_check_branch
          %234 = sbr.rel (%p232) target = $region48
        $region47: #{ghost_module_forward.1} parent=39 // pred_region
          %236 = dma.done [#allocation6], 16
        $region48: #{ghost_module_forward.1} parent=39 // pred_fallthru
          _
        // Predicated region
        $region49: #{ghost_module_forward.1} parent=39 // pred_check
          %p237 = pneg %p106
        $region50: #{ghost_module_forward.1} parent=39 // pred_check_branch
          %239 = sbr.rel (%p237) target = $region52
        $region51: #{ghost_module_forward.1} parent=39 // pred_region
          %241 = dma.done [#allocation6], 64
        $region52: #{ghost_module_forward.1} parent=39 // pred_fallthru
          _
        // Predicated region
        $region53: #{ghost_module_forward.1} parent=39 // pred_check
          %p242 = pneg %p127
        $region54: #{ghost_module_forward.1} parent=39 // pred_check_branch
          %244 = sbr.rel (%p242) target = $region56
        $region55: #{ghost_module_forward.1} parent=39 // pred_region
          %246 = dma.done [#allocation9], 16
        $region56: #{ghost_module_forward.1} parent=39 // pred_fallthru
          _
        %247 = sfence
        %p248 = scmp.lt.s32.totalorder %s22, 1
        %s249 = scalar_select %p248, %s22, 1
        %s250 = smul.addr %s249, 48
        %s251 = smul.addr %s250, 8
        %s252 = scalar_lea.vmem %s0, %s251
        %p253 = pneg %p43
        %p254 = pneg %p40
        %p255 = pneg %p64
        %p256 = pneg %p61
        %p257 = pneg %p85
        %p258 = pneg %p82
        %p259 = pneg %p106
        %p260 = pneg %p103
        %p261 = pneg %p127
        %p262 = pneg %p124
        %p263 = pneg %p153
        %p264 = pneg %p150
        %s265 = sand.u32 %s140, 1
        %s266 = scalar_lea.sflag [#allocation3], %s265
        %s267 = sand.u32 %s140, 1
        %s268 = smul.addr %s267, 256
        %s269 = scalar_lea.vmem [#allocation10], %s268
        %p270 = scmp.lt.s32.totalorder %s22, 1
        %s271 = scalar_select %p270, %s22, 1
        %s272 = smul.addr %s271, 48
        %s273 = smul.addr %s272, 8
        %s274 = scalar_lea.vmem %s0, %s273
        %v275 = vlaneseq
        %v276 = vshrl.u32 %v275, 7
        %v277 = vadd.s32 %v276, 8
        %v278 = vlaneseq
        %v279 = vand.u32 %v278, 127
        %vm280 = vcmp.ge.s32.totalorder %v276, 1
        %vm281 = vcmp.ge.s32.totalorder %v277, 1
        %vm282 = vcmp.le.s32.totalorder %v276, 8
        %vm283 = vcmp.le.s32.totalorder %v277, 8
        %vm284 = vmand %vm280, %vm282
        %vm285 = vmand %vm281, %vm283
        %vm286 = vcmp.ge.s32.totalorder %v279, 1
        %vm287 = vmand %vm284, %vm286
        %vm288 = vmand %vm285, %vm286
        %vm289 = vcmp.le.s32.totalorder %v279, 32
        %vm290 = vmand %vm287, %vm289
        %vm291 = vmand %vm288, %vm289
        %v292 = vsel %vm290, 1, 0
        %v293 = vsel %vm291, 1, 0
        %v294 = vcvt.s32.f32 %v292
        %v295 = vcvt.s32.f32 %v293
        %s296 = sld [smem:[#allocation2]]
        %v297 = vld [vmem:[%s274] sm:$0xff]
        %v298 = vld [vmem:[%s274 + $0x8] sm:$0x3]
        %v299 = vld [vmem:[%s274 + $0x10] sm:$0xff]
        %v300 = vld [vmem:[%s274 + $0x18] sm:$0x3]
        %v301 = vld [vmem:[%s274 + $0x20] sm:$0xff]
        %v302 = vld [vmem:[%s274 + $0x28] sm:$0x3]
        %v303 = vld [vmem:[%s274 + $0x30] sm:$0xff]
        %v304 = vld [vmem:[%s274 + $0x38] sm:$0x3]
        %v305 = vld [vmem:[%s274 + $0x40] sm:$0xff]
        %v306 = vld [vmem:[%s274 + $0x48] sm:$0x3]
        %v307 = vld [vmem:[%s274 + $0x50] sm:$0xff]
        %v308 = vld [vmem:[%s274 + $0x58] sm:$0x3]
        %v309 = vstv %s296
        %v310 = vmul.f32 %v309, %v297
        %v311 = vmul.f32 %v309, %v298
        %v312 = vmul.f32 %v309, %v299
        %v313 = vmul.f32 %v309, %v300
        %v314 = vmul.f32 %v309, %v301
        %v315 = vmul.f32 %v309, %v302
        %v316 = vmul.f32 %v309, %v303
        %v317 = vmul.f32 %v309, %v304
        %v318 = vmul.f32 %v309, %v305
        %v319 = vmul.f32 %v309, %v306
        %v320 = vmul.f32 %v309, %v307
        %v321 = vmul.f32 %v309, %v308
        %v322 = vadd.f32 %v310, 0.0
        %v323 = vadd.f32 %v311, 0.0
        %v324 = vadd.f32 %v312, 0.0
        %v325 = vadd.f32 %v313, 0.0
        %v326 = vadd.f32 %v314, 0.0
        %v327 = vadd.f32 %v315, 0.0
        %v328 = vadd.f32 %v316, 0.0
        %v329 = vadd.f32 %v317, 0.0
        %v330 = vadd.f32 %v318, 0.0
        %v331 = vadd.f32 %v319, 0.0
        %v332 = vadd.f32 %v320, 0.0
        %v333 = vadd.f32 %v321, 0.0
        %s334 = sld [smem:[#allocation2 + $0x1]]
        %s335 = scalar_lea.vmem %s274, 96
        %v336 = vld [vmem:[%s335] sm:$0xff]
        %v337 = vld [vmem:[%s335 + $0x8] sm:$0x3]
        %v338 = vld [vmem:[%s335 + $0x10] sm:$0xff]
        %v339 = vld [vmem:[%s335 + $0x18] sm:$0x3]
        %v340 = vld [vmem:[%s335 + $0x20] sm:$0xff]
        %v341 = vld [vmem:[%s335 + $0x28] sm:$0x3]
        %v342 = vld [vmem:[%s335 + $0x30] sm:$0xff]
        %v343 = vld [vmem:[%s335 + $0x38] sm:$0x3]
        %v344 = vld [vmem:[%s335 + $0x40] sm:$0xff]
        %v345 = vld [vmem:[%s335 + $0x48] sm:$0x3]
        %v346 = vld [vmem:[%s335 + $0x50] sm:$0xff]
        %v347 = vld [vmem:[%s335 + $0x58] sm:$0x3]
        %v348 = vstv %s334
        %v349 = vmul.f32 %v348, %v336
        %v350 = vmul.f32 %v348, %v337
        %v351 = vmul.f32 %v348, %v338
        %v352 = vmul.f32 %v348, %v339
        %v353 = vmul.f32 %v348, %v340
        %v354 = vmul.f32 %v348, %v341
        %v355 = vmul.f32 %v348, %v342
        %v356 = vmul.f32 %v348, %v343
        %v357 = vmul.f32 %v348, %v344
        %v358 = vmul.f32 %v348, %v345
        %v359 = vmul.f32 %v348, %v346
        %v360 = vmul.f32 %v348, %v347
        %v361 = vadd.f32 %v322, %v349
        %v362 = vadd.f32 %v323, %v350
        %v363 = vadd.f32 %v324, %v351
        %v364 = vadd.f32 %v325, %v352
        %v365 = vadd.f32 %v326, %v353
        %v366 = vadd.f32 %v327, %v354
        %v367 = vadd.f32 %v328, %v355
        %v368 = vadd.f32 %v329, %v356
        %v369 = vadd.f32 %v330, %v357
        %v370 = vadd.f32 %v331, %v358
        %v371 = vadd.f32 %v332, %v359
        %v372 = vadd.f32 %v333, %v360
        %s373 = sld [smem:[#allocation2 + $0x2]]
        %s374 = scalar_lea.vmem %s274, 192
        %v375 = vld [vmem:[%s374] sm:$0xff]
        %v376 = vld [vmem:[%s374 + $0x8] sm:$0x3]
        %v377 = vld [vmem:[%s374 + $0x10] sm:$0xff]
        %v378 = vld [vmem:[%s374 + $0x18] sm:$0x3]
        %v379 = vld [vmem:[%s374 + $0x20] sm:$0xff]
        %v380 = vld [vmem:[%s374 + $0x28] sm:$0x3]
        %v381 = vld [vmem:[%s374 + $0x30] sm:$0xff]
        %v382 = vld [vmem:[%s374 + $0x38] sm:$0x3]
        %v383 = vld [vmem:[%s374 + $0x40] sm:$0xff]
        %v384 = vld [vmem:[%s374 + $0x48] sm:$0x3]
        %v385 = vld [vmem:[%s374 + $0x50] sm:$0xff]
        %v386 = vld [vmem:[%s374 + $0x58] sm:$0x3]
        %v387 = vstv %s373
        %v388 = vmul.f32 %v387, %v375
        %v389 = vmul.f32 %v387, %v376
        %v390 = vmul.f32 %v387, %v377
        %v391 = vmul.f32 %v387, %v378
        %v392 = vmul.f32 %v387, %v379
        %v393 = vmul.f32 %v387, %v380
        %v394 = vmul.f32 %v387, %v381
        %v395 = vmul.f32 %v387, %v382
        %v396 = vmul.f32 %v387, %v383
        %v397 = vmul.f32 %v387, %v384
        %v398 = vmul.f32 %v387, %v385
        %v399 = vmul.f32 %v387, %v386
        %v400 = vadd.f32 %v361, %v388
        %v401 = vadd.f32 %v362, %v389
        %v402 = vadd.f32 %v363, %v390
        %v403 = vadd.f32 %v364, %v391
        %v404 = vadd.f32 %v365, %v392
        %v405 = vadd.f32 %v366, %v393
        %v406 = vadd.f32 %v367, %v394
        %v407 = vadd.f32 %v368, %v395
        %v408 = vadd.f32 %v369, %v396
        %v409 = vadd.f32 %v370, %v397
        %v410 = vadd.f32 %v371, %v398
        %v411 = vadd.f32 %v372, %v399
        %s412 = sld [smem:[#allocation2 + $0x3]]
        %s413 = scalar_lea.vmem %s274, 288
        %v414 = vld [vmem:[%s413] sm:$0xff]
        %v415 = vld [vmem:[%s413 + $0x8] sm:$0x3]
        %v416 = vld [vmem:[%s413 + $0x10] sm:$0xff]
        %v417 = vld [vmem:[%s413 + $0x18] sm:$0x3]
        %v418 = vld [vmem:[%s413 + $0x20] sm:$0xff]
        %v419 = vld [vmem:[%s413 + $0x28] sm:$0x3]
        %v420 = vld [vmem:[%s413 + $0x30] sm:$0xff]
        %v421 = vld [vmem:[%s413 + $0x38] sm:$0x3]
        %v422 = vld [vmem:[%s413 + $0x40] sm:$0xff]
        %v423 = vld [vmem:[%s413 + $0x48] sm:$0x3]
        %v424 = vld [vmem:[%s413 + $0x50] sm:$0xff]
        %v425 = vld [vmem:[%s413 + $0x58] sm:$0x3]
        %v426 = vstv %s412
        %v427 = vmul.f32 %v426, %v414
        %v428 = vmul.f32 %v426, %v415
        %v429 = vmul.f32 %v426, %v416
        %v430 = vmul.f32 %v426, %v417
        %v431 = vmul.f32 %v426, %v418
        %v432 = vmul.f32 %v426, %v419
        %v433 = vmul.f32 %v426, %v420
        %v434 = vmul.f32 %v426, %v421
        %v435 = vmul.f32 %v426, %v422
        %v436 = vmul.f32 %v426, %v423
        %v437 = vmul.f32 %v426, %v424
        %v438 = vmul.f32 %v426, %v425
        %v439 = vadd.f32 %v400, %v427
        %v440 = vadd.f32 %v401, %v428
        %v441 = vadd.f32 %v402, %v429
        %v442 = vadd.f32 %v403, %v430
        %v443 = vadd.f32 %v404, %v431
        %v444 = vadd.f32 %v405, %v432
        %v445 = vadd.f32 %v406, %v433
        %v446 = vadd.f32 %v407, %v434
        %v447 = vadd.f32 %v408, %v435
        %v448 = vadd.f32 %v409, %v436
        %v449 = vadd.f32 %v410, %v437
        %v450 = vadd.f32 %v411, %v438
        %s451 = sld [smem:[#allocation5]]
        %v452 = vstv %s451
        %v453 = vadd.f32 %v439, %v452
        %v454 = vadd.f32 %v440, %v452
        %v455 = vadd.f32 %v441, %v452
        %v456 = vadd.f32 %v442, %v452
        %v457 = vadd.f32 %v443, %v452
        %v458 = vadd.f32 %v444, %v452
        %v459 = vadd.f32 %v445, %v452
        %v460 = vadd.f32 %v446, %v452
        %v461 = vadd.f32 %v447, %v452
        %v462 = vadd.f32 %v448, %v452
        %v463 = vadd.f32 %v449, %v452
        %v464 = vadd.f32 %v450, %v452
        %v465 = vmax.f32 %v453, 0.0
        %v466 = vmax.f32 %v454, 0.0
        %v467 = vmax.f32 %v455, 0.0
        %v468 = vmax.f32 %v456, 0.0
        %v469 = vmax.f32 %v457, 0.0
        %v470 = vmax.f32 %v458, 0.0
        %v471 = vmax.f32 %v459, 0.0
        %v472 = vmax.f32 %v460, 0.0
        %v473 = vmax.f32 %v461, 0.0
        %v474 = vmax.f32 %v462, 0.0
        %v475 = vmax.f32 %v463, 0.0
        %v476 = vmax.f32 %v464, 0.0
        %485 = vrot.lane.b32.xlu0 %v467, 127
        %v486 = vpop.permute.xlu0 %485
        %487 = vrot.lane.b32.xlu0 %v468, 127
        %v488 = vpop.permute.xlu0 %487
        %489 = vrot.lane.b32.xlu0 %v469, 127
        %v490 = vpop.permute.xlu0 %489
        %491 = vrot.lane.b32.xlu0 %v470, 127
        %v492 = vpop.permute.xlu0 %491
        %493 = vrot.lane.b32.xlu0 %v471, 127
        %v494 = vpop.permute.xlu0 %493
        %495 = vrot.lane.b32.xlu0 %v472, 127
        %v496 = vpop.permute.xlu0 %495
        %497 = vrot.lane.b32.xlu0 %v473, 127
        %v498 = vpop.permute.xlu0 %497
        %499 = vrot.lane.b32.xlu0 %v474, 127
        %v500 = vpop.permute.xlu0 %499
        %vm509 = vcmask 261121
        %510 = vst.msk [vmem:[%s269 - $0x1] sm:$0xfe] %vm509, %v486
        %vm511 = vcmask 253952
        %512 = vst.msk [vmem:[%s269 + $0x7] sm:$0x1] %vm511, %v488
        %513 = vst.msk [vmem:[%s269 + $0x7] sm:$0xfe] %vm509, %v490
        %514 = vst.msk [vmem:[%s269 + $0xf] sm:$0x1] %vm511, %v492
        %515 = vst.msk [vmem:[%s269 + $0xf] sm:$0xfe] %vm509, %v494
        %516 = vst.msk [vmem:[%s269 + $0x17] sm:$0x1] %vm511, %v496
        %517 = vst.msk [vmem:[%s269 + $0x17] sm:$0xfe] %vm509, %v498
        %518 = vst.msk [vmem:[%s269 + $0x1f] sm:$0x1] %vm511, %v500
        %v519 = vmul.f32 %v465, 0.0
        %v520 = vmul.f32 %v466, 0.0
        %v521 = vmul.f32 %v467, %v294
        %v522 = vmul.f32 %v468, %v295
        %v523 = vmul.f32 %v469, %v294
        %v524 = vmul.f32 %v470, %v295
        %v525 = vmul.f32 %v471, %v294
        %v526 = vmul.f32 %v472, %v295
        %v527 = vmul.f32 %v473, %v294
        %v528 = vmul.f32 %v474, %v295
        %v529 = vmul.f32 %v475, 0.0
        %v530 = vmul.f32 %v476, 0.0
        %s531 = sld [smem:[#allocation2 + $0x80]]
        %v532 = vld [vmem:[%s274] sm:$0xff]
        %v533 = vld [vmem:[%s274 + $0x8] sm:$0x3]
        %v534 = vld [vmem:[%s274 + $0x10] sm:$0xff]
        %v535 = vld [vmem:[%s274 + $0x18] sm:$0x3]
        %v536 = vld [vmem:[%s274 + $0x20] sm:$0xff]
        %v537 = vld [vmem:[%s274 + $0x28] sm:$0x3]
        %v538 = vld [vmem:[%s274 + $0x30] sm:$0xff]
        %v539 = vld [vmem:[%s274 + $0x38] sm:$0x3]
        %v540 = vld [vmem:[%s274 + $0x40] sm:$0xff]
        %v541 = vld [vmem:[%s274 + $0x48] sm:$0x3]
        %v542 = vld [vmem:[%s274 + $0x50] sm:$0xff]
        %v543 = vld [vmem:[%s274 + $0x58] sm:$0x3]
        %v544 = vstv %s531
        %v545 = vmul.f32 %v544, %v532
        %v546 = vmul.f32 %v544, %v533
        %v547 = vmul.f32 %v544, %v534
        %v548 = vmul.f32 %v544, %v535
        %v549 = vmul.f32 %v544, %v536
        %v550 = vmul.f32 %v544, %v537
        %v551 = vmul.f32 %v544, %v538
        %v552 = vmul.f32 %v544, %v539
        %v553 = vmul.f32 %v544, %v540
        %v554 = vmul.f32 %v544, %v541
        %v555 = vmul.f32 %v544, %v542
        %v556 = vmul.f32 %v544, %v543
        %v557 = vadd.f32 %v545, 0.0
        %v558 = vadd.f32 %v546, 0.0
        %v559 = vadd.f32 %v547, 0.0
        %v560 = vadd.f32 %v548, 0.0
        %v561 = vadd.f32 %v549, 0.0
        %v562 = vadd.f32 %v550, 0.0
        %v563 = vadd.f32 %v551, 0.0
        %v564 = vadd.f32 %v552, 0.0
        %v565 = vadd.f32 %v553, 0.0
        %v566 = vadd.f32 %v554, 0.0
        %v567 = vadd.f32 %v555, 0.0
        %v568 = vadd.f32 %v556, 0.0
        %s569 = sld [smem:[#allocation2 + $0x81]]
        %v570 = vld [vmem:[%s335] sm:$0xff]
        %v571 = vld [vmem:[%s335 + $0x8] sm:$0x3]
        %v572 = vld [vmem:[%s335 + $0x10] sm:$0xff]
        %v573 = vld [vmem:[%s335 + $0x18] sm:$0x3]
        %v574 = vld [vmem:[%s335 + $0x20] sm:$0xff]
        %v575 = vld [vmem:[%s335 + $0x28] sm:$0x3]
        %v576 = vld [vmem:[%s335 + $0x30] sm:$0xff]
        %v577 = vld [vmem:[%s335 + $0x38] sm:$0x3]
        %v578 = vld [vmem:[%s335 + $0x40] sm:$0xff]
        %v579 = vld [vmem:[%s335 + $0x48] sm:$0x3]
        %v580 = vld [vmem:[%s335 + $0x50] sm:$0xff]
        %v581 = vld [vmem:[%s335 + $0x58] sm:$0x3]
        %v582 = vstv %s569
        %v583 = vmul.f32 %v582, %v570
        %v584 = vmul.f32 %v582, %v571
        %v585 = vmul.f32 %v582, %v572
        %v586 = vmul.f32 %v582, %v573
        %v587 = vmul.f32 %v582, %v574
        %v588 = vmul.f32 %v582, %v575
        %v589 = vmul.f32 %v582, %v576
        %v590 = vmul.f32 %v582, %v577
        %v591 = vmul.f32 %v582, %v578
        %v592 = vmul.f32 %v582, %v579
        %v593 = vmul.f32 %v582, %v580
        %v594 = vmul.f32 %v582, %v581
        %v595 = vadd.f32 %v557, %v583
        %v596 = vadd.f32 %v558, %v584
        %v597 = vadd.f32 %v559, %v585
        %v598 = vadd.f32 %v560, %v586
        %v599 = vadd.f32 %v561, %v587
        %v600 = vadd.f32 %v562, %v588
        %v601 = vadd.f32 %v563, %v589
        %v602 = vadd.f32 %v564, %v590
        %v603 = vadd.f32 %v565, %v591
        %v604 = vadd.f32 %v566, %v592
        %v605 = vadd.f32 %v567, %v593
        %v606 = vadd.f32 %v568, %v594
        %s607 = sld [smem:[#allocation2 + $0x82]]
        %v608 = vld [vmem:[%s374] sm:$0xff]
        %v609 = vld [vmem:[%s374 + $0x8] sm:$0x3]
        %v610 = vld [vmem:[%s374 + $0x10] sm:$0xff]
        %v611 = vld [vmem:[%s374 + $0x18] sm:$0x3]
        %v612 = vld [vmem:[%s374 + $0x20] sm:$0xff]
        %v613 = vld [vmem:[%s374 + $0x28] sm:$0x3]
        %v614 = vld [vmem:[%s374 + $0x30] sm:$0xff]
        %v615 = vld [vmem:[%s374 + $0x38] sm:$0x3]
        %v616 = vld [vmem:[%s374 + $0x40] sm:$0xff]
        %v617 = vld [vmem:[%s374 + $0x48] sm:$0x3]
        %v618 = vld [vmem:[%s374 + $0x50] sm:$0xff]
        %v619 = vld [vmem:[%s374 + $0x58] sm:$0x3]
        %v620 = vstv %s607
        %v621 = vmul.f32 %v620, %v608
        %v622 = vmul.f32 %v620, %v609
        %v623 = vmul.f32 %v620, %v610
        %v624 = vmul.f32 %v620, %v611
        %v625 = vmul.f32 %v620, %v612
        %v626 = vmul.f32 %v620, %v613
        %v627 = vmul.f32 %v620, %v614
        %v628 = vmul.f32 %v620, %v615
        %v629 = vmul.f32 %v620, %v616
        %v630 = vmul.f32 %v620, %v617
        %v631 = vmul.f32 %v620, %v618
        %v632 = vmul.f32 %v620, %v619
        %v633 = vadd.f32 %v595, %v621
        %v634 = vadd.f32 %v596, %v622
        %v635 = vadd.f32 %v597, %v623
        %v636 = vadd.f32 %v598, %v624
        %v637 = vadd.f32 %v599, %v625
        %v638 = vadd.f32 %v600, %v626
        %v639 = vadd.f32 %v601, %v627
        %v640 = vadd.f32 %v602, %v628
        %v641 = vadd.f32 %v603, %v629
        %v642 = vadd.f32 %v604, %v630
        %v643 = vadd.f32 %v605, %v631
        %v644 = vadd.f32 %v606, %v632
        %s645 = sld [smem:[#allocation2 + $0x83]]
        %v646 = vld [vmem:[%s413] sm:$0xff]
        %v647 = vld [vmem:[%s413 + $0x8] sm:$0x3]
        %v648 = vld [vmem:[%s413 + $0x10] sm:$0xff]
        %v649 = vld [vmem:[%s413 + $0x18] sm:$0x3]
        %v650 = vld [vmem:[%s413 + $0x20] sm:$0xff]
        %v651 = vld [vmem:[%s413 + $0x28] sm:$0x3]
        %v652 = vld [vmem:[%s413 + $0x30] sm:$0xff]
        %v653 = vld [vmem:[%s413 + $0x38] sm:$0x3]
        %v654 = vld [vmem:[%s413 + $0x40] sm:$0xff]
        %v655 = vld [vmem:[%s413 + $0x48] sm:$0x3]
        %v656 = vld [vmem:[%s413 + $0x50] sm:$0xff]
        %v657 = vld [vmem:[%s413 + $0x58] sm:$0x3]
        %v658 = vstv %s645
        %v659 = vmul.f32 %v658, %v646
        %v660 = vmul.f32 %v658, %v647
        %v661 = vmul.f32 %v658, %v648
        %v662 = vmul.f32 %v658, %v649
        %v663 = vmul.f32 %v658, %v650
        %v664 = vmul.f32 %v658, %v651
        %v665 = vmul.f32 %v658, %v652
        %v666 = vmul.f32 %v658, %v653
        %v667 = vmul.f32 %v658, %v654
        %v668 = vmul.f32 %v658, %v655
        %v669 = vmul.f32 %v658, %v656
        %v670 = vmul.f32 %v658, %v657
        %v671 = vadd.f32 %v633, %v659
        %v672 = vadd.f32 %v634, %v660
        %v673 = vadd.f32 %v635, %v661
        %v674 = vadd.f32 %v636, %v662
        %v675 = vadd.f32 %v637, %v663
        %v676 = vadd.f32 %v638, %v664
        %v677 = vadd.f32 %v639, %v665
        %v678 = vadd.f32 %v640, %v666
        %v679 = vadd.f32 %v641, %v667
        %v680 = vadd.f32 %v642, %v668
        %v681 = vadd.f32 %v643, %v669
        %v682 = vadd.f32 %v644, %v670
        %s683 = sld [smem:[#allocation5 + $0x1]]
        %v684 = vstv %s683
        %v685 = vadd.f32 %v671, %v684
        %v686 = vadd.f32 %v672, %v684
        %v687 = vadd.f32 %v673, %v684
        %v688 = vadd.f32 %v674, %v684
        %v689 = vadd.f32 %v675, %v684
        %v690 = vadd.f32 %v676, %v684
        %v691 = vadd.f32 %v677, %v684
        %v692 = vadd.f32 %v678, %v684
        %v693 = vadd.f32 %v679, %v684
        %v694 = vadd.f32 %v680, %v684
        %v695 = vadd.f32 %v681, %v684
        %v696 = vadd.f32 %v682, %v684
        %v697 = vmax.f32 %v685, 0.0
        %v698 = vmax.f32 %v686, 0.0
        %v699 = vmax.f32 %v687, 0.0
        %v700 = vmax.f32 %v688, 0.0
        %v701 = vmax.f32 %v689, 0.0
        %v702 = vmax.f32 %v690, 0.0
        %v703 = vmax.f32 %v691, 0.0
        %v704 = vmax.f32 %v692, 0.0
        %v705 = vmax.f32 %v693, 0.0
        %v706 = vmax.f32 %v694, 0.0
        %v707 = vmax.f32 %v695, 0.0
        %v708 = vmax.f32 %v696, 0.0
        %717 = vrot.lane.b32.xlu0 %v699, 127
        %v718 = vpop.permute.xlu0 %717
        %719 = vrot.lane.b32.xlu0 %v700, 127
        %v720 = vpop.permute.xlu0 %719
        %721 = vrot.lane.b32.xlu0 %v701, 127
        %v722 = vpop.permute.xlu0 %721
        %723 = vrot.lane.b32.xlu0 %v702, 127
        %v724 = vpop.permute.xlu0 %723
        %725 = vrot.lane.b32.xlu0 %v703, 127
        %v726 = vpop.permute.xlu0 %725
        %727 = vrot.lane.b32.xlu0 %v704, 127
        %v728 = vpop.permute.xlu0 %727
        %729 = vrot.lane.b32.xlu0 %v705, 127
        %v730 = vpop.permute.xlu0 %729
        %731 = vrot.lane.b32.xlu0 %v706, 127
        %v732 = vpop.permute.xlu0 %731
        %s741 = scalar_lea.vmem %s269, 32 [#allocation10]
        %742 = vst.msk [vmem:[%s741 - $0x1] sm:$0xfe] %vm509, %v718
        %743 = vst.msk [vmem:[%s741 + $0x7] sm:$0x1] %vm511, %v720
        %744 = vst.msk [vmem:[%s741 + $0x7] sm:$0xfe] %vm509, %v722
        %745 = vst.msk [vmem:[%s741 + $0xf] sm:$0x1] %vm511, %v724
        %746 = vst.msk [vmem:[%s741 + $0xf] sm:$0xfe] %vm509, %v726
        %747 = vst.msk [vmem:[%s741 + $0x17] sm:$0x1] %vm511, %v728
        %748 = vst.msk [vmem:[%s741 + $0x17] sm:$0xfe] %vm509, %v730
        %749 = vst.msk [vmem:[%s741 + $0x1f] sm:$0x1] %vm511, %v732
        %v750 = vmul.f32 %v697, 0.0
        %v751 = vmul.f32 %v698, 0.0
        %v752 = vmul.f32 %v699, %v294
        %v753 = vmul.f32 %v700, %v295
        %v754 = vmul.f32 %v701, %v294
        %v755 = vmul.f32 %v702, %v295
        %v756 = vmul.f32 %v703, %v294
        %v757 = vmul.f32 %v704, %v295
        %v758 = vmul.f32 %v705, %v294
        %v759 = vmul.f32 %v706, %v295
        %v760 = vmul.f32 %v707, 0.0
        %v761 = vmul.f32 %v708, 0.0
        %s762 = sld [smem:[#allocation2 + $0x100]]
        %v763 = vld [vmem:[%s274] sm:$0xff]
        %v764 = vld [vmem:[%s274 + $0x8] sm:$0x3]
        %v765 = vld [vmem:[%s274 + $0x10] sm:$0xff]
        %v766 = vld [vmem:[%s274 + $0x18] sm:$0x3]
        %v767 = vld [vmem:[%s274 + $0x20] sm:$0xff]
        %v768 = vld [vmem:[%s274 + $0x28] sm:$0x3]
        %v769 = vld [vmem:[%s274 + $0x30] sm:$0xff]
        %v770 = vld [vmem:[%s274 + $0x38] sm:$0x3]
        %v771 = vld [vmem:[%s274 + $0x40] sm:$0xff]
        %v772 = vld [vmem:[%s274 + $0x48] sm:$0x3]
        %v773 = vld [vmem:[%s274 + $0x50] sm:$0xff]
        %v774 = vld [vmem:[%s274 + $0x58] sm:$0x3]
        %v775 = vstv %s762
        %v776 = vmul.f32 %v775, %v763
        %v777 = vmul.f32 %v775, %v764
        %v778 = vmul.f32 %v775, %v765
        %v779 = vmul.f32 %v775, %v766
        %v780 = vmul.f32 %v775, %v767
        %v781 = vmul.f32 %v775, %v768
        %v782 = vmul.f32 %v775, %v769
        %v783 = vmul.f32 %v775, %v770
        %v784 = vmul.f32 %v775, %v771
        %v785 = vmul.f32 %v775, %v772
        %v786 = vmul.f32 %v775, %v773
        %v787 = vmul.f32 %v775, %v774
        %v788 = vadd.f32 %v776, 0.0
        %v789 = vadd.f32 %v777, 0.0
        %v790 = vadd.f32 %v778, 0.0
        %v791 = vadd.f32 %v779, 0.0
        %v792 = vadd.f32 %v780, 0.0
        %v793 = vadd.f32 %v781, 0.0
        %v794 = vadd.f32 %v782, 0.0
        %v795 = vadd.f32 %v783, 0.0
        %v796 = vadd.f32 %v784, 0.0
        %v797 = vadd.f32 %v785, 0.0
        %v798 = vadd.f32 %v786, 0.0
        %v799 = vadd.f32 %v787, 0.0
        %s800 = sld [smem:[#allocation2 + $0x101]]
        %v801 = vld [vmem:[%s335] sm:$0xff]
        %v802 = vld [vmem:[%s335 + $0x8] sm:$0x3]
        %v803 = vld [vmem:[%s335 + $0x10] sm:$0xff]
        %v804 = vld [vmem:[%s335 + $0x18] sm:$0x3]
        %v805 = vld [vmem:[%s335 + $0x20] sm:$0xff]
        %v806 = vld [vmem:[%s335 + $0x28] sm:$0x3]
        %v807 = vld [vmem:[%s335 + $0x30] sm:$0xff]
        %v808 = vld [vmem:[%s335 + $0x38] sm:$0x3]
        %v809 = vld [vmem:[%s335 + $0x40] sm:$0xff]
        %v810 = vld [vmem:[%s335 + $0x48] sm:$0x3]
        %v811 = vld [vmem:[%s335 + $0x50] sm:$0xff]
        %v812 = vld [vmem:[%s335 + $0x58] sm:$0x3]
        %v813 = vstv %s800
        %v814 = vmul.f32 %v813, %v801
        %v815 = vmul.f32 %v813, %v802
        %v816 = vmul.f32 %v813, %v803
        %v817 = vmul.f32 %v813, %v804
        %v818 = vmul.f32 %v813, %v805
        %v819 = vmul.f32 %v813, %v806
        %v820 = vmul.f32 %v813, %v807
        %v821 = vmul.f32 %v813, %v808
        %v822 = vmul.f32 %v813, %v809
        %v823 = vmul.f32 %v813, %v810
        %v824 = vmul.f32 %v813, %v811
        %v825 = vmul.f32 %v813, %v812
        %v826 = vadd.f32 %v788, %v814
        %v827 = vadd.f32 %v789, %v815
        %v828 = vadd.f32 %v790, %v816
        %v829 = vadd.f32 %v791, %v817
        %v830 = vadd.f32 %v792, %v818
        %v831 = vadd.f32 %v793, %v819
        %v832 = vadd.f32 %v794, %v820
        %v833 = vadd.f32 %v795, %v821
        %v834 = vadd.f32 %v796, %v822
        %v835 = vadd.f32 %v797, %v823
        %v836 = vadd.f32 %v798, %v824
        %v837 = vadd.f32 %v799, %v825
        %s838 = sld [smem:[#allocation2 + $0x102]]
        %v839 = vld [vmem:[%s374] sm:$0xff]
        %v840 = vld [vmem:[%s374 + $0x8] sm:$0x3]
        %v841 = vld [vmem:[%s374 + $0x10] sm:$0xff]
        %v842 = vld [vmem:[%s374 + $0x18] sm:$0x3]
        %v843 = vld [vmem:[%s374 + $0x20] sm:$0xff]
        %v844 = vld [vmem:[%s374 + $0x28] sm:$0x3]
        %v845 = vld [vmem:[%s374 + $0x30] sm:$0xff]
        %v846 = vld [vmem:[%s374 + $0x38] sm:$0x3]
        %v847 = vld [vmem:[%s374 + $0x40] sm:$0xff]
        %v848 = vld [vmem:[%s374 + $0x48] sm:$0x3]
        %v849 = vld [vmem:[%s374 + $0x50] sm:$0xff]
        %v850 = vld [vmem:[%s374 + $0x58] sm:$0x3]
        %v851 = vstv %s838
        %v852 = vmul.f32 %v851, %v839
        %v853 = vmul.f32 %v851, %v840
        %v854 = vmul.f32 %v851, %v841
        %v855 = vmul.f32 %v851, %v842
        %v856 = vmul.f32 %v851, %v843
        %v857 = vmul.f32 %v851, %v844
        %v858 = vmul.f32 %v851, %v845
        %v859 = vmul.f32 %v851, %v846
        %v860 = vmul.f32 %v851, %v847
        %v861 = vmul.f32 %v851, %v848
        %v862 = vmul.f32 %v851, %v849
        %v863 = vmul.f32 %v851, %v850
        %v864 = vadd.f32 %v826, %v852
        %v865 = vadd.f32 %v827, %v853
        %v866 = vadd.f32 %v828, %v854
        %v867 = vadd.f32 %v829, %v855
        %v868 = vadd.f32 %v830, %v856
        %v869 = vadd.f32 %v831, %v857
        %v870 = vadd.f32 %v832, %v858
        %v871 = vadd.f32 %v833, %v859
        %v872 = vadd.f32 %v834, %v860
        %v873 = vadd.f32 %v835, %v861
        %v874 = vadd.f32 %v836, %v862
        %v875 = vadd.f32 %v837, %v863
        %s876 = sld [smem:[#allocation2 + $0x103]]
        %v877 = vld [vmem:[%s413] sm:$0xff]
        %v878 = vld [vmem:[%s413 + $0x8] sm:$0x3]
        %v879 = vld [vmem:[%s413 + $0x10] sm:$0xff]
        %v880 = vld [vmem:[%s413 + $0x18] sm:$0x3]
        %v881 = vld [vmem:[%s413 + $0x20] sm:$0xff]
        %v882 = vld [vmem:[%s413 + $0x28] sm:$0x3]
        %v883 = vld [vmem:[%s413 + $0x30] sm:$0xff]
        %v884 = vld [vmem:[%s413 + $0x38] sm:$0x3]
        %v885 = vld [vmem:[%s413 + $0x40] sm:$0xff]
        %v886 = vld [vmem:[%s413 + $0x48] sm:$0x3]
        %v887 = vld [vmem:[%s413 + $0x50] sm:$0xff]
        %v888 = vld [vmem:[%s413 + $0x58] sm:$0x3]
        %v889 = vstv %s876
        %v890 = vmul.f32 %v889, %v877
        %v891 = vmul.f32 %v889, %v878
        %v892 = vmul.f32 %v889, %v879
        %v893 = vmul.f32 %v889, %v880
        %v894 = vmul.f32 %v889, %v881
        %v895 = vmul.f32 %v889, %v882
        %v896 = vmul.f32 %v889, %v883
        %v897 = vmul.f32 %v889, %v884
        %v898 = vmul.f32 %v889, %v885
        %v899 = vmul.f32 %v889, %v886
        %v900 = vmul.f32 %v889, %v887
        %v901 = vmul.f32 %v889, %v888
        %v902 = vadd.f32 %v864, %v890
        %v903 = vadd.f32 %v865, %v891
        %v904 = vadd.f32 %v866, %v892
        %v905 = vadd.f32 %v867, %v893
        %v906 = vadd.f32 %v868, %v894
        %v907 = vadd.f32 %v869, %v895
        %v908 = vadd.f32 %v870, %v896
        %v909 = vadd.f32 %v871, %v897
        %v910 = vadd.f32 %v872, %v898
        %v911 = vadd.f32 %v873, %v899
        %v912 = vadd.f32 %v874, %v900
        %v913 = vadd.f32 %v875, %v901
        %s914 = sld [smem:[#allocation5 + $0x2]]
        %v915 = vstv %s914
        %v916 = vadd.f32 %v902, %v915
        %v917 = vadd.f32 %v903, %v915
        %v918 = vadd.f32 %v904, %v915
        %v919 = vadd.f32 %v905, %v915
        %v920 = vadd.f32 %v906, %v915
        %v921 = vadd.f32 %v907, %v915
        %v922 = vadd.f32 %v908, %v915
        %v923 = vadd.f32 %v909, %v915
        %v924 = vadd.f32 %v910, %v915
        %v925 = vadd.f32 %v911, %v915
        %v926 = vadd.f32 %v912, %v915
        %v927 = vadd.f32 %v913, %v915
        %v928 = vmax.f32 %v916, 0.0
        %v929 = vmax.f32 %v917, 0.0
        %v930 = vmax.f32 %v918, 0.0
        %v931 = vmax.f32 %v919, 0.0
        %v932 = vmax.f32 %v920, 0.0
        %v933 = vmax.f32 %v921, 0.0
        %v934 = vmax.f32 %v922, 0.0
        %v935 = vmax.f32 %v923, 0.0
        %v936 = vmax.f32 %v924, 0.0
        %v937 = vmax.f32 %v925, 0.0
        %v938 = vmax.f32 %v926, 0.0
        %v939 = vmax.f32 %v927, 0.0
        %948 = vrot.lane.b32.xlu0 %v930, 127
        %v949 = vpop.permute.xlu0 %948
        %950 = vrot.lane.b32.xlu0 %v931, 127
        %v951 = vpop.permute.xlu0 %950
        %952 = vrot.lane.b32.xlu0 %v932, 127
        %v953 = vpop.permute.xlu0 %952
        %954 = vrot.lane.b32.xlu0 %v933, 127
        %v955 = vpop.permute.xlu0 %954
        %956 = vrot.lane.b32.xlu0 %v934, 127
        %v957 = vpop.permute.xlu0 %956
        %958 = vrot.lane.b32.xlu0 %v935, 127
        %v959 = vpop.permute.xlu0 %958
        %960 = vrot.lane.b32.xlu0 %v936, 127
        %v961 = vpop.permute.xlu0 %960
        %962 = vrot.lane.b32.xlu0 %v937, 127
        %v963 = vpop.permute.xlu0 %962
        %s972 = scalar_lea.vmem %s269, 64 [#allocation10]
        %973 = vst.msk [vmem:[%s972 - $0x1] sm:$0xfe] %vm509, %v949
        %974 = vst.msk [vmem:[%s972 + $0x7] sm:$0x1] %vm511, %v951
        %975 = vst.msk [vmem:[%s972 + $0x7] sm:$0xfe] %vm509, %v953
        %976 = vst.msk [vmem:[%s972 + $0xf] sm:$0x1] %vm511, %v955
        %977 = vst.msk [vmem:[%s972 + $0xf] sm:$0xfe] %vm509, %v957
        %978 = vst.msk [vmem:[%s972 + $0x17] sm:$0x1] %vm511, %v959
        %979 = vst.msk [vmem:[%s972 + $0x17] sm:$0xfe] %vm509, %v961
        %980 = vst.msk [vmem:[%s972 + $0x1f] sm:$0x1] %vm511, %v963
        %v981 = vmul.f32 %v928, 0.0
        %v982 = vmul.f32 %v929, 0.0
        %v983 = vmul.f32 %v930, %v294
        %v984 = vmul.f32 %v931, %v295
        %v985 = vmul.f32 %v932, %v294
        %v986 = vmul.f32 %v933, %v295
        %v987 = vmul.f32 %v934, %v294
        %v988 = vmul.f32 %v935, %v295
        %v989 = vmul.f32 %v936, %v294
        %v990 = vmul.f32 %v937, %v295
        %v991 = vmul.f32 %v938, 0.0
        %v992 = vmul.f32 %v939, 0.0
        %s993 = sld [smem:[#allocation2 + $0x180]]
        %v994 = vld [vmem:[%s274] sm:$0xff]
        %v995 = vld [vmem:[%s274 + $0x8] sm:$0x3]
        %v996 = vld [vmem:[%s274 + $0x10] sm:$0xff]
        %v997 = vld [vmem:[%s274 + $0x18] sm:$0x3]
        %v998 = vld [vmem:[%s274 + $0x20] sm:$0xff]
        %v999 = vld [vmem:[%s274 + $0x28] sm:$0x3]
        %v1000 = vld [vmem:[%s274 + $0x30] sm:$0xff]
        %v1001 = vld [vmem:[%s274 + $0x38] sm:$0x3]
        %v1002 = vld [vmem:[%s274 + $0x40] sm:$0xff]
        %v1003 = vld [vmem:[%s274 + $0x48] sm:$0x3]
        %v1004 = vld [vmem:[%s274 + $0x50] sm:$0xff]
        %v1005 = vld [vmem:[%s274 + $0x58] sm:$0x3]
        %v1006 = vstv %s993
        %v1007 = vmul.f32 %v1006, %v994
        %v1008 = vmul.f32 %v1006, %v995
        %v1009 = vmul.f32 %v1006, %v996
        %v1010 = vmul.f32 %v1006, %v997
        %v1011 = vmul.f32 %v1006, %v998
        %v1012 = vmul.f32 %v1006, %v999
        %v1013 = vmul.f32 %v1006, %v1000
        %v1014 = vmul.f32 %v1006, %v1001
        %v1015 = vmul.f32 %v1006, %v1002
        %v1016 = vmul.f32 %v1006, %v1003
        %v1017 = vmul.f32 %v1006, %v1004
        %v1018 = vmul.f32 %v1006, %v1005
        %v1019 = vadd.f32 %v1007, 0.0
        %v1020 = vadd.f32 %v1008, 0.0
        %v1021 = vadd.f32 %v1009, 0.0
        %v1022 = vadd.f32 %v1010, 0.0
        %v1023 = vadd.f32 %v1011, 0.0
        %v1024 = vadd.f32 %v1012, 0.0
        %v1025 = vadd.f32 %v1013, 0.0
        %v1026 = vadd.f32 %v1014, 0.0
        %v1027 = vadd.f32 %v1015, 0.0
        %v1028 = vadd.f32 %v1016, 0.0
        %v1029 = vadd.f32 %v1017, 0.0
        %v1030 = vadd.f32 %v1018, 0.0
        %s1031 = sld [smem:[#allocation2 + $0x181]]
        %v1032 = vld [vmem:[%s335] sm:$0xff]
        %v1033 = vld [vmem:[%s335 + $0x8] sm:$0x3]
        %v1034 = vld [vmem:[%s335 + $0x10] sm:$0xff]
        %v1035 = vld [vmem:[%s335 + $0x18] sm:$0x3]
        %v1036 = vld [vmem:[%s335 + $0x20] sm:$0xff]
        %v1037 = vld [vmem:[%s335 + $0x28] sm:$0x3]
        %v1038 = vld [vmem:[%s335 + $0x30] sm:$0xff]
        %v1039 = vld [vmem:[%s335 + $0x38] sm:$0x3]
        %v1040 = vld [vmem:[%s335 + $0x40] sm:$0xff]
        %v1041 = vld [vmem:[%s335 + $0x48] sm:$0x3]
        %v1042 = vld [vmem:[%s335 + $0x50] sm:$0xff]
        %v1043 = vld [vmem:[%s335 + $0x58] sm:$0x3]
        %v1044 = vstv %s1031
        %v1045 = vmul.f32 %v1044, %v1032
        %v1046 = vmul.f32 %v1044, %v1033
        %v1047 = vmul.f32 %v1044, %v1034
        %v1048 = vmul.f32 %v1044, %v1035
        %v1049 = vmul.f32 %v1044, %v1036
        %v1050 = vmul.f32 %v1044, %v1037
        %v1051 = vmul.f32 %v1044, %v1038
        %v1052 = vmul.f32 %v1044, %v1039
        %v1053 = vmul.f32 %v1044, %v1040
        %v1054 = vmul.f32 %v1044, %v1041
        %v1055 = vmul.f32 %v1044, %v1042
        %v1056 = vmul.f32 %v1044, %v1043
        %v1057 = vadd.f32 %v1019, %v1045
        %v1058 = vadd.f32 %v1020, %v1046
        %v1059 = vadd.f32 %v1021, %v1047
        %v1060 = vadd.f32 %v1022, %v1048
        %v1061 = vadd.f32 %v1023, %v1049
        %v1062 = vadd.f32 %v1024, %v1050
        %v1063 = vadd.f32 %v1025, %v1051
        %v1064 = vadd.f32 %v1026, %v1052
        %v1065 = vadd.f32 %v1027, %v1053
        %v1066 = vadd.f32 %v1028, %v1054
        %v1067 = vadd.f32 %v1029, %v1055
        %v1068 = vadd.f32 %v1030, %v1056
        %s1069 = sld [smem:[#allocation2 + $0x182]]
        %v1070 = vld [vmem:[%s374] sm:$0xff]
        %v1071 = vld [vmem:[%s374 + $0x8] sm:$0x3]
        %v1072 = vld [vmem:[%s374 + $0x10] sm:$0xff]
        %v1073 = vld [vmem:[%s374 + $0x18] sm:$0x3]
        %v1074 = vld [vmem:[%s374 + $0x20] sm:$0xff]
        %v1075 = vld [vmem:[%s374 + $0x28] sm:$0x3]
        %v1076 = vld [vmem:[%s374 + $0x30] sm:$0xff]
        %v1077 = vld [vmem:[%s374 + $0x38] sm:$0x3]
        %v1078 = vld [vmem:[%s374 + $0x40] sm:$0xff]
        %v1079 = vld [vmem:[%s374 + $0x48] sm:$0x3]
        %v1080 = vld [vmem:[%s374 + $0x50] sm:$0xff]
        %v1081 = vld [vmem:[%s374 + $0x58] sm:$0x3]
        %v1082 = vstv %s1069
        %v1083 = vmul.f32 %v1082, %v1070
        %v1084 = vmul.f32 %v1082, %v1071
        %v1085 = vmul.f32 %v1082, %v1072
        %v1086 = vmul.f32 %v1082, %v1073
        %v1087 = vmul.f32 %v1082, %v1074
        %v1088 = vmul.f32 %v1082, %v1075
        %v1089 = vmul.f32 %v1082, %v1076
        %v1090 = vmul.f32 %v1082, %v1077
        %v1091 = vmul.f32 %v1082, %v1078
        %v1092 = vmul.f32 %v1082, %v1079
        %v1093 = vmul.f32 %v1082, %v1080
        %v1094 = vmul.f32 %v1082, %v1081
        %v1095 = vadd.f32 %v1057, %v1083
        %v1096 = vadd.f32 %v1058, %v1084
        %v1097 = vadd.f32 %v1059, %v1085
        %v1098 = vadd.f32 %v1060, %v1086
        %v1099 = vadd.f32 %v1061, %v1087
        %v1100 = vadd.f32 %v1062, %v1088
        %v1101 = vadd.f32 %v1063, %v1089
        %v1102 = vadd.f32 %v1064, %v1090
        %v1103 = vadd.f32 %v1065, %v1091
        %v1104 = vadd.f32 %v1066, %v1092
        %v1105 = vadd.f32 %v1067, %v1093
        %v1106 = vadd.f32 %v1068, %v1094
        %s1107 = sld [smem:[#allocation2 + $0x183]]
        %v1108 = vld [vmem:[%s413] sm:$0xff]
        %v1109 = vld [vmem:[%s413 + $0x8] sm:$0x3]
        %v1110 = vld [vmem:[%s413 + $0x10] sm:$0xff]
        %v1111 = vld [vmem:[%s413 + $0x18] sm:$0x3]
        %v1112 = vld [vmem:[%s413 + $0x20] sm:$0xff]
        %v1113 = vld [vmem:[%s413 + $0x28] sm:$0x3]
        %v1114 = vld [vmem:[%s413 + $0x30] sm:$0xff]
        %v1115 = vld [vmem:[%s413 + $0x38] sm:$0x3]
        %v1116 = vld [vmem:[%s413 + $0x40] sm:$0xff]
        %v1117 = vld [vmem:[%s413 + $0x48] sm:$0x3]
        %v1118 = vld [vmem:[%s413 + $0x50] sm:$0xff]
        %v1119 = vld [vmem:[%s413 + $0x58] sm:$0x3]
        %v1120 = vstv %s1107
        %v1121 = vmul.f32 %v1120, %v1108
        %v1122 = vmul.f32 %v1120, %v1109
        %v1123 = vmul.f32 %v1120, %v1110
        %v1124 = vmul.f32 %v1120, %v1111
        %v1125 = vmul.f32 %v1120, %v1112
        %v1126 = vmul.f32 %v1120, %v1113
        %v1127 = vmul.f32 %v1120, %v1114
        %v1128 = vmul.f32 %v1120, %v1115
        %v1129 = vmul.f32 %v1120, %v1116
        %v1130 = vmul.f32 %v1120, %v1117
        %v1131 = vmul.f32 %v1120, %v1118
        %v1132 = vmul.f32 %v1120, %v1119
        %v1133 = vadd.f32 %v1095, %v1121
        %v1134 = vadd.f32 %v1096, %v1122
        %v1135 = vadd.f32 %v1097, %v1123
        %v1136 = vadd.f32 %v1098, %v1124
        %v1137 = vadd.f32 %v1099, %v1125
        %v1138 = vadd.f32 %v1100, %v1126
        %v1139 = vadd.f32 %v1101, %v1127
        %v1140 = vadd.f32 %v1102, %v1128
        %v1141 = vadd.f32 %v1103, %v1129
        %v1142 = vadd.f32 %v1104, %v1130
        %v1143 = vadd.f32 %v1105, %v1131
        %v1144 = vadd.f32 %v1106, %v1132
        %s1145 = sld [smem:[#allocation5 + $0x3]]
        %v1146 = vstv %s1145
        %v1147 = vadd.f32 %v1133, %v1146
        %v1148 = vadd.f32 %v1134, %v1146
        %v1149 = vadd.f32 %v1135, %v1146
        %v1150 = vadd.f32 %v1136, %v1146
        %v1151 = vadd.f32 %v1137, %v1146
        %v1152 = vadd.f32 %v1138, %v1146
        %v1153 = vadd.f32 %v1139, %v1146
        %v1154 = vadd.f32 %v1140, %v1146
        %v1155 = vadd.f32 %v1141, %v1146
        %v1156 = vadd.f32 %v1142, %v1146
        %v1157 = vadd.f32 %v1143, %v1146
        %v1158 = vadd.f32 %v1144, %v1146
        %v1159 = vmax.f32 %v1147, 0.0
        %v1160 = vmax.f32 %v1148, 0.0
        %v1161 = vmax.f32 %v1149, 0.0
        %v1162 = vmax.f32 %v1150, 0.0
        %v1163 = vmax.f32 %v1151, 0.0
        %v1164 = vmax.f32 %v1152, 0.0
        %v1165 = vmax.f32 %v1153, 0.0
        %v1166 = vmax.f32 %v1154, 0.0
        %v1167 = vmax.f32 %v1155, 0.0
        %v1168 = vmax.f32 %v1156, 0.0
        %v1169 = vmax.f32 %v1157, 0.0
        %v1170 = vmax.f32 %v1158, 0.0
        %1179 = vrot.lane.b32.xlu0 %v1161, 127
        %v1180 = vpop.permute.xlu0 %1179
        %1181 = vrot.lane.b32.xlu0 %v1162, 127
        %v1182 = vpop.permute.xlu0 %1181
        %1183 = vrot.lane.b32.xlu0 %v1163, 127
        %v1184 = vpop.permute.xlu0 %1183
        %1185 = vrot.lane.b32.xlu0 %v1164, 127
        %v1186 = vpop.permute.xlu0 %1185
        %1187 = vrot.lane.b32.xlu0 %v1165, 127
        %v1188 = vpop.permute.xlu0 %1187
        %1189 = vrot.lane.b32.xlu0 %v1166, 127
        %v1190 = vpop.permute.xlu0 %1189
        %1191 = vrot.lane.b32.xlu0 %v1167, 127
        %v1192 = vpop.permute.xlu0 %1191
        %1193 = vrot.lane.b32.xlu0 %v1168, 127
        %v1194 = vpop.permute.xlu0 %1193
        %s1203 = scalar_lea.vmem %s269, 96 [#allocation10]
        %1204 = vst.msk [vmem:[%s1203 - $0x1] sm:$0xfe] %vm509, %v1180
        %1205 = vst.msk [vmem:[%s1203 + $0x7] sm:$0x1] %vm511, %v1182
        %1206 = vst.msk [vmem:[%s1203 + $0x7] sm:$0xfe] %vm509, %v1184
        %1207 = vst.msk [vmem:[%s1203 + $0xf] sm:$0x1] %vm511, %v1186
        %1208 = vst.msk [vmem:[%s1203 + $0xf] sm:$0xfe] %vm509, %v1188
        %1209 = vst.msk [vmem:[%s1203 + $0x17] sm:$0x1] %vm511, %v1190
        %1210 = vst.msk [vmem:[%s1203 + $0x17] sm:$0xfe] %vm509, %v1192
        %1211 = vst.msk [vmem:[%s1203 + $0x1f] sm:$0x1] %vm511, %v1194
        %v1212 = vmul.f32 %v1159, 0.0
        %v1213 = vmul.f32 %v1160, 0.0
        %v1214 = vmul.f32 %v1161, %v294
        %v1215 = vmul.f32 %v1162, %v295
        %v1216 = vmul.f32 %v1163, %v294
        %v1217 = vmul.f32 %v1164, %v295
        %v1218 = vmul.f32 %v1165, %v294
        %v1219 = vmul.f32 %v1166, %v295
        %v1220 = vmul.f32 %v1167, %v294
        %v1221 = vmul.f32 %v1168, %v295
        %v1222 = vmul.f32 %v1169, 0.0
        %v1223 = vmul.f32 %v1170, 0.0
        %s1224 = sld [smem:[#allocation7]]
        %v1225 = vstv %s1224
        %v1226 = vmul.f32 %v1225, %v519
        %v1227 = vmul.f32 %v1225, %v521
        %v1228 = vmul.f32 %v1225, %v523
        %v1229 = vmul.f32 %v1225, %v525
        %v1230 = vadd.f32 %v1226, 0.0
        %v1231 = vadd.f32 %v1227, 0.0
        %v1232 = vadd.f32 %v1228, 0.0
        %v1233 = vadd.f32 %v1229, 0.0
        %s1234 = sld [smem:[#allocation7 + $0x1]]
        %v1235 = vstv %s1234
        %v1236 = vmul.f32 %v1235, %v519
        %v1237 = vmul.f32 %v1235, %v521
        %v1238 = vmul.f32 %v1235, %v523
        %v1239 = vmul.f32 %v1235, %v525
        %1244 = vrot.lane.b32.xlu0 %v1236, 127
        %v1245 = vpop.permute.xlu0 %1244
        %1246 = vrot.lane.b32.xlu0 %v1237, 127
        %v1247 = vpop.permute.xlu0 %1246
        %1248 = vrot.lane.b32.xlu0 %v1238, 127
        %v1249 = vpop.permute.xlu0 %1248
        %1250 = vrot.lane.b32.xlu0 %v1239, 127
        %v1251 = vpop.permute.xlu0 %1250
        %v1256 = vadd.f32 %v1230, %v1245
        %v1257 = vadd.f32 %v1231, %v1247
        %v1258 = vadd.f32 %v1232, %v1249
        %v1259 = vadd.f32 %v1233, %v1251
        %s1260 = sld [smem:[#allocation7 + $0x2]]
        %v1261 = vstv %s1260
        %v1262 = vmul.f32 %v1261, %v519
        %v1263 = vmul.f32 %v1261, %v521
        %v1264 = vmul.f32 %v1261, %v523
        %v1265 = vmul.f32 %v1261, %v525
        %1270 = vrot.lane.b32.xlu0 %v1262, 126
        %v1271 = vpop.permute.xlu0 %1270
        %1272 = vrot.lane.b32.xlu0 %v1263, 126
        %v1273 = vpop.permute.xlu0 %1272
        %1274 = vrot.lane.b32.xlu0 %v1264, 126
        %v1275 = vpop.permute.xlu0 %1274
        %1276 = vrot.lane.b32.xlu0 %v1265, 126
        %v1277 = vpop.permute.xlu0 %1276
        %v1282 = vadd.f32 %v1256, %v1271
        %v1283 = vadd.f32 %v1257, %v1273
        %v1284 = vadd.f32 %v1258, %v1275
        %v1285 = vadd.f32 %v1259, %v1277
        %s1286 = sld [smem:[#allocation7 + $0x3]]
        %v1287 = vstv %s1286
        %v1288 = vmul.f32 %v1287, %v519
        %v1289 = vmul.f32 %v1287, %v520
        %v1290 = vmul.f32 %v1287, %v521
        %v1291 = vmul.f32 %v1287, %v522
        %v1292 = vmul.f32 %v1287, %v523
        %v1293 = vmul.f32 %v1287, %v524
        %v1294 = vmul.f32 %v1287, %v525
        %v1295 = vmul.f32 %v1287, %v526
        %vm1304 = vcmask 1046528
        %v1305 = vrot.slane %v1288, 1
        %v1306 = vrot.slane %v1289, 1
        %v1307 = vsel %vm1304, %v1305, %v1306
        %v1308 = vrot.slane %v1290, 1
        %v1309 = vrot.slane %v1291, 1
        %v1310 = vsel %vm1304, %v1308, %v1309
        %v1311 = vrot.slane %v1292, 1
        %v1312 = vrot.slane %v1293, 1
        %v1313 = vsel %vm1304, %v1311, %v1312
        %v1314 = vrot.slane %v1294, 1
        %v1315 = vrot.slane %v1295, 1
        %v1316 = vsel %vm1304, %v1314, %v1315
        %v1321 = vadd.f32 %v1282, %v1307
        %v1322 = vadd.f32 %v1283, %v1310
        %v1323 = vadd.f32 %v1284, %v1313
        %v1324 = vadd.f32 %v1285, %v1316
        %s1325 = sld [smem:[#allocation7 + $0x4]]
        %v1326 = vstv %s1325
        %v1327 = vmul.f32 %v1326, %v519
        %v1328 = vmul.f32 %v1326, %v520
        %v1329 = vmul.f32 %v1326, %v521
        %v1330 = vmul.f32 %v1326, %v522
        %v1331 = vmul.f32 %v1326, %v523
        %v1332 = vmul.f32 %v1326, %v524
        %v1333 = vmul.f32 %v1326, %v525
        %v1334 = vmul.f32 %v1326, %v526
        %v1343 = vrot.slane %v1327, 1
        %v1344 = vrot.slane %v1328, 1
        %v1345 = vsel %vm1304, %v1343, %v1344
        %v1346 = vrot.slane %v1329, 1
        %v1347 = vrot.slane %v1330, 1
        %v1348 = vsel %vm1304, %v1346, %v1347
        %v1349 = vrot.slane %v1331, 1
        %v1350 = vrot.slane %v1332, 1
        %v1351 = vsel %vm1304, %v1349, %v1350
        %v1352 = vrot.slane %v1333, 1
        %v1353 = vrot.slane %v1334, 1
        %v1354 = vsel %vm1304, %v1352, %v1353
        %1355 = vrot.lane.b32.xlu0 %v1345, 127
        %v1356 = vpop.permute.xlu0 %1355
        %1357 = vrot.lane.b32.xlu0 %v1348, 127
        %v1358 = vpop.permute.xlu0 %1357
        %1359 = vrot.lane.b32.xlu0 %v1351, 127
        %v1360 = vpop.permute.xlu0 %1359
        %1361 = vrot.lane.b32.xlu0 %v1354, 127
        %v1362 = vpop.permute.xlu0 %1361
        %v1367 = vadd.f32 %v1321, %v1356
        %v1368 = vadd.f32 %v1322, %v1358
        %v1369 = vadd.f32 %v1323, %v1360
        %v1370 = vadd.f32 %v1324, %v1362
        %s1371 = sld [smem:[#allocation7 + $0x5]]
        %v1372 = vstv %s1371
        %v1373 = vmul.f32 %v1372, %v519
        %v1374 = vmul.f32 %v1372, %v520
        %v1375 = vmul.f32 %v1372, %v521
        %v1376 = vmul.f32 %v1372, %v522
        %v1377 = vmul.f32 %v1372, %v523
        %v1378 = vmul.f32 %v1372, %v524
        %v1379 = vmul.f32 %v1372, %v525
        %v1380 = vmul.f32 %v1372, %v526
        %v1389 = vrot.slane %v1373, 1
        %v1390 = vrot.slane %v1374, 1
        %v1391 = vsel %vm1304, %v1389, %v1390
        %v1392 = vrot.slane %v1375, 1
        %v1393 = vrot.slane %v1376, 1
        %v1394 = vsel %vm1304, %v1392, %v1393
        %v1395 = vrot.slane %v1377, 1
        %v1396 = vrot.slane %v1378, 1
        %v1397 = vsel %vm1304, %v1395, %v1396
        %v1398 = vrot.slane %v1379, 1
        %v1399 = vrot.slane %v1380, 1
        %v1400 = vsel %vm1304, %v1398, %v1399
        %1401 = vrot.lane.b32.xlu0 %v1391, 126
        %v1402 = vpop.permute.xlu0 %1401
        %1403 = vrot.lane.b32.xlu0 %v1394, 126
        %v1404 = vpop.permute.xlu0 %1403
        %1405 = vrot.lane.b32.xlu0 %v1397, 126
        %v1406 = vpop.permute.xlu0 %1405
        %1407 = vrot.lane.b32.xlu0 %v1400, 126
        %v1408 = vpop.permute.xlu0 %1407
        %v1413 = vadd.f32 %v1367, %v1402
        %v1414 = vadd.f32 %v1368, %v1404
        %v1415 = vadd.f32 %v1369, %v1406
        %v1416 = vadd.f32 %v1370, %v1408
        %s1417 = sld [smem:[#allocation7 + $0x6]]
        %v1418 = vstv %s1417
        %v1419 = vmul.f32 %v1418, %v519
        %v1420 = vmul.f32 %v1418, %v520
        %v1421 = vmul.f32 %v1418, %v521
        %v1422 = vmul.f32 %v1418, %v522
        %v1423 = vmul.f32 %v1418, %v523
        %v1424 = vmul.f32 %v1418, %v524
        %v1425 = vmul.f32 %v1418, %v525
        %v1426 = vmul.f32 %v1418, %v526
        %vm1435 = vcmask 1045504
        %v1436 = vrot.slane %v1419, 2
        %v1437 = vrot.slane %v1420, 2
        %v1438 = vsel %vm1435, %v1436, %v1437
        %v1439 = vrot.slane %v1421, 2
        %v1440 = vrot.slane %v1422, 2
        %v1441 = vsel %vm1435, %v1439, %v1440
        %v1442 = vrot.slane %v1423, 2
        %v1443 = vrot.slane %v1424, 2
        %v1444 = vsel %vm1435, %v1442, %v1443
        %v1445 = vrot.slane %v1425, 2
        %v1446 = vrot.slane %v1426, 2
        %v1447 = vsel %vm1435, %v1445, %v1446
        %v1452 = vadd.f32 %v1413, %v1438
        %v1453 = vadd.f32 %v1414, %v1441
        %v1454 = vadd.f32 %v1415, %v1444
        %v1455 = vadd.f32 %v1416, %v1447
        %s1456 = sld [smem:[#allocation7 + $0x7]]
        %v1457 = vstv %s1456
        %v1458 = vmul.f32 %v1457, %v519
        %v1459 = vmul.f32 %v1457, %v520
        %v1460 = vmul.f32 %v1457, %v521
        %v1461 = vmul.f32 %v1457, %v522
        %v1462 = vmul.f32 %v1457, %v523
        %v1463 = vmul.f32 %v1457, %v524
        %v1464 = vmul.f32 %v1457, %v525
        %v1465 = vmul.f32 %v1457, %v526
        %v1474 = vrot.slane %v1458, 2
        %v1475 = vrot.slane %v1459, 2
        %v1476 = vsel %vm1435, %v1474, %v1475
        %v1477 = vrot.slane %v1460, 2
        %v1478 = vrot.slane %v1461, 2
        %v1479 = vsel %vm1435, %v1477, %v1478
        %v1480 = vrot.slane %v1462, 2
        %v1481 = vrot.slane %v1463, 2
        %v1482 = vsel %vm1435, %v1480, %v1481
        %v1483 = vrot.slane %v1464, 2
        %v1484 = vrot.slane %v1465, 2
        %v1485 = vsel %vm1435, %v1483, %v1484
        %1486 = vrot.lane.b32.xlu0 %v1476, 127
        %v1487 = vpop.permute.xlu0 %1486
        %1488 = vrot.lane.b32.xlu0 %v1479, 127
        %v1489 = vpop.permute.xlu0 %1488
        %1490 = vrot.lane.b32.xlu0 %v1482, 127
        %v1491 = vpop.permute.xlu0 %1490
        %1492 = vrot.lane.b32.xlu0 %v1485, 127
        %v1493 = vpop.permute.xlu0 %1492
        %v1498 = vadd.f32 %v1452, %v1487
        %v1499 = vadd.f32 %v1453, %v1489
        %v1500 = vadd.f32 %v1454, %v1491
        %v1501 = vadd.f32 %v1455, %v1493
        %s1502 = sld [smem:[#allocation7 + $0x8]]
        %v1503 = vstv %s1502
        %v1504 = vmul.f32 %v1503, %v519
        %v1505 = vmul.f32 %v1503, %v520
        %v1506 = vmul.f32 %v1503, %v521
        %v1507 = vmul.f32 %v1503, %v522
        %v1508 = vmul.f32 %v1503, %v523
        %v1509 = vmul.f32 %v1503, %v524
        %v1510 = vmul.f32 %v1503, %v525
        %v1511 = vmul.f32 %v1503, %v526
        %v1520 = vrot.slane %v1504, 2
        %v1521 = vrot.slane %v1505, 2
        %v1522 = vsel %vm1435, %v1520, %v1521
        %v1523 = vrot.slane %v1506, 2
        %v1524 = vrot.slane %v1507, 2
        %v1525 = vsel %vm1435, %v1523, %v1524
        %v1526 = vrot.slane %v1508, 2
        %v1527 = vrot.slane %v1509, 2
        %v1528 = vsel %vm1435, %v1526, %v1527
        %v1529 = vrot.slane %v1510, 2
        %v1530 = vrot.slane %v1511, 2
        %v1531 = vsel %vm1435, %v1529, %v1530
        %1532 = vrot.lane.b32.xlu0 %v1522, 126
        %v1533 = vpop.permute.xlu0 %1532
        %1534 = vrot.lane.b32.xlu0 %v1525, 126
        %v1535 = vpop.permute.xlu0 %1534
        %1536 = vrot.lane.b32.xlu0 %v1528, 126
        %v1537 = vpop.permute.xlu0 %1536
        %1538 = vrot.lane.b32.xlu0 %v1531, 126
        %v1539 = vpop.permute.xlu0 %1538
        %v1544 = vadd.f32 %v1498, %v1533
        %v1545 = vadd.f32 %v1499, %v1535
        %v1546 = vadd.f32 %v1500, %v1537
        %v1547 = vadd.f32 %v1501, %v1539
        %s1548 = sld [smem:[#allocation7 + $0x9]]
        %v1549 = vstv %s1548
        %v1550 = vmul.f32 %v1549, %v521
        %v1551 = vmul.f32 %v1549, %v523
        %v1552 = vmul.f32 %v1549, %v525
        %v1553 = vmul.f32 %v1549, %v527
        %v1554 = vadd.f32 %v1544, %v1550
        %v1555 = vadd.f32 %v1545, %v1551
        %v1556 = vadd.f32 %v1546, %v1552
        %v1557 = vadd.f32 %v1547, %v1553
        %s1558 = sld [smem:[#allocation7 + $0xa]]
        %v1559 = vstv %s1558
        %v1560 = vmul.f32 %v1559, %v521
        %v1561 = vmul.f32 %v1559, %v523
        %v1562 = vmul.f32 %v1559, %v525
        %v1563 = vmul.f32 %v1559, %v527
        %1568 = vrot.lane.b32.xlu0 %v1560, 127
        %v1569 = vpop.permute.xlu0 %1568
        %1570 = vrot.lane.b32.xlu0 %v1561, 127
        %v1571 = vpop.permute.xlu0 %1570
        %1572 = vrot.lane.b32.xlu0 %v1562, 127
        %v1573 = vpop.permute.xlu0 %1572
        %1574 = vrot.lane.b32.xlu0 %v1563, 127
        %v1575 = vpop.permute.xlu0 %1574
        %v1580 = vadd.f32 %v1554, %v1569
        %v1581 = vadd.f32 %v1555, %v1571
        %v1582 = vadd.f32 %v1556, %v1573
        %v1583 = vadd.f32 %v1557, %v1575
        %s1584 = sld [smem:[#allocation7 + $0xb]]
        %v1585 = vstv %s1584
        %v1586 = vmul.f32 %v1585, %v521
        %v1587 = vmul.f32 %v1585, %v523
        %v1588 = vmul.f32 %v1585, %v525
        %v1589 = vmul.f32 %v1585, %v527
        %1594 = vrot.lane.b32.xlu0 %v1586, 126
        %v1595 = vpop.permute.xlu0 %1594
        %1596 = vrot.lane.b32.xlu0 %v1587, 126
        %v1597 = vpop.permute.xlu0 %1596
        %1598 = vrot.lane.b32.xlu0 %v1588, 126
        %v1599 = vpop.permute.xlu0 %1598
        %1600 = vrot.lane.b32.xlu0 %v1589, 126
        %v1601 = vpop.permute.xlu0 %1600
        %v1606 = vadd.f32 %v1580, %v1595
        %v1607 = vadd.f32 %v1581, %v1597
        %v1608 = vadd.f32 %v1582, %v1599
        %v1609 = vadd.f32 %v1583, %v1601
        %s1610 = sld [smem:[#allocation7 + $0xc]]
        %v1611 = vstv %s1610
        %v1612 = vmul.f32 %v1611, %v521
        %v1613 = vmul.f32 %v1611, %v522
        %v1614 = vmul.f32 %v1611, %v523
        %v1615 = vmul.f32 %v1611, %v524
        %v1616 = vmul.f32 %v1611, %v525
        %v1617 = vmul.f32 %v1611, %v526
        %v1618 = vmul.f32 %v1611, %v527
        %v1619 = vmul.f32 %v1611, %v528
        %v1628 = vrot.slane %v1612, 1
        %v1629 = vrot.slane %v1613, 1
        %v1630 = vsel %vm1304, %v1628, %v1629
        %v1631 = vrot.slane %v1614, 1
        %v1632 = vrot.slane %v1615, 1
        %v1633 = vsel %vm1304, %v1631, %v1632
        %v1634 = vrot.slane %v1616, 1
        %v1635 = vrot.slane %v1617, 1
        %v1636 = vsel %vm1304, %v1634, %v1635
        %v1637 = vrot.slane %v1618, 1
        %v1638 = vrot.slane %v1619, 1
        %v1639 = vsel %vm1304, %v1637, %v1638
        %v1644 = vadd.f32 %v1606, %v1630
        %v1645 = vadd.f32 %v1607, %v1633
        %v1646 = vadd.f32 %v1608, %v1636
        %v1647 = vadd.f32 %v1609, %v1639
        %s1648 = sld [smem:[#allocation7 + $0xd]]
        %v1649 = vstv %s1648
        %v1650 = vmul.f32 %v1649, %v521
        %v1651 = vmul.f32 %v1649, %v522
        %v1652 = vmul.f32 %v1649, %v523
        %v1653 = vmul.f32 %v1649, %v524
        %v1654 = vmul.f32 %v1649, %v525
        %v1655 = vmul.f32 %v1649, %v526
        %v1656 = vmul.f32 %v1649, %v527
        %v1657 = vmul.f32 %v1649, %v528
        %v1666 = vrot.slane %v1650, 1
        %v1667 = vrot.slane %v1651, 1
        %v1668 = vsel %vm1304, %v1666, %v1667
        %v1669 = vrot.slane %v1652, 1
        %v1670 = vrot.slane %v1653, 1
        %v1671 = vsel %vm1304, %v1669, %v1670
        %v1672 = vrot.slane %v1654, 1
        %v1673 = vrot.slane %v1655, 1
        %v1674 = vsel %vm1304, %v1672, %v1673
        %v1675 = vrot.slane %v1656, 1
        %v1676 = vrot.slane %v1657, 1
        %v1677 = vsel %vm1304, %v1675, %v1676
        %1678 = vrot.lane.b32.xlu0 %v1668, 127
        %v1679 = vpop.permute.xlu0 %1678
        %1680 = vrot.lane.b32.xlu0 %v1671, 127
        %v1681 = vpop.permute.xlu0 %1680
        %1682 = vrot.lane.b32.xlu0 %v1674, 127
        %v1683 = vpop.permute.xlu0 %1682
        %1684 = vrot.lane.b32.xlu0 %v1677, 127
        %v1685 = vpop.permute.xlu0 %1684
        %v1690 = vadd.f32 %v1644, %v1679
        %v1691 = vadd.f32 %v1645, %v1681
        %v1692 = vadd.f32 %v1646, %v1683
        %v1693 = vadd.f32 %v1647, %v1685
        %s1694 = sld [smem:[#allocation7 + $0xe]]
        %v1695 = vstv %s1694
        %v1696 = vmul.f32 %v1695, %v521
        %v1697 = vmul.f32 %v1695, %v522
        %v1698 = vmul.f32 %v1695, %v523
        %v1699 = vmul.f32 %v1695, %v524
        %v1700 = vmul.f32 %v1695, %v525
        %v1701 = vmul.f32 %v1695, %v526
        %v1702 = vmul.f32 %v1695, %v527
        %v1703 = vmul.f32 %v1695, %v528
        %v1712 = vrot.slane %v1696, 1
        %v1713 = vrot.slane %v1697, 1
        %v1714 = vsel %vm1304, %v1712, %v1713
        %v1715 = vrot.slane %v1698, 1
        %v1716 = vrot.slane %v1699, 1
        %v1717 = vsel %vm1304, %v1715, %v1716
        %v1718 = vrot.slane %v1700, 1
        %v1719 = vrot.slane %v1701, 1
        %v1720 = vsel %vm1304, %v1718, %v1719
        %v1721 = vrot.slane %v1702, 1
        %v1722 = vrot.slane %v1703, 1
        %v1723 = vsel %vm1304, %v1721, %v1722
        %1724 = vrot.lane.b32.xlu0 %v1714, 126
        %v1725 = vpop.permute.xlu0 %1724
        %1726 = vrot.lane.b32.xlu0 %v1717, 126
        %v1727 = vpop.permute.xlu0 %1726
        %1728 = vrot.lane.b32.xlu0 %v1720, 126
        %v1729 = vpop.permute.xlu0 %1728
        %1730 = vrot.lane.b32.xlu0 %v1723, 126
        %v1731 = vpop.permute.xlu0 %1730
        %v1736 = vadd.f32 %v1690, %v1725
        %v1737 = vadd.f32 %v1691, %v1727
        %v1738 = vadd.f32 %v1692, %v1729
        %v1739 = vadd.f32 %v1693, %v1731
        %s1740 = sld [smem:[#allocation7 + $0xf]]
        %v1741 = vstv %s1740
        %v1742 = vmul.f32 %v1741, %v521
        %v1743 = vmul.f32 %v1741, %v522
        %v1744 = vmul.f32 %v1741, %v523
        %v1745 = vmul.f32 %v1741, %v524
        %v1746 = vmul.f32 %v1741, %v525
        %v1747 = vmul.f32 %v1741, %v526
        %v1748 = vmul.f32 %v1741, %v527
        %v1749 = vmul.f32 %v1741, %v528
        %v1758 = vrot.slane %v1742, 2
        %v1759 = vrot.slane %v1743, 2
        %v1760 = vsel %vm1435, %v1758, %v1759
        %v1761 = vrot.slane %v1744, 2
        %v1762 = vrot.slane %v1745, 2
        %v1763 = vsel %vm1435, %v1761, %v1762
        %v1764 = vrot.slane %v1746, 2
        %v1765 = vrot.slane %v1747, 2
        %v1766 = vsel %vm1435, %v1764, %v1765
        %v1767 = vrot.slane %v1748, 2
        %v1768 = vrot.slane %v1749, 2
        %v1769 = vsel %vm1435, %v1767, %v1768
        %v1774 = vadd.f32 %v1736, %v1760
        %v1775 = vadd.f32 %v1737, %v1763
        %v1776 = vadd.f32 %v1738, %v1766
        %v1777 = vadd.f32 %v1739, %v1769
        %s1778 = sld [smem:[#allocation7 + $0x10]]
        %v1779 = vstv %s1778
        %v1780 = vmul.f32 %v1779, %v521
        %v1781 = vmul.f32 %v1779, %v522
        %v1782 = vmul.f32 %v1779, %v523
        %v1783 = vmul.f32 %v1779, %v524
        %v1784 = vmul.f32 %v1779, %v525
        %v1785 = vmul.f32 %v1779, %v526
        %v1786 = vmul.f32 %v1779, %v527
        %v1787 = vmul.f32 %v1779, %v528
        %v1796 = vrot.slane %v1780, 2
        %v1797 = vrot.slane %v1781, 2
        %v1798 = vsel %vm1435, %v1796, %v1797
        %v1799 = vrot.slane %v1782, 2
        %v1800 = vrot.slane %v1783, 2
        %v1801 = vsel %vm1435, %v1799, %v1800
        %v1802 = vrot.slane %v1784, 2
        %v1803 = vrot.slane %v1785, 2
        %v1804 = vsel %vm1435, %v1802, %v1803
        %v1805 = vrot.slane %v1786, 2
        %v1806 = vrot.slane %v1787, 2
        %v1807 = vsel %vm1435, %v1805, %v1806
        %1808 = vrot.lane.b32.xlu0 %v1798, 127
        %v1809 = vpop.permute.xlu0 %1808
        %1810 = vrot.lane.b32.xlu0 %v1801, 127
        %v1811 = vpop.permute.xlu0 %1810
        %1812 = vrot.lane.b32.xlu0 %v1804, 127
        %v1813 = vpop.permute.xlu0 %1812
        %1814 = vrot.lane.b32.xlu0 %v1807, 127
        %v1815 = vpop.permute.xlu0 %1814
        %v1820 = vadd.f32 %v1774, %v1809
        %v1821 = vadd.f32 %v1775, %v1811
        %v1822 = vadd.f32 %v1776, %v1813
        %v1823 = vadd.f32 %v1777, %v1815
        %s1824 = sld [smem:[#allocation7 + $0x11]]
        %v1825 = vstv %s1824
        %v1826 = vmul.f32 %v1825, %v521
        %v1827 = vmul.f32 %v1825, %v522
        %v1828 = vmul.f32 %v1825, %v523
        %v1829 = vmul.f32 %v1825, %v524
        %v1830 = vmul.f32 %v1825, %v525
        %v1831 = vmul.f32 %v1825, %v526
        %v1832 = vmul.f32 %v1825, %v527
        %v1833 = vmul.f32 %v1825, %v528
        %v1842 = vrot.slane %v1826, 2
        %v1843 = vrot.slane %v1827, 2
        %v1844 = vsel %vm1435, %v1842, %v1843
        %v1845 = vrot.slane %v1828, 2
        %v1846 = vrot.slane %v1829, 2
        %v1847 = vsel %vm1435, %v1845, %v1846
        %v1848 = vrot.slane %v1830, 2
        %v1849 = vrot.slane %v1831, 2
        %v1850 = vsel %vm1435, %v1848, %v1849
        %v1851 = vrot.slane %v1832, 2
        %v1852 = vrot.slane %v1833, 2
        %v1853 = vsel %vm1435, %v1851, %v1852
        %1854 = vrot.lane.b32.xlu0 %v1844, 126
        %v1855 = vpop.permute.xlu0 %1854
        %1856 = vrot.lane.b32.xlu0 %v1847, 126
        %v1857 = vpop.permute.xlu0 %1856
        %1858 = vrot.lane.b32.xlu0 %v1850, 126
        %v1859 = vpop.permute.xlu0 %1858
        %1860 = vrot.lane.b32.xlu0 %v1853, 126
        %v1861 = vpop.permute.xlu0 %1860
        %v1866 = vadd.f32 %v1820, %v1855
        %v1867 = vadd.f32 %v1821, %v1857
        %v1868 = vadd.f32 %v1822, %v1859
        %v1869 = vadd.f32 %v1823, %v1861
        %s1870 = sld [smem:[#allocation7 + $0x12]]
        %v1871 = vstv %s1870
        %v1872 = vmul.f32 %v1871, %v523
        %v1873 = vmul.f32 %v1871, %v525
        %v1874 = vmul.f32 %v1871, %v527
        %v1875 = vmul.f32 %v1871, %v529
        %v1876 = vadd.f32 %v1866, %v1872
        %v1877 = vadd.f32 %v1867, %v1873
        %v1878 = vadd.f32 %v1868, %v1874
        %v1879 = vadd.f32 %v1869, %v1875
        %s1880 = sld [smem:[#allocation7 + $0x13]]
        %v1881 = vstv %s1880
        %v1882 = vmul.f32 %v1881, %v523
        %v1883 = vmul.f32 %v1881, %v525
        %v1884 = vmul.f32 %v1881, %v527
        %v1885 = vmul.f32 %v1881, %v529
        %1890 = vrot.lane.b32.xlu0 %v1882, 127
        %v1891 = vpop.permute.xlu0 %1890
        %1892 = vrot.lane.b32.xlu0 %v1883, 127
        %v1893 = vpop.permute.xlu0 %1892
        %1894 = vrot.lane.b32.xlu0 %v1884, 127
        %v1895 = vpop.permute.xlu0 %1894
        %1896 = vrot.lane.b32.xlu0 %v1885, 127
        %v1897 = vpop.permute.xlu0 %1896
        %v1902 = vadd.f32 %v1876, %v1891
        %v1903 = vadd.f32 %v1877, %v1893
        %v1904 = vadd.f32 %v1878, %v1895
        %v1905 = vadd.f32 %v1879, %v1897
        %s1906 = sld [smem:[#allocation7 + $0x14]]
        %v1907 = vstv %s1906
        %v1908 = vmul.f32 %v1907, %v523
        %v1909 = vmul.f32 %v1907, %v525
        %v1910 = vmul.f32 %v1907, %v527
        %v1911 = vmul.f32 %v1907, %v529
        %1916 = vrot.lane.b32.xlu0 %v1908, 126
        %v1917 = vpop.permute.xlu0 %1916
        %1918 = vrot.lane.b32.xlu0 %v1909, 126
        %v1919 = vpop.permute.xlu0 %1918
        %1920 = vrot.lane.b32.xlu0 %v1910, 126
        %v1921 = vpop.permute.xlu0 %1920
        %1922 = vrot.lane.b32.xlu0 %v1911, 126
        %v1923 = vpop.permute.xlu0 %1922
        %v1928 = vadd.f32 %v1902, %v1917
        %v1929 = vadd.f32 %v1903, %v1919
        %v1930 = vadd.f32 %v1904, %v1921
        %v1931 = vadd.f32 %v1905, %v1923
        %s1932 = sld [smem:[#allocation7 + $0x15]]
        %v1933 = vstv %s1932
        %v1934 = vmul.f32 %v1933, %v523
        %v1935 = vmul.f32 %v1933, %v524
        %v1936 = vmul.f32 %v1933, %v525
        %v1937 = vmul.f32 %v1933, %v526
        %v1938 = vmul.f32 %v1933, %v527
        %v1939 = vmul.f32 %v1933, %v528
        %v1940 = vmul.f32 %v1933, %v529
        %v1941 = vmul.f32 %v1933, %v530
        %v1950 = vrot.slane %v1934, 1
        %v1951 = vrot.slane %v1935, 1
        %v1952 = vsel %vm1304, %v1950, %v1951
        %v1953 = vrot.slane %v1936, 1
        %v1954 = vrot.slane %v1937, 1
        %v1955 = vsel %vm1304, %v1953, %v1954
        %v1956 = vrot.slane %v1938, 1
        %v1957 = vrot.slane %v1939, 1
        %v1958 = vsel %vm1304, %v1956, %v1957
        %v1959 = vrot.slane %v1940, 1
        %v1960 = vrot.slane %v1941, 1
        %v1961 = vsel %vm1304, %v1959, %v1960
        %v1966 = vadd.f32 %v1928, %v1952
        %v1967 = vadd.f32 %v1929, %v1955
        %v1968 = vadd.f32 %v1930, %v1958
        %v1969 = vadd.f32 %v1931, %v1961
        %s1970 = sld [smem:[#allocation7 + $0x16]]
        %v1971 = vstv %s1970
        %v1972 = vmul.f32 %v1971, %v523
        %v1973 = vmul.f32 %v1971, %v524
        %v1974 = vmul.f32 %v1971, %v525
        %v1975 = vmul.f32 %v1971, %v526
        %v1976 = vmul.f32 %v1971, %v527
        %v1977 = vmul.f32 %v1971, %v528
        %v1978 = vmul.f32 %v1971, %v529
        %v1979 = vmul.f32 %v1971, %v530
        %v1988 = vrot.slane %v1972, 1
        %v1989 = vrot.slane %v1973, 1
        %v1990 = vsel %vm1304, %v1988, %v1989
        %v1991 = vrot.slane %v1974, 1
        %v1992 = vrot.slane %v1975, 1
        %v1993 = vsel %vm1304, %v1991, %v1992
        %v1994 = vrot.slane %v1976, 1
        %v1995 = vrot.slane %v1977, 1
        %v1996 = vsel %vm1304, %v1994, %v1995
        %v1997 = vrot.slane %v1978, 1
        %v1998 = vrot.slane %v1979, 1
        %v1999 = vsel %vm1304, %v1997, %v1998
        %2000 = vrot.lane.b32.xlu0 %v1990, 127
        %v2001 = vpop.permute.xlu0 %2000
        %2002 = vrot.lane.b32.xlu0 %v1993, 127
        %v2003 = vpop.permute.xlu0 %2002
        %2004 = vrot.lane.b32.xlu0 %v1996, 127
        %v2005 = vpop.permute.xlu0 %2004
        %2006 = vrot.lane.b32.xlu0 %v1999, 127
        %v2007 = vpop.permute.xlu0 %2006
        %v2012 = vadd.f32 %v1966, %v2001
        %v2013 = vadd.f32 %v1967, %v2003
        %v2014 = vadd.f32 %v1968, %v2005
        %v2015 = vadd.f32 %v1969, %v2007
        %s2016 = sld [smem:[#allocation7 + $0x17]]
        %v2017 = vstv %s2016
        %v2018 = vmul.f32 %v2017, %v523
        %v2019 = vmul.f32 %v2017, %v524
        %v2020 = vmul.f32 %v2017, %v525
        %v2021 = vmul.f32 %v2017, %v526
        %v2022 = vmul.f32 %v2017, %v527
        %v2023 = vmul.f32 %v2017, %v528
        %v2024 = vmul.f32 %v2017, %v529
        %v2025 = vmul.f32 %v2017, %v530
        %v2034 = vrot.slane %v2018, 1
        %v2035 = vrot.slane %v2019, 1
        %v2036 = vsel %vm1304, %v2034, %v2035
        %v2037 = vrot.slane %v2020, 1
        %v2038 = vrot.slane %v2021, 1
        %v2039 = vsel %vm1304, %v2037, %v2038
        %v2040 = vrot.slane %v2022, 1
        %v2041 = vrot.slane %v2023, 1
        %v2042 = vsel %vm1304, %v2040, %v2041
        %v2043 = vrot.slane %v2024, 1
        %v2044 = vrot.slane %v2025, 1
        %v2045 = vsel %vm1304, %v2043, %v2044
        %2046 = vrot.lane.b32.xlu0 %v2036, 126
        %v2047 = vpop.permute.xlu0 %2046
        %2048 = vrot.lane.b32.xlu0 %v2039, 126
        %v2049 = vpop.permute.xlu0 %2048
        %2050 = vrot.lane.b32.xlu0 %v2042, 126
        %v2051 = vpop.permute.xlu0 %2050
        %2052 = vrot.lane.b32.xlu0 %v2045, 126
        %v2053 = vpop.permute.xlu0 %2052
        %v2058 = vadd.f32 %v2012, %v2047
        %v2059 = vadd.f32 %v2013, %v2049
        %v2060 = vadd.f32 %v2014, %v2051
        %v2061 = vadd.f32 %v2015, %v2053
        %s2062 = sld [smem:[#allocation7 + $0x18]]
        %v2063 = vstv %s2062
        %v2064 = vmul.f32 %v2063, %v523
        %v2065 = vmul.f32 %v2063, %v524
        %v2066 = vmul.f32 %v2063, %v525
        %v2067 = vmul.f32 %v2063, %v526
        %v2068 = vmul.f32 %v2063, %v527
        %v2069 = vmul.f32 %v2063, %v528
        %v2070 = vmul.f32 %v2063, %v529
        %v2071 = vmul.f32 %v2063, %v530
        %v2080 = vrot.slane %v2064, 2
        %v2081 = vrot.slane %v2065, 2
        %v2082 = vsel %vm1435, %v2080, %v2081
        %v2083 = vrot.slane %v2066, 2
        %v2084 = vrot.slane %v2067, 2
        %v2085 = vsel %vm1435, %v2083, %v2084
        %v2086 = vrot.slane %v2068, 2
        %v2087 = vrot.slane %v2069, 2
        %v2088 = vsel %vm1435, %v2086, %v2087
        %v2089 = vrot.slane %v2070, 2
        %v2090 = vrot.slane %v2071, 2
        %v2091 = vsel %vm1435, %v2089, %v2090
        %v2096 = vadd.f32 %v2058, %v2082
        %v2097 = vadd.f32 %v2059, %v2085
        %v2098 = vadd.f32 %v2060, %v2088
        %v2099 = vadd.f32 %v2061, %v2091
        %s2100 = sld [smem:[#allocation7 + $0x19]]
        %v2101 = vstv %s2100
        %v2102 = vmul.f32 %v2101, %v523
        %v2103 = vmul.f32 %v2101, %v524
        %v2104 = vmul.f32 %v2101, %v525
        %v2105 = vmul.f32 %v2101, %v526
        %v2106 = vmul.f32 %v2101, %v527
        %v2107 = vmul.f32 %v2101, %v528
        %v2108 = vmul.f32 %v2101, %v529
        %v2109 = vmul.f32 %v2101, %v530
        %v2118 = vrot.slane %v2102, 2
        %v2119 = vrot.slane %v2103, 2
        %v2120 = vsel %vm1435, %v2118, %v2119
        %v2121 = vrot.slane %v2104, 2
        %v2122 = vrot.slane %v2105, 2
        %v2123 = vsel %vm1435, %v2121, %v2122
        %v2124 = vrot.slane %v2106, 2
        %v2125 = vrot.slane %v2107, 2
        %v2126 = vsel %vm1435, %v2124, %v2125
        %v2127 = vrot.slane %v2108, 2
        %v2128 = vrot.slane %v2109, 2
        %v2129 = vsel %vm1435, %v2127, %v2128
        %2130 = vrot.lane.b32.xlu0 %v2120, 127
        %v2131 = vpop.permute.xlu0 %2130
        %2132 = vrot.lane.b32.xlu0 %v2123, 127
        %v2133 = vpop.permute.xlu0 %2132
        %2134 = vrot.lane.b32.xlu0 %v2126, 127
        %v2135 = vpop.permute.xlu0 %2134
        %2136 = vrot.lane.b32.xlu0 %v2129, 127
        %v2137 = vpop.permute.xlu0 %2136
        %v2142 = vadd.f32 %v2096, %v2131
        %v2143 = vadd.f32 %v2097, %v2133
        %v2144 = vadd.f32 %v2098, %v2135
        %v2145 = vadd.f32 %v2099, %v2137
        %s2146 = sld [smem:[#allocation7 + $0x1a]]
        %v2147 = vstv %s2146
        %v2148 = vmul.f32 %v2147, %v523
        %v2149 = vmul.f32 %v2147, %v524
        %v2150 = vmul.f32 %v2147, %v525
        %v2151 = vmul.f32 %v2147, %v526
        %v2152 = vmul.f32 %v2147, %v527
        %v2153 = vmul.f32 %v2147, %v528
        %v2154 = vmul.f32 %v2147, %v529
        %v2155 = vmul.f32 %v2147, %v530
        %v2164 = vrot.slane %v2148, 2
        %v2165 = vrot.slane %v2149, 2
        %v2166 = vsel %vm1435, %v2164, %v2165
        %v2167 = vrot.slane %v2150, 2
        %v2168 = vrot.slane %v2151, 2
        %v2169 = vsel %vm1435, %v2167, %v2168
        %v2170 = vrot.slane %v2152, 2
        %v2171 = vrot.slane %v2153, 2
        %v2172 = vsel %vm1435, %v2170, %v2171
        %v2173 = vrot.slane %v2154, 2
        %v2174 = vrot.slane %v2155, 2
        %v2175 = vsel %vm1435, %v2173, %v2174
        %2176 = vrot.lane.b32.xlu0 %v2166, 126
        %v2177 = vpop.permute.xlu0 %2176
        %2178 = vrot.lane.b32.xlu0 %v2169, 126
        %v2179 = vpop.permute.xlu0 %2178
        %2180 = vrot.lane.b32.xlu0 %v2172, 126
        %v2181 = vpop.permute.xlu0 %2180
        %2182 = vrot.lane.b32.xlu0 %v2175, 126
        %v2183 = vpop.permute.xlu0 %2182
        %v2188 = vadd.f32 %v2142, %v2177
        %v2189 = vadd.f32 %v2143, %v2179
        %v2190 = vadd.f32 %v2144, %v2181
        %v2191 = vadd.f32 %v2145, %v2183
        %s2192 = sld [smem:[#allocation8]]
        %v2193 = vstv %s2192
        %v2194 = vadd.f32 %v2188, %v2193
        %v2195 = vadd.f32 %v2189, %v2193
        %v2196 = vadd.f32 %v2190, %v2193
        %v2197 = vadd.f32 %v2191, %v2193
        %v2198 = vmax.f32 %v2194, 0.0
        %v2199 = vmax.f32 %v2195, 0.0
        %v2200 = vmax.f32 %v2196, 0.0
        %v2201 = vmax.f32 %v2197, 0.0
        %s2202 = scalar_lea.vmem %s269, 128 [#allocation10]
        %vm2203 = vcmask 261120
        %2204 = vst.msk [vmem:[%s2202] sm:$0xff] %vm2203, %v2198
        %2205 = vst.msk [vmem:[%s2202 + $0x8] sm:$0xff] %vm2203, %v2199
        %2206 = vst.msk [vmem:[%s2202 + $0x10] sm:$0xff] %vm2203, %v2200
        %2207 = vst.msk [vmem:[%s2202 + $0x18] sm:$0xff] %vm2203, %v2201
        %s2208 = sld [smem:[#allocation7 + $0x80]]
        %v2209 = vstv %s2208
        %v2210 = vmul.f32 %v2209, %v750
        %v2211 = vmul.f32 %v2209, %v752
        %v2212 = vmul.f32 %v2209, %v754
        %v2213 = vmul.f32 %v2209, %v756
        %v2214 = vadd.f32 %v2210, 0.0
        %v2215 = vadd.f32 %v2211, 0.0
        %v2216 = vadd.f32 %v2212, 0.0
        %v2217 = vadd.f32 %v2213, 0.0
        %s2218 = sld [smem:[#allocation7 + $0x81]]
        %v2219 = vstv %s2218
        %v2220 = vmul.f32 %v2219, %v750
        %v2221 = vmul.f32 %v2219, %v752
        %v2222 = vmul.f32 %v2219, %v754
        %v2223 = vmul.f32 %v2219, %v756
        %2228 = vrot.lane.b32.xlu0 %v2220, 127
        %v2229 = vpop.permute.xlu0 %2228
        %2230 = vrot.lane.b32.xlu0 %v2221, 127
        %v2231 = vpop.permute.xlu0 %2230
        %2232 = vrot.lane.b32.xlu0 %v2222, 127
        %v2233 = vpop.permute.xlu0 %2232
        %2234 = vrot.lane.b32.xlu0 %v2223, 127
        %v2235 = vpop.permute.xlu0 %2234
        %v2240 = vadd.f32 %v2214, %v2229
        %v2241 = vadd.f32 %v2215, %v2231
        %v2242 = vadd.f32 %v2216, %v2233
        %v2243 = vadd.f32 %v2217, %v2235
        %s2244 = sld [smem:[#allocation7 + $0x82]]
        %v2245 = vstv %s2244
        %v2246 = vmul.f32 %v2245, %v750
        %v2247 = vmul.f32 %v2245, %v752
        %v2248 = vmul.f32 %v2245, %v754
        %v2249 = vmul.f32 %v2245, %v756
        %2254 = vrot.lane.b32.xlu0 %v2246, 126
        %v2255 = vpop.permute.xlu0 %2254
        %2256 = vrot.lane.b32.xlu0 %v2247, 126
        %v2257 = vpop.permute.xlu0 %2256
        %2258 = vrot.lane.b32.xlu0 %v2248, 126
        %v2259 = vpop.permute.xlu0 %2258
        %2260 = vrot.lane.b32.xlu0 %v2249, 126
        %v2261 = vpop.permute.xlu0 %2260
        %v2266 = vadd.f32 %v2240, %v2255
        %v2267 = vadd.f32 %v2241, %v2257
        %v2268 = vadd.f32 %v2242, %v2259
        %v2269 = vadd.f32 %v2243, %v2261
        %s2270 = sld [smem:[#allocation7 + $0x83]]
        %v2271 = vstv %s2270
        %v2272 = vmul.f32 %v2271, %v750
        %v2273 = vmul.f32 %v2271, %v751
        %v2274 = vmul.f32 %v2271, %v752
        %v2275 = vmul.f32 %v2271, %v753
        %v2276 = vmul.f32 %v2271, %v754
        %v2277 = vmul.f32 %v2271, %v755
        %v2278 = vmul.f32 %v2271, %v756
        %v2279 = vmul.f32 %v2271, %v757
        %v2288 = vrot.slane %v2272, 1
        %v2289 = vrot.slane %v2273, 1
        %v2290 = vsel %vm1304, %v2288, %v2289
        %v2291 = vrot.slane %v2274, 1
        %v2292 = vrot.slane %v2275, 1
        %v2293 = vsel %vm1304, %v2291, %v2292
        %v2294 = vrot.slane %v2276, 1
        %v2295 = vrot.slane %v2277, 1
        %v2296 = vsel %vm1304, %v2294, %v2295
        %v2297 = vrot.slane %v2278, 1
        %v2298 = vrot.slane %v2279, 1
        %v2299 = vsel %vm1304, %v2297, %v2298
        %v2304 = vadd.f32 %v2266, %v2290
        %v2305 = vadd.f32 %v2267, %v2293
        %v2306 = vadd.f32 %v2268, %v2296
        %v2307 = vadd.f32 %v2269, %v2299
        %s2308 = sld [smem:[#allocation7 + $0x84]]
        %v2309 = vstv %s2308
        %v2310 = vmul.f32 %v2309, %v750
        %v2311 = vmul.f32 %v2309, %v751
        %v2312 = vmul.f32 %v2309, %v752
        %v2313 = vmul.f32 %v2309, %v753
        %v2314 = vmul.f32 %v2309, %v754
        %v2315 = vmul.f32 %v2309, %v755
        %v2316 = vmul.f32 %v2309, %v756
        %v2317 = vmul.f32 %v2309, %v757
        %v2326 = vrot.slane %v2310, 1
        %v2327 = vrot.slane %v2311, 1
        %v2328 = vsel %vm1304, %v2326, %v2327
        %v2329 = vrot.slane %v2312, 1
        %v2330 = vrot.slane %v2313, 1
        %v2331 = vsel %vm1304, %v2329, %v2330
        %v2332 = vrot.slane %v2314, 1
        %v2333 = vrot.slane %v2315, 1
        %v2334 = vsel %vm1304, %v2332, %v2333
        %v2335 = vrot.slane %v2316, 1
        %v2336 = vrot.slane %v2317, 1
        %v2337 = vsel %vm1304, %v2335, %v2336
        %2338 = vrot.lane.b32.xlu0 %v2328, 127
        %v2339 = vpop.permute.xlu0 %2338
        %2340 = vrot.lane.b32.xlu0 %v2331, 127
        %v2341 = vpop.permute.xlu0 %2340
        %2342 = vrot.lane.b32.xlu0 %v2334, 127
        %v2343 = vpop.permute.xlu0 %2342
        %2344 = vrot.lane.b32.xlu0 %v2337, 127
        %v2345 = vpop.permute.xlu0 %2344
        %v2350 = vadd.f32 %v2304, %v2339
        %v2351 = vadd.f32 %v2305, %v2341
        %v2352 = vadd.f32 %v2306, %v2343
        %v2353 = vadd.f32 %v2307, %v2345
        %s2354 = sld [smem:[#allocation7 + $0x85]]
        %v2355 = vstv %s2354
        %v2356 = vmul.f32 %v2355, %v750
        %v2357 = vmul.f32 %v2355, %v751
        %v2358 = vmul.f32 %v2355, %v752
        %v2359 = vmul.f32 %v2355, %v753
        %v2360 = vmul.f32 %v2355, %v754
        %v2361 = vmul.f32 %v2355, %v755
        %v2362 = vmul.f32 %v2355, %v756
        %v2363 = vmul.f32 %v2355, %v757
        %v2372 = vrot.slane %v2356, 1
        %v2373 = vrot.slane %v2357, 1
        %v2374 = vsel %vm1304, %v2372, %v2373
        %v2375 = vrot.slane %v2358, 1
        %v2376 = vrot.slane %v2359, 1
        %v2377 = vsel %vm1304, %v2375, %v2376
        %v2378 = vrot.slane %v2360, 1
        %v2379 = vrot.slane %v2361, 1
        %v2380 = vsel %vm1304, %v2378, %v2379
        %v2381 = vrot.slane %v2362, 1
        %v2382 = vrot.slane %v2363, 1
        %v2383 = vsel %vm1304, %v2381, %v2382
        %2384 = vrot.lane.b32.xlu0 %v2374, 126
        %v2385 = vpop.permute.xlu0 %2384
        %2386 = vrot.lane.b32.xlu0 %v2377, 126
        %v2387 = vpop.permute.xlu0 %2386
        %2388 = vrot.lane.b32.xlu0 %v2380, 126
        %v2389 = vpop.permute.xlu0 %2388
        %2390 = vrot.lane.b32.xlu0 %v2383, 126
        %v2391 = vpop.permute.xlu0 %2390
        %v2396 = vadd.f32 %v2350, %v2385
        %v2397 = vadd.f32 %v2351, %v2387
        %v2398 = vadd.f32 %v2352, %v2389
        %v2399 = vadd.f32 %v2353, %v2391
        %s2400 = sld [smem:[#allocation7 + $0x86]]
        %v2401 = vstv %s2400
        %v2402 = vmul.f32 %v2401, %v750
        %v2403 = vmul.f32 %v2401, %v751
        %v2404 = vmul.f32 %v2401, %v752
        %v2405 = vmul.f32 %v2401, %v753
        %v2406 = vmul.f32 %v2401, %v754
        %v2407 = vmul.f32 %v2401, %v755
        %v2408 = vmul.f32 %v2401, %v756
        %v2409 = vmul.f32 %v2401, %v757
        %v2418 = vrot.slane %v2402, 2
        %v2419 = vrot.slane %v2403, 2
        %v2420 = vsel %vm1435, %v2418, %v2419
        %v2421 = vrot.slane %v2404, 2
        %v2422 = vrot.slane %v2405, 2
        %v2423 = vsel %vm1435, %v2421, %v2422
        %v2424 = vrot.slane %v2406, 2
        %v2425 = vrot.slane %v2407, 2
        %v2426 = vsel %vm1435, %v2424, %v2425
        %v2427 = vrot.slane %v2408, 2
        %v2428 = vrot.slane %v2409, 2
        %v2429 = vsel %vm1435, %v2427, %v2428
        %v2434 = vadd.f32 %v2396, %v2420
        %v2435 = vadd.f32 %v2397, %v2423
        %v2436 = vadd.f32 %v2398, %v2426
        %v2437 = vadd.f32 %v2399, %v2429
        %s2438 = sld [smem:[#allocation7 + $0x87]]
        %v2439 = vstv %s2438
        %v2440 = vmul.f32 %v2439, %v750
        %v2441 = vmul.f32 %v2439, %v751
        %v2442 = vmul.f32 %v2439, %v752
        %v2443 = vmul.f32 %v2439, %v753
        %v2444 = vmul.f32 %v2439, %v754
        %v2445 = vmul.f32 %v2439, %v755
        %v2446 = vmul.f32 %v2439, %v756
        %v2447 = vmul.f32 %v2439, %v757
        %v2456 = vrot.slane %v2440, 2
        %v2457 = vrot.slane %v2441, 2
        %v2458 = vsel %vm1435, %v2456, %v2457
        %v2459 = vrot.slane %v2442, 2
        %v2460 = vrot.slane %v2443, 2
        %v2461 = vsel %vm1435, %v2459, %v2460
        %v2462 = vrot.slane %v2444, 2
        %v2463 = vrot.slane %v2445, 2
        %v2464 = vsel %vm1435, %v2462, %v2463
        %v2465 = vrot.slane %v2446, 2
        %v2466 = vrot.slane %v2447, 2
        %v2467 = vsel %vm1435, %v2465, %v2466
        %2468 = vrot.lane.b32.xlu0 %v2458, 127
        %v2469 = vpop.permute.xlu0 %2468
        %2470 = vrot.lane.b32.xlu0 %v2461, 127
        %v2471 = vpop.permute.xlu0 %2470
        %2472 = vrot.lane.b32.xlu0 %v2464, 127
        %v2473 = vpop.permute.xlu0 %2472
        %2474 = vrot.lane.b32.xlu0 %v2467, 127
        %v2475 = vpop.permute.xlu0 %2474
        %v2480 = vadd.f32 %v2434, %v2469
        %v2481 = vadd.f32 %v2435, %v2471
        %v2482 = vadd.f32 %v2436, %v2473
        %v2483 = vadd.f32 %v2437, %v2475
        %s2484 = sld [smem:[#allocation7 + $0x88]]
        %v2485 = vstv %s2484
        %v2486 = vmul.f32 %v2485, %v750
        %v2487 = vmul.f32 %v2485, %v751
        %v2488 = vmul.f32 %v2485, %v752
        %v2489 = vmul.f32 %v2485, %v753
        %v2490 = vmul.f32 %v2485, %v754
        %v2491 = vmul.f32 %v2485, %v755
        %v2492 = vmul.f32 %v2485, %v756
        %v2493 = vmul.f32 %v2485, %v757
        %v2502 = vrot.slane %v2486, 2
        %v2503 = vrot.slane %v2487, 2
        %v2504 = vsel %vm1435, %v2502, %v2503
        %v2505 = vrot.slane %v2488, 2
        %v2506 = vrot.slane %v2489, 2
        %v2507 = vsel %vm1435, %v2505, %v2506
        %v2508 = vrot.slane %v2490, 2
        %v2509 = vrot.slane %v2491, 2
        %v2510 = vsel %vm1435, %v2508, %v2509
        %v2511 = vrot.slane %v2492, 2
        %v2512 = vrot.slane %v2493, 2
        %v2513 = vsel %vm1435, %v2511, %v2512
        %2514 = vrot.lane.b32.xlu0 %v2504, 126
        %v2515 = vpop.permute.xlu0 %2514
        %2516 = vrot.lane.b32.xlu0 %v2507, 126
        %v2517 = vpop.permute.xlu0 %2516
        %2518 = vrot.lane.b32.xlu0 %v2510, 126
        %v2519 = vpop.permute.xlu0 %2518
        %2520 = vrot.lane.b32.xlu0 %v2513, 126
        %v2521 = vpop.permute.xlu0 %2520
        %v2526 = vadd.f32 %v2480, %v2515
        %v2527 = vadd.f32 %v2481, %v2517
        %v2528 = vadd.f32 %v2482, %v2519
        %v2529 = vadd.f32 %v2483, %v2521
        %s2530 = sld [smem:[#allocation7 + $0x89]]
        %v2531 = vstv %s2530
        %v2532 = vmul.f32 %v2531, %v752
        %v2533 = vmul.f32 %v2531, %v754
        %v2534 = vmul.f32 %v2531, %v756
        %v2535 = vmul.f32 %v2531, %v758
        %v2536 = vadd.f32 %v2526, %v2532
        %v2537 = vadd.f32 %v2527, %v2533
        %v2538 = vadd.f32 %v2528, %v2534
        %v2539 = vadd.f32 %v2529, %v2535
        %s2540 = sld [smem:[#allocation7 + $0x8a]]
        %v2541 = vstv %s2540
        %v2542 = vmul.f32 %v2541, %v752
        %v2543 = vmul.f32 %v2541, %v754
        %v2544 = vmul.f32 %v2541, %v756
        %v2545 = vmul.f32 %v2541, %v758
        %2550 = vrot.lane.b32.xlu0 %v2542, 127
        %v2551 = vpop.permute.xlu0 %2550
        %2552 = vrot.lane.b32.xlu0 %v2543, 127
        %v2553 = vpop.permute.xlu0 %2552
        %2554 = vrot.lane.b32.xlu0 %v2544, 127
        %v2555 = vpop.permute.xlu0 %2554
        %2556 = vrot.lane.b32.xlu0 %v2545, 127
        %v2557 = vpop.permute.xlu0 %2556
        %v2562 = vadd.f32 %v2536, %v2551
        %v2563 = vadd.f32 %v2537, %v2553
        %v2564 = vadd.f32 %v2538, %v2555
        %v2565 = vadd.f32 %v2539, %v2557
        %s2566 = sld [smem:[#allocation7 + $0x8b]]
        %v2567 = vstv %s2566
        %v2568 = vmul.f32 %v2567, %v752
        %v2569 = vmul.f32 %v2567, %v754
        %v2570 = vmul.f32 %v2567, %v756
        %v2571 = vmul.f32 %v2567, %v758
        %2576 = vrot.lane.b32.xlu0 %v2568, 126
        %v2577 = vpop.permute.xlu0 %2576
        %2578 = vrot.lane.b32.xlu0 %v2569, 126
        %v2579 = vpop.permute.xlu0 %2578
        %2580 = vrot.lane.b32.xlu0 %v2570, 126
        %v2581 = vpop.permute.xlu0 %2580
        %2582 = vrot.lane.b32.xlu0 %v2571, 126
        %v2583 = vpop.permute.xlu0 %2582
        %v2588 = vadd.f32 %v2562, %v2577
        %v2589 = vadd.f32 %v2563, %v2579
        %v2590 = vadd.f32 %v2564, %v2581
        %v2591 = vadd.f32 %v2565, %v2583
        %s2592 = sld [smem:[#allocation7 + $0x8c]]
        %v2593 = vstv %s2592
        %v2594 = vmul.f32 %v2593, %v752
        %v2595 = vmul.f32 %v2593, %v753
        %v2596 = vmul.f32 %v2593, %v754
        %v2597 = vmul.f32 %v2593, %v755
        %v2598 = vmul.f32 %v2593, %v756
        %v2599 = vmul.f32 %v2593, %v757
        %v2600 = vmul.f32 %v2593, %v758
        %v2601 = vmul.f32 %v2593, %v759
        %v2610 = vrot.slane %v2594, 1
        %v2611 = vrot.slane %v2595, 1
        %v2612 = vsel %vm1304, %v2610, %v2611
        %v2613 = vrot.slane %v2596, 1
        %v2614 = vrot.slane %v2597, 1
        %v2615 = vsel %vm1304, %v2613, %v2614
        %v2616 = vrot.slane %v2598, 1
        %v2617 = vrot.slane %v2599, 1
        %v2618 = vsel %vm1304, %v2616, %v2617
        %v2619 = vrot.slane %v2600, 1
        %v2620 = vrot.slane %v2601, 1
        %v2621 = vsel %vm1304, %v2619, %v2620
        %v2626 = vadd.f32 %v2588, %v2612
        %v2627 = vadd.f32 %v2589, %v2615
        %v2628 = vadd.f32 %v2590, %v2618
        %v2629 = vadd.f32 %v2591, %v2621
        %s2630 = sld [smem:[#allocation7 + $0x8d]]
        %v2631 = vstv %s2630
        %v2632 = vmul.f32 %v2631, %v752
        %v2633 = vmul.f32 %v2631, %v753
        %v2634 = vmul.f32 %v2631, %v754
        %v2635 = vmul.f32 %v2631, %v755
        %v2636 = vmul.f32 %v2631, %v756
        %v2637 = vmul.f32 %v2631, %v757
        %v2638 = vmul.f32 %v2631, %v758
        %v2639 = vmul.f32 %v2631, %v759
        %v2648 = vrot.slane %v2632, 1
        %v2649 = vrot.slane %v2633, 1
        %v2650 = vsel %vm1304, %v2648, %v2649
        %v2651 = vrot.slane %v2634, 1
        %v2652 = vrot.slane %v2635, 1
        %v2653 = vsel %vm1304, %v2651, %v2652
        %v2654 = vrot.slane %v2636, 1
        %v2655 = vrot.slane %v2637, 1
        %v2656 = vsel %vm1304, %v2654, %v2655
        %v2657 = vrot.slane %v2638, 1
        %v2658 = vrot.slane %v2639, 1
        %v2659 = vsel %vm1304, %v2657, %v2658
        %2660 = vrot.lane.b32.xlu0 %v2650, 127
        %v2661 = vpop.permute.xlu0 %2660
        %2662 = vrot.lane.b32.xlu0 %v2653, 127
        %v2663 = vpop.permute.xlu0 %2662
        %2664 = vrot.lane.b32.xlu0 %v2656, 127
        %v2665 = vpop.permute.xlu0 %2664
        %2666 = vrot.lane.b32.xlu0 %v2659, 127
        %v2667 = vpop.permute.xlu0 %2666
        %v2672 = vadd.f32 %v2626, %v2661
        %v2673 = vadd.f32 %v2627, %v2663
        %v2674 = vadd.f32 %v2628, %v2665
        %v2675 = vadd.f32 %v2629, %v2667
        %s2676 = sld [smem:[#allocation7 + $0x8e]]
        %v2677 = vstv %s2676
        %v2678 = vmul.f32 %v2677, %v752
        %v2679 = vmul.f32 %v2677, %v753
        %v2680 = vmul.f32 %v2677, %v754
        %v2681 = vmul.f32 %v2677, %v755
        %v2682 = vmul.f32 %v2677, %v756
        %v2683 = vmul.f32 %v2677, %v757
        %v2684 = vmul.f32 %v2677, %v758
        %v2685 = vmul.f32 %v2677, %v759
        %v2694 = vrot.slane %v2678, 1
        %v2695 = vrot.slane %v2679, 1
        %v2696 = vsel %vm1304, %v2694, %v2695
        %v2697 = vrot.slane %v2680, 1
        %v2698 = vrot.slane %v2681, 1
        %v2699 = vsel %vm1304, %v2697, %v2698
        %v2700 = vrot.slane %v2682, 1
        %v2701 = vrot.slane %v2683, 1
        %v2702 = vsel %vm1304, %v2700, %v2701
        %v2703 = vrot.slane %v2684, 1
        %v2704 = vrot.slane %v2685, 1
        %v2705 = vsel %vm1304, %v2703, %v2704
        %2706 = vrot.lane.b32.xlu0 %v2696, 126
        %v2707 = vpop.permute.xlu0 %2706
        %2708 = vrot.lane.b32.xlu0 %v2699, 126
        %v2709 = vpop.permute.xlu0 %2708
        %2710 = vrot.lane.b32.xlu0 %v2702, 126
        %v2711 = vpop.permute.xlu0 %2710
        %2712 = vrot.lane.b32.xlu0 %v2705, 126
        %v2713 = vpop.permute.xlu0 %2712
        %v2718 = vadd.f32 %v2672, %v2707
        %v2719 = vadd.f32 %v2673, %v2709
        %v2720 = vadd.f32 %v2674, %v2711
        %v2721 = vadd.f32 %v2675, %v2713
        %s2722 = sld [smem:[#allocation7 + $0x8f]]
        %v2723 = vstv %s2722
        %v2724 = vmul.f32 %v2723, %v752
        %v2725 = vmul.f32 %v2723, %v753
        %v2726 = vmul.f32 %v2723, %v754
        %v2727 = vmul.f32 %v2723, %v755
        %v2728 = vmul.f32 %v2723, %v756
        %v2729 = vmul.f32 %v2723, %v757
        %v2730 = vmul.f32 %v2723, %v758
        %v2731 = vmul.f32 %v2723, %v759
        %v2740 = vrot.slane %v2724, 2
        %v2741 = vrot.slane %v2725, 2
        %v2742 = vsel %vm1435, %v2740, %v2741
        %v2743 = vrot.slane %v2726, 2
        %v2744 = vrot.slane %v2727, 2
        %v2745 = vsel %vm1435, %v2743, %v2744
        %v2746 = vrot.slane %v2728, 2
        %v2747 = vrot.slane %v2729, 2
        %v2748 = vsel %vm1435, %v2746, %v2747
        %v2749 = vrot.slane %v2730, 2
        %v2750 = vrot.slane %v2731, 2
        %v2751 = vsel %vm1435, %v2749, %v2750
        %v2756 = vadd.f32 %v2718, %v2742
        %v2757 = vadd.f32 %v2719, %v2745
        %v2758 = vadd.f32 %v2720, %v2748
        %v2759 = vadd.f32 %v2721, %v2751
        %s2760 = sld [smem:[#allocation7 + $0x90]]
        %v2761 = vstv %s2760
        %v2762 = vmul.f32 %v2761, %v752
        %v2763 = vmul.f32 %v2761, %v753
        %v2764 = vmul.f32 %v2761, %v754
        %v2765 = vmul.f32 %v2761, %v755
        %v2766 = vmul.f32 %v2761, %v756
        %v2767 = vmul.f32 %v2761, %v757
        %v2768 = vmul.f32 %v2761, %v758
        %v2769 = vmul.f32 %v2761, %v759
        %v2778 = vrot.slane %v2762, 2
        %v2779 = vrot.slane %v2763, 2
        %v2780 = vsel %vm1435, %v2778, %v2779
        %v2781 = vrot.slane %v2764, 2
        %v2782 = vrot.slane %v2765, 2
        %v2783 = vsel %vm1435, %v2781, %v2782
        %v2784 = vrot.slane %v2766, 2
        %v2785 = vrot.slane %v2767, 2
        %v2786 = vsel %vm1435, %v2784, %v2785
        %v2787 = vrot.slane %v2768, 2
        %v2788 = vrot.slane %v2769, 2
        %v2789 = vsel %vm1435, %v2787, %v2788
        %2790 = vrot.lane.b32.xlu0 %v2780, 127
        %v2791 = vpop.permute.xlu0 %2790
        %2792 = vrot.lane.b32.xlu0 %v2783, 127
        %v2793 = vpop.permute.xlu0 %2792
        %2794 = vrot.lane.b32.xlu0 %v2786, 127
        %v2795 = vpop.permute.xlu0 %2794
        %2796 = vrot.lane.b32.xlu0 %v2789, 127
        %v2797 = vpop.permute.xlu0 %2796
        %v2802 = vadd.f32 %v2756, %v2791
        %v2803 = vadd.f32 %v2757, %v2793
        %v2804 = vadd.f32 %v2758, %v2795
        %v2805 = vadd.f32 %v2759, %v2797
        %s2806 = sld [smem:[#allocation7 + $0x91]]
        %v2807 = vstv %s2806
        %v2808 = vmul.f32 %v2807, %v752
        %v2809 = vmul.f32 %v2807, %v753
        %v2810 = vmul.f32 %v2807, %v754
        %v2811 = vmul.f32 %v2807, %v755
        %v2812 = vmul.f32 %v2807, %v756
        %v2813 = vmul.f32 %v2807, %v757
        %v2814 = vmul.f32 %v2807, %v758
        %v2815 = vmul.f32 %v2807, %v759
        %v2824 = vrot.slane %v2808, 2
        %v2825 = vrot.slane %v2809, 2
        %v2826 = vsel %vm1435, %v2824, %v2825
        %v2827 = vrot.slane %v2810, 2
        %v2828 = vrot.slane %v2811, 2
        %v2829 = vsel %vm1435, %v2827, %v2828
        %v2830 = vrot.slane %v2812, 2
        %v2831 = vrot.slane %v2813, 2
        %v2832 = vsel %vm1435, %v2830, %v2831
        %v2833 = vrot.slane %v2814, 2
        %v2834 = vrot.slane %v2815, 2
        %v2835 = vsel %vm1435, %v2833, %v2834
        %2836 = vrot.lane.b32.xlu0 %v2826, 126
        %v2837 = vpop.permute.xlu0 %2836
        %2838 = vrot.lane.b32.xlu0 %v2829, 126
        %v2839 = vpop.permute.xlu0 %2838
        %2840 = vrot.lane.b32.xlu0 %v2832, 126
        %v2841 = vpop.permute.xlu0 %2840
        %2842 = vrot.lane.b32.xlu0 %v2835, 126
        %v2843 = vpop.permute.xlu0 %2842
        %v2848 = vadd.f32 %v2802, %v2837
        %v2849 = vadd.f32 %v2803, %v2839
        %v2850 = vadd.f32 %v2804, %v2841
        %v2851 = vadd.f32 %v2805, %v2843
        %s2852 = sld [smem:[#allocation7 + $0x92]]
        %v2853 = vstv %s2852
        %v2854 = vmul.f32 %v2853, %v754
        %v2855 = vmul.f32 %v2853, %v756
        %v2856 = vmul.f32 %v2853, %v758
        %v2857 = vmul.f32 %v2853, %v760
        %v2858 = vadd.f32 %v2848, %v2854
        %v2859 = vadd.f32 %v2849, %v2855
        %v2860 = vadd.f32 %v2850, %v2856
        %v2861 = vadd.f32 %v2851, %v2857
        %s2862 = sld [smem:[#allocation7 + $0x93]]
        %v2863 = vstv %s2862
        %v2864 = vmul.f32 %v2863, %v754
        %v2865 = vmul.f32 %v2863, %v756
        %v2866 = vmul.f32 %v2863, %v758
        %v2867 = vmul.f32 %v2863, %v760
        %2872 = vrot.lane.b32.xlu0 %v2864, 127
        %v2873 = vpop.permute.xlu0 %2872
        %2874 = vrot.lane.b32.xlu0 %v2865, 127
        %v2875 = vpop.permute.xlu0 %2874
        %2876 = vrot.lane.b32.xlu0 %v2866, 127
        %v2877 = vpop.permute.xlu0 %2876
        %2878 = vrot.lane.b32.xlu0 %v2867, 127
        %v2879 = vpop.permute.xlu0 %2878
        %v2884 = vadd.f32 %v2858, %v2873
        %v2885 = vadd.f32 %v2859, %v2875
        %v2886 = vadd.f32 %v2860, %v2877
        %v2887 = vadd.f32 %v2861, %v2879
        %s2888 = sld [smem:[#allocation7 + $0x94]]
        %v2889 = vstv %s2888
        %v2890 = vmul.f32 %v2889, %v754
        %v2891 = vmul.f32 %v2889, %v756
        %v2892 = vmul.f32 %v2889, %v758
        %v2893 = vmul.f32 %v2889, %v760
        %2898 = vrot.lane.b32.xlu0 %v2890, 126
        %v2899 = vpop.permute.xlu0 %2898
        %2900 = vrot.lane.b32.xlu0 %v2891, 126
        %v2901 = vpop.permute.xlu0 %2900
        %2902 = vrot.lane.b32.xlu0 %v2892, 126
        %v2903 = vpop.permute.xlu0 %2902
        %2904 = vrot.lane.b32.xlu0 %v2893, 126
        %v2905 = vpop.permute.xlu0 %2904
        %v2910 = vadd.f32 %v2884, %v2899
        %v2911 = vadd.f32 %v2885, %v2901
        %v2912 = vadd.f32 %v2886, %v2903
        %v2913 = vadd.f32 %v2887, %v2905
        %s2914 = sld [smem:[#allocation7 + $0x95]]
        %v2915 = vstv %s2914
        %v2916 = vmul.f32 %v2915, %v754
        %v2917 = vmul.f32 %v2915, %v755
        %v2918 = vmul.f32 %v2915, %v756
        %v2919 = vmul.f32 %v2915, %v757
        %v2920 = vmul.f32 %v2915, %v758
        %v2921 = vmul.f32 %v2915, %v759
        %v2922 = vmul.f32 %v2915, %v760
        %v2923 = vmul.f32 %v2915, %v761
        %v2932 = vrot.slane %v2916, 1
        %v2933 = vrot.slane %v2917, 1
        %v2934 = vsel %vm1304, %v2932, %v2933
        %v2935 = vrot.slane %v2918, 1
        %v2936 = vrot.slane %v2919, 1
        %v2937 = vsel %vm1304, %v2935, %v2936
        %v2938 = vrot.slane %v2920, 1
        %v2939 = vrot.slane %v2921, 1
        %v2940 = vsel %vm1304, %v2938, %v2939
        %v2941 = vrot.slane %v2922, 1
        %v2942 = vrot.slane %v2923, 1
        %v2943 = vsel %vm1304, %v2941, %v2942
        %v2948 = vadd.f32 %v2910, %v2934
        %v2949 = vadd.f32 %v2911, %v2937
        %v2950 = vadd.f32 %v2912, %v2940
        %v2951 = vadd.f32 %v2913, %v2943
        %s2952 = sld [smem:[#allocation7 + $0x96]]
        %v2953 = vstv %s2952
        %v2954 = vmul.f32 %v2953, %v754
        %v2955 = vmul.f32 %v2953, %v755
        %v2956 = vmul.f32 %v2953, %v756
        %v2957 = vmul.f32 %v2953, %v757
        %v2958 = vmul.f32 %v2953, %v758
        %v2959 = vmul.f32 %v2953, %v759
        %v2960 = vmul.f32 %v2953, %v760
        %v2961 = vmul.f32 %v2953, %v761
        %v2970 = vrot.slane %v2954, 1
        %v2971 = vrot.slane %v2955, 1
        %v2972 = vsel %vm1304, %v2970, %v2971
        %v2973 = vrot.slane %v2956, 1
        %v2974 = vrot.slane %v2957, 1
        %v2975 = vsel %vm1304, %v2973, %v2974
        %v2976 = vrot.slane %v2958, 1
        %v2977 = vrot.slane %v2959, 1
        %v2978 = vsel %vm1304, %v2976, %v2977
        %v2979 = vrot.slane %v2960, 1
        %v2980 = vrot.slane %v2961, 1
        %v2981 = vsel %vm1304, %v2979, %v2980
        %2982 = vrot.lane.b32.xlu0 %v2972, 127
        %v2983 = vpop.permute.xlu0 %2982
        %2984 = vrot.lane.b32.xlu0 %v2975, 127
        %v2985 = vpop.permute.xlu0 %2984
        %2986 = vrot.lane.b32.xlu0 %v2978, 127
        %v2987 = vpop.permute.xlu0 %2986
        %2988 = vrot.lane.b32.xlu0 %v2981, 127
        %v2989 = vpop.permute.xlu0 %2988
        %v2994 = vadd.f32 %v2948, %v2983
        %v2995 = vadd.f32 %v2949, %v2985
        %v2996 = vadd.f32 %v2950, %v2987
        %v2997 = vadd.f32 %v2951, %v2989
        %s2998 = sld [smem:[#allocation7 + $0x97]]
        %v2999 = vstv %s2998
        %v3000 = vmul.f32 %v2999, %v754
        %v3001 = vmul.f32 %v2999, %v755
        %v3002 = vmul.f32 %v2999, %v756
        %v3003 = vmul.f32 %v2999, %v757
        %v3004 = vmul.f32 %v2999, %v758
        %v3005 = vmul.f32 %v2999, %v759
        %v3006 = vmul.f32 %v2999, %v760
        %v3007 = vmul.f32 %v2999, %v761
        %v3016 = vrot.slane %v3000, 1
        %v3017 = vrot.slane %v3001, 1
        %v3018 = vsel %vm1304, %v3016, %v3017
        %v3019 = vrot.slane %v3002, 1
        %v3020 = vrot.slane %v3003, 1
        %v3021 = vsel %vm1304, %v3019, %v3020
        %v3022 = vrot.slane %v3004, 1
        %v3023 = vrot.slane %v3005, 1
        %v3024 = vsel %vm1304, %v3022, %v3023
        %v3025 = vrot.slane %v3006, 1
        %v3026 = vrot.slane %v3007, 1
        %v3027 = vsel %vm1304, %v3025, %v3026
        %3028 = vrot.lane.b32.xlu0 %v3018, 126
        %v3029 = vpop.permute.xlu0 %3028
        %3030 = vrot.lane.b32.xlu0 %v3021, 126
        %v3031 = vpop.permute.xlu0 %3030
        %3032 = vrot.lane.b32.xlu0 %v3024, 126
        %v3033 = vpop.permute.xlu0 %3032
        %3034 = vrot.lane.b32.xlu0 %v3027, 126
        %v3035 = vpop.permute.xlu0 %3034
        %v3040 = vadd.f32 %v2994, %v3029
        %v3041 = vadd.f32 %v2995, %v3031
        %v3042 = vadd.f32 %v2996, %v3033
        %v3043 = vadd.f32 %v2997, %v3035
        %s3044 = sld [smem:[#allocation7 + $0x98]]
        %v3045 = vstv %s3044
        %v3046 = vmul.f32 %v3045, %v754
        %v3047 = vmul.f32 %v3045, %v755
        %v3048 = vmul.f32 %v3045, %v756
        %v3049 = vmul.f32 %v3045, %v757
        %v3050 = vmul.f32 %v3045, %v758
        %v3051 = vmul.f32 %v3045, %v759
        %v3052 = vmul.f32 %v3045, %v760
        %v3053 = vmul.f32 %v3045, %v761
        %v3062 = vrot.slane %v3046, 2
        %v3063 = vrot.slane %v3047, 2
        %v3064 = vsel %vm1435, %v3062, %v3063
        %v3065 = vrot.slane %v3048, 2
        %v3066 = vrot.slane %v3049, 2
        %v3067 = vsel %vm1435, %v3065, %v3066
        %v3068 = vrot.slane %v3050, 2
        %v3069 = vrot.slane %v3051, 2
        %v3070 = vsel %vm1435, %v3068, %v3069
        %v3071 = vrot.slane %v3052, 2
        %v3072 = vrot.slane %v3053, 2
        %v3073 = vsel %vm1435, %v3071, %v3072
        %v3078 = vadd.f32 %v3040, %v3064
        %v3079 = vadd.f32 %v3041, %v3067
        %v3080 = vadd.f32 %v3042, %v3070
        %v3081 = vadd.f32 %v3043, %v3073
        %s3082 = sld [smem:[#allocation7 + $0x99]]
        %v3083 = vstv %s3082
        %v3084 = vmul.f32 %v3083, %v754
        %v3085 = vmul.f32 %v3083, %v755
        %v3086 = vmul.f32 %v3083, %v756
        %v3087 = vmul.f32 %v3083, %v757
        %v3088 = vmul.f32 %v3083, %v758
        %v3089 = vmul.f32 %v3083, %v759
        %v3090 = vmul.f32 %v3083, %v760
        %v3091 = vmul.f32 %v3083, %v761
        %v3100 = vrot.slane %v3084, 2
        %v3101 = vrot.slane %v3085, 2
        %v3102 = vsel %vm1435, %v3100, %v3101
        %v3103 = vrot.slane %v3086, 2
        %v3104 = vrot.slane %v3087, 2
        %v3105 = vsel %vm1435, %v3103, %v3104
        %v3106 = vrot.slane %v3088, 2
        %v3107 = vrot.slane %v3089, 2
        %v3108 = vsel %vm1435, %v3106, %v3107
        %v3109 = vrot.slane %v3090, 2
        %v3110 = vrot.slane %v3091, 2
        %v3111 = vsel %vm1435, %v3109, %v3110
        %3112 = vrot.lane.b32.xlu0 %v3102, 127
        %v3113 = vpop.permute.xlu0 %3112
        %3114 = vrot.lane.b32.xlu0 %v3105, 127
        %v3115 = vpop.permute.xlu0 %3114
        %3116 = vrot.lane.b32.xlu0 %v3108, 127
        %v3117 = vpop.permute.xlu0 %3116
        %3118 = vrot.lane.b32.xlu0 %v3111, 127
        %v3119 = vpop.permute.xlu0 %3118
        %v3124 = vadd.f32 %v3078, %v3113
        %v3125 = vadd.f32 %v3079, %v3115
        %v3126 = vadd.f32 %v3080, %v3117
        %v3127 = vadd.f32 %v3081, %v3119
        %s3128 = sld [smem:[#allocation7 + $0x9a]]
        %v3129 = vstv %s3128
        %v3130 = vmul.f32 %v3129, %v754
        %v3131 = vmul.f32 %v3129, %v755
        %v3132 = vmul.f32 %v3129, %v756
        %v3133 = vmul.f32 %v3129, %v757
        %v3134 = vmul.f32 %v3129, %v758
        %v3135 = vmul.f32 %v3129, %v759
        %v3136 = vmul.f32 %v3129, %v760
        %v3137 = vmul.f32 %v3129, %v761
        %v3146 = vrot.slane %v3130, 2
        %v3147 = vrot.slane %v3131, 2
        %v3148 = vsel %vm1435, %v3146, %v3147
        %v3149 = vrot.slane %v3132, 2
        %v3150 = vrot.slane %v3133, 2
        %v3151 = vsel %vm1435, %v3149, %v3150
        %v3152 = vrot.slane %v3134, 2
        %v3153 = vrot.slane %v3135, 2
        %v3154 = vsel %vm1435, %v3152, %v3153
        %v3155 = vrot.slane %v3136, 2
        %v3156 = vrot.slane %v3137, 2
        %v3157 = vsel %vm1435, %v3155, %v3156
        %3158 = vrot.lane.b32.xlu0 %v3148, 126
        %v3159 = vpop.permute.xlu0 %3158
        %3160 = vrot.lane.b32.xlu0 %v3151, 126
        %v3161 = vpop.permute.xlu0 %3160
        %3162 = vrot.lane.b32.xlu0 %v3154, 126
        %v3163 = vpop.permute.xlu0 %3162
        %3164 = vrot.lane.b32.xlu0 %v3157, 126
        %v3165 = vpop.permute.xlu0 %3164
        %v3170 = vadd.f32 %v3124, %v3159
        %v3171 = vadd.f32 %v3125, %v3161
        %v3172 = vadd.f32 %v3126, %v3163
        %v3173 = vadd.f32 %v3127, %v3165
        %s3174 = sld [smem:[#allocation8 + $0x1]]
        %v3175 = vstv %s3174
        %v3176 = vadd.f32 %v3170, %v3175
        %v3177 = vadd.f32 %v3171, %v3175
        %v3178 = vadd.f32 %v3172, %v3175
        %v3179 = vadd.f32 %v3173, %v3175
        %v3180 = vmax.f32 %v3176, 0.0
        %v3181 = vmax.f32 %v3177, 0.0
        %v3182 = vmax.f32 %v3178, 0.0
        %v3183 = vmax.f32 %v3179, 0.0
        %s3184 = scalar_lea.vmem %s269, 160 [#allocation10]
        %3185 = vst.msk [vmem:[%s3184] sm:$0xff] %vm2203, %v3180
        %3186 = vst.msk [vmem:[%s3184 + $0x8] sm:$0xff] %vm2203, %v3181
        %3187 = vst.msk [vmem:[%s3184 + $0x10] sm:$0xff] %vm2203, %v3182
        %3188 = vst.msk [vmem:[%s3184 + $0x18] sm:$0xff] %vm2203, %v3183
        %s3189 = sld [smem:[#allocation7 + $0x100]]
        %v3190 = vstv %s3189
        %v3191 = vmul.f32 %v3190, %v981
        %v3192 = vmul.f32 %v3190, %v983
        %v3193 = vmul.f32 %v3190, %v985
        %v3194 = vmul.f32 %v3190, %v987
        %v3195 = vadd.f32 %v3191, 0.0
        %v3196 = vadd.f32 %v3192, 0.0
        %v3197 = vadd.f32 %v3193, 0.0
        %v3198 = vadd.f32 %v3194, 0.0
        %s3199 = sld [smem:[#allocation7 + $0x101]]
        %v3200 = vstv %s3199
        %v3201 = vmul.f32 %v3200, %v981
        %v3202 = vmul.f32 %v3200, %v983
        %v3203 = vmul.f32 %v3200, %v985
        %v3204 = vmul.f32 %v3200, %v987
        %3209 = vrot.lane.b32.xlu0 %v3201, 127
        %v3210 = vpop.permute.xlu0 %3209
        %3211 = vrot.lane.b32.xlu0 %v3202, 127
        %v3212 = vpop.permute.xlu0 %3211
        %3213 = vrot.lane.b32.xlu0 %v3203, 127
        %v3214 = vpop.permute.xlu0 %3213
        %3215 = vrot.lane.b32.xlu0 %v3204, 127
        %v3216 = vpop.permute.xlu0 %3215
        %v3221 = vadd.f32 %v3195, %v3210
        %v3222 = vadd.f32 %v3196, %v3212
        %v3223 = vadd.f32 %v3197, %v3214
        %v3224 = vadd.f32 %v3198, %v3216
        %s3225 = sld [smem:[#allocation7 + $0x102]]
        %v3226 = vstv %s3225
        %v3227 = vmul.f32 %v3226, %v981
        %v3228 = vmul.f32 %v3226, %v983
        %v3229 = vmul.f32 %v3226, %v985
        %v3230 = vmul.f32 %v3226, %v987
        %3235 = vrot.lane.b32.xlu0 %v3227, 126
        %v3236 = vpop.permute.xlu0 %3235
        %3237 = vrot.lane.b32.xlu0 %v3228, 126
        %v3238 = vpop.permute.xlu0 %3237
        %3239 = vrot.lane.b32.xlu0 %v3229, 126
        %v3240 = vpop.permute.xlu0 %3239
        %3241 = vrot.lane.b32.xlu0 %v3230, 126
        %v3242 = vpop.permute.xlu0 %3241
        %v3247 = vadd.f32 %v3221, %v3236
        %v3248 = vadd.f32 %v3222, %v3238
        %v3249 = vadd.f32 %v3223, %v3240
        %v3250 = vadd.f32 %v3224, %v3242
        %s3251 = sld [smem:[#allocation7 + $0x103]]
        %v3252 = vstv %s3251
        %v3253 = vmul.f32 %v3252, %v981
        %v3254 = vmul.f32 %v3252, %v982
        %v3255 = vmul.f32 %v3252, %v983
        %v3256 = vmul.f32 %v3252, %v984
        %v3257 = vmul.f32 %v3252, %v985
        %v3258 = vmul.f32 %v3252, %v986
        %v3259 = vmul.f32 %v3252, %v987
        %v3260 = vmul.f32 %v3252, %v988
        %v3269 = vrot.slane %v3253, 1
        %v3270 = vrot.slane %v3254, 1
        %v3271 = vsel %vm1304, %v3269, %v3270
        %v3272 = vrot.slane %v3255, 1
        %v3273 = vrot.slane %v3256, 1
        %v3274 = vsel %vm1304, %v3272, %v3273
        %v3275 = vrot.slane %v3257, 1
        %v3276 = vrot.slane %v3258, 1
        %v3277 = vsel %vm1304, %v3275, %v3276
        %v3278 = vrot.slane %v3259, 1
        %v3279 = vrot.slane %v3260, 1
        %v3280 = vsel %vm1304, %v3278, %v3279
        %v3285 = vadd.f32 %v3247, %v3271
        %v3286 = vadd.f32 %v3248, %v3274
        %v3287 = vadd.f32 %v3249, %v3277
        %v3288 = vadd.f32 %v3250, %v3280
        %s3289 = sld [smem:[#allocation7 + $0x104]]
        %v3290 = vstv %s3289
        %v3291 = vmul.f32 %v3290, %v981
        %v3292 = vmul.f32 %v3290, %v982
        %v3293 = vmul.f32 %v3290, %v983
        %v3294 = vmul.f32 %v3290, %v984
        %v3295 = vmul.f32 %v3290, %v985
        %v3296 = vmul.f32 %v3290, %v986
        %v3297 = vmul.f32 %v3290, %v987
        %v3298 = vmul.f32 %v3290, %v988
        %v3307 = vrot.slane %v3291, 1
        %v3308 = vrot.slane %v3292, 1
        %v3309 = vsel %vm1304, %v3307, %v3308
        %v3310 = vrot.slane %v3293, 1
        %v3311 = vrot.slane %v3294, 1
        %v3312 = vsel %vm1304, %v3310, %v3311
        %v3313 = vrot.slane %v3295, 1
        %v3314 = vrot.slane %v3296, 1
        %v3315 = vsel %vm1304, %v3313, %v3314
        %v3316 = vrot.slane %v3297, 1
        %v3317 = vrot.slane %v3298, 1
        %v3318 = vsel %vm1304, %v3316, %v3317
        %3319 = vrot.lane.b32.xlu0 %v3309, 127
        %v3320 = vpop.permute.xlu0 %3319
        %3321 = vrot.lane.b32.xlu0 %v3312, 127
        %v3322 = vpop.permute.xlu0 %3321
        %3323 = vrot.lane.b32.xlu0 %v3315, 127
        %v3324 = vpop.permute.xlu0 %3323
        %3325 = vrot.lane.b32.xlu0 %v3318, 127
        %v3326 = vpop.permute.xlu0 %3325
        %v3331 = vadd.f32 %v3285, %v3320
        %v3332 = vadd.f32 %v3286, %v3322
        %v3333 = vadd.f32 %v3287, %v3324
        %v3334 = vadd.f32 %v3288, %v3326
        %s3335 = sld [smem:[#allocation7 + $0x105]]
        %v3336 = vstv %s3335
        %v3337 = vmul.f32 %v3336, %v981
        %v3338 = vmul.f32 %v3336, %v982
        %v3339 = vmul.f32 %v3336, %v983
        %v3340 = vmul.f32 %v3336, %v984
        %v3341 = vmul.f32 %v3336, %v985
        %v3342 = vmul.f32 %v3336, %v986
        %v3343 = vmul.f32 %v3336, %v987
        %v3344 = vmul.f32 %v3336, %v988
        %v3353 = vrot.slane %v3337, 1
        %v3354 = vrot.slane %v3338, 1
        %v3355 = vsel %vm1304, %v3353, %v3354
        %v3356 = vrot.slane %v3339, 1
        %v3357 = vrot.slane %v3340, 1
        %v3358 = vsel %vm1304, %v3356, %v3357
        %v3359 = vrot.slane %v3341, 1
        %v3360 = vrot.slane %v3342, 1
        %v3361 = vsel %vm1304, %v3359, %v3360
        %v3362 = vrot.slane %v3343, 1
        %v3363 = vrot.slane %v3344, 1
        %v3364 = vsel %vm1304, %v3362, %v3363
        %3365 = vrot.lane.b32.xlu0 %v3355, 126
        %v3366 = vpop.permute.xlu0 %3365
        %3367 = vrot.lane.b32.xlu0 %v3358, 126
        %v3368 = vpop.permute.xlu0 %3367
        %3369 = vrot.lane.b32.xlu0 %v3361, 126
        %v3370 = vpop.permute.xlu0 %3369
        %3371 = vrot.lane.b32.xlu0 %v3364, 126
        %v3372 = vpop.permute.xlu0 %3371
        %v3377 = vadd.f32 %v3331, %v3366
        %v3378 = vadd.f32 %v3332, %v3368
        %v3379 = vadd.f32 %v3333, %v3370
        %v3380 = vadd.f32 %v3334, %v3372
        %s3381 = sld [smem:[#allocation7 + $0x106]]
        %v3382 = vstv %s3381
        %v3383 = vmul.f32 %v3382, %v981
        %v3384 = vmul.f32 %v3382, %v982
        %v3385 = vmul.f32 %v3382, %v983
        %v3386 = vmul.f32 %v3382, %v984
        %v3387 = vmul.f32 %v3382, %v985
        %v3388 = vmul.f32 %v3382, %v986
        %v3389 = vmul.f32 %v3382, %v987
        %v3390 = vmul.f32 %v3382, %v988
        %v3399 = vrot.slane %v3383, 2
        %v3400 = vrot.slane %v3384, 2
        %v3401 = vsel %vm1435, %v3399, %v3400
        %v3402 = vrot.slane %v3385, 2
        %v3403 = vrot.slane %v3386, 2
        %v3404 = vsel %vm1435, %v3402, %v3403
        %v3405 = vrot.slane %v3387, 2
        %v3406 = vrot.slane %v3388, 2
        %v3407 = vsel %vm1435, %v3405, %v3406
        %v3408 = vrot.slane %v3389, 2
        %v3409 = vrot.slane %v3390, 2
        %v3410 = vsel %vm1435, %v3408, %v3409
        %v3415 = vadd.f32 %v3377, %v3401
        %v3416 = vadd.f32 %v3378, %v3404
        %v3417 = vadd.f32 %v3379, %v3407
        %v3418 = vadd.f32 %v3380, %v3410
        %s3419 = sld [smem:[#allocation7 + $0x107]]
        %v3420 = vstv %s3419
        %v3421 = vmul.f32 %v3420, %v981
        %v3422 = vmul.f32 %v3420, %v982
        %v3423 = vmul.f32 %v3420, %v983
        %v3424 = vmul.f32 %v3420, %v984
        %v3425 = vmul.f32 %v3420, %v985
        %v3426 = vmul.f32 %v3420, %v986
        %v3427 = vmul.f32 %v3420, %v987
        %v3428 = vmul.f32 %v3420, %v988
        %v3437 = vrot.slane %v3421, 2
        %v3438 = vrot.slane %v3422, 2
        %v3439 = vsel %vm1435, %v3437, %v3438
        %v3440 = vrot.slane %v3423, 2
        %v3441 = vrot.slane %v3424, 2
        %v3442 = vsel %vm1435, %v3440, %v3441
        %v3443 = vrot.slane %v3425, 2
        %v3444 = vrot.slane %v3426, 2
        %v3445 = vsel %vm1435, %v3443, %v3444
        %v3446 = vrot.slane %v3427, 2
        %v3447 = vrot.slane %v3428, 2
        %v3448 = vsel %vm1435, %v3446, %v3447
        %3449 = vrot.lane.b32.xlu0 %v3439, 127
        %v3450 = vpop.permute.xlu0 %3449
        %3451 = vrot.lane.b32.xlu0 %v3442, 127
        %v3452 = vpop.permute.xlu0 %3451
        %3453 = vrot.lane.b32.xlu0 %v3445, 127
        %v3454 = vpop.permute.xlu0 %3453
        %3455 = vrot.lane.b32.xlu0 %v3448, 127
        %v3456 = vpop.permute.xlu0 %3455
        %v3461 = vadd.f32 %v3415, %v3450
        %v3462 = vadd.f32 %v3416, %v3452
        %v3463 = vadd.f32 %v3417, %v3454
        %v3464 = vadd.f32 %v3418, %v3456
        %s3465 = sld [smem:[#allocation7 + $0x108]]
        %v3466 = vstv %s3465
        %v3467 = vmul.f32 %v3466, %v981
        %v3468 = vmul.f32 %v3466, %v982
        %v3469 = vmul.f32 %v3466, %v983
        %v3470 = vmul.f32 %v3466, %v984
        %v3471 = vmul.f32 %v3466, %v985
        %v3472 = vmul.f32 %v3466, %v986
        %v3473 = vmul.f32 %v3466, %v987
        %v3474 = vmul.f32 %v3466, %v988
        %v3483 = vrot.slane %v3467, 2
        %v3484 = vrot.slane %v3468, 2
        %v3485 = vsel %vm1435, %v3483, %v3484
        %v3486 = vrot.slane %v3469, 2
        %v3487 = vrot.slane %v3470, 2
        %v3488 = vsel %vm1435, %v3486, %v3487
        %v3489 = vrot.slane %v3471, 2
        %v3490 = vrot.slane %v3472, 2
        %v3491 = vsel %vm1435, %v3489, %v3490
        %v3492 = vrot.slane %v3473, 2
        %v3493 = vrot.slane %v3474, 2
        %v3494 = vsel %vm1435, %v3492, %v3493
        %3495 = vrot.lane.b32.xlu0 %v3485, 126
        %v3496 = vpop.permute.xlu0 %3495
        %3497 = vrot.lane.b32.xlu0 %v3488, 126
        %v3498 = vpop.permute.xlu0 %3497
        %3499 = vrot.lane.b32.xlu0 %v3491, 126
        %v3500 = vpop.permute.xlu0 %3499
        %3501 = vrot.lane.b32.xlu0 %v3494, 126
        %v3502 = vpop.permute.xlu0 %3501
        %v3507 = vadd.f32 %v3461, %v3496
        %v3508 = vadd.f32 %v3462, %v3498
        %v3509 = vadd.f32 %v3463, %v3500
        %v3510 = vadd.f32 %v3464, %v3502
        %s3511 = sld [smem:[#allocation7 + $0x109]]
        %v3512 = vstv %s3511
        %v3513 = vmul.f32 %v3512, %v983
        %v3514 = vmul.f32 %v3512, %v985
        %v3515 = vmul.f32 %v3512, %v987
        %v3516 = vmul.f32 %v3512, %v989
        %v3517 = vadd.f32 %v3507, %v3513
        %v3518 = vadd.f32 %v3508, %v3514
        %v3519 = vadd.f32 %v3509, %v3515
        %v3520 = vadd.f32 %v3510, %v3516
        %s3521 = sld [smem:[#allocation7 + $0x10a]]
        %v3522 = vstv %s3521
        %v3523 = vmul.f32 %v3522, %v983
        %v3524 = vmul.f32 %v3522, %v985
        %v3525 = vmul.f32 %v3522, %v987
        %v3526 = vmul.f32 %v3522, %v989
        %3531 = vrot.lane.b32.xlu0 %v3523, 127
        %v3532 = vpop.permute.xlu0 %3531
        %3533 = vrot.lane.b32.xlu0 %v3524, 127
        %v3534 = vpop.permute.xlu0 %3533
        %3535 = vrot.lane.b32.xlu0 %v3525, 127
        %v3536 = vpop.permute.xlu0 %3535
        %3537 = vrot.lane.b32.xlu0 %v3526, 127
        %v3538 = vpop.permute.xlu0 %3537
        %v3543 = vadd.f32 %v3517, %v3532
        %v3544 = vadd.f32 %v3518, %v3534
        %v3545 = vadd.f32 %v3519, %v3536
        %v3546 = vadd.f32 %v3520, %v3538
        %s3547 = sld [smem:[#allocation7 + $0x10b]]
        %v3548 = vstv %s3547
        %v3549 = vmul.f32 %v3548, %v983
        %v3550 = vmul.f32 %v3548, %v985
        %v3551 = vmul.f32 %v3548, %v987
        %v3552 = vmul.f32 %v3548, %v989
        %3557 = vrot.lane.b32.xlu0 %v3549, 126
        %v3558 = vpop.permute.xlu0 %3557
        %3559 = vrot.lane.b32.xlu0 %v3550, 126
        %v3560 = vpop.permute.xlu0 %3559
        %3561 = vrot.lane.b32.xlu0 %v3551, 126
        %v3562 = vpop.permute.xlu0 %3561
        %3563 = vrot.lane.b32.xlu0 %v3552, 126
        %v3564 = vpop.permute.xlu0 %3563
        %v3569 = vadd.f32 %v3543, %v3558
        %v3570 = vadd.f32 %v3544, %v3560
        %v3571 = vadd.f32 %v3545, %v3562
        %v3572 = vadd.f32 %v3546, %v3564
        %s3573 = sld [smem:[#allocation7 + $0x10c]]
        %v3574 = vstv %s3573
        %v3575 = vmul.f32 %v3574, %v983
        %v3576 = vmul.f32 %v3574, %v984
        %v3577 = vmul.f32 %v3574, %v985
        %v3578 = vmul.f32 %v3574, %v986
        %v3579 = vmul.f32 %v3574, %v987
        %v3580 = vmul.f32 %v3574, %v988
        %v3581 = vmul.f32 %v3574, %v989
        %v3582 = vmul.f32 %v3574, %v990
        %v3591 = vrot.slane %v3575, 1
        %v3592 = vrot.slane %v3576, 1
        %v3593 = vsel %vm1304, %v3591, %v3592
        %v3594 = vrot.slane %v3577, 1
        %v3595 = vrot.slane %v3578, 1
        %v3596 = vsel %vm1304, %v3594, %v3595
        %v3597 = vrot.slane %v3579, 1
        %v3598 = vrot.slane %v3580, 1
        %v3599 = vsel %vm1304, %v3597, %v3598
        %v3600 = vrot.slane %v3581, 1
        %v3601 = vrot.slane %v3582, 1
        %v3602 = vsel %vm1304, %v3600, %v3601
        %v3607 = vadd.f32 %v3569, %v3593
        %v3608 = vadd.f32 %v3570, %v3596
        %v3609 = vadd.f32 %v3571, %v3599
        %v3610 = vadd.f32 %v3572, %v3602
        %s3611 = sld [smem:[#allocation7 + $0x10d]]
        %v3612 = vstv %s3611
        %v3613 = vmul.f32 %v3612, %v983
        %v3614 = vmul.f32 %v3612, %v984
        %v3615 = vmul.f32 %v3612, %v985
        %v3616 = vmul.f32 %v3612, %v986
        %v3617 = vmul.f32 %v3612, %v987
        %v3618 = vmul.f32 %v3612, %v988
        %v3619 = vmul.f32 %v3612, %v989
        %v3620 = vmul.f32 %v3612, %v990
        %v3629 = vrot.slane %v3613, 1
        %v3630 = vrot.slane %v3614, 1
        %v3631 = vsel %vm1304, %v3629, %v3630
        %v3632 = vrot.slane %v3615, 1
        %v3633 = vrot.slane %v3616, 1
        %v3634 = vsel %vm1304, %v3632, %v3633
        %v3635 = vrot.slane %v3617, 1
        %v3636 = vrot.slane %v3618, 1
        %v3637 = vsel %vm1304, %v3635, %v3636
        %v3638 = vrot.slane %v3619, 1
        %v3639 = vrot.slane %v3620, 1
        %v3640 = vsel %vm1304, %v3638, %v3639
        %3641 = vrot.lane.b32.xlu0 %v3631, 127
        %v3642 = vpop.permute.xlu0 %3641
        %3643 = vrot.lane.b32.xlu0 %v3634, 127
        %v3644 = vpop.permute.xlu0 %3643
        %3645 = vrot.lane.b32.xlu0 %v3637, 127
        %v3646 = vpop.permute.xlu0 %3645
        %3647 = vrot.lane.b32.xlu0 %v3640, 127
        %v3648 = vpop.permute.xlu0 %3647
        %v3653 = vadd.f32 %v3607, %v3642
        %v3654 = vadd.f32 %v3608, %v3644
        %v3655 = vadd.f32 %v3609, %v3646
        %v3656 = vadd.f32 %v3610, %v3648
        %s3657 = sld [smem:[#allocation7 + $0x10e]]
        %v3658 = vstv %s3657
        %v3659 = vmul.f32 %v3658, %v983
        %v3660 = vmul.f32 %v3658, %v984
        %v3661 = vmul.f32 %v3658, %v985
        %v3662 = vmul.f32 %v3658, %v986
        %v3663 = vmul.f32 %v3658, %v987
        %v3664 = vmul.f32 %v3658, %v988
        %v3665 = vmul.f32 %v3658, %v989
        %v3666 = vmul.f32 %v3658, %v990
        %v3675 = vrot.slane %v3659, 1
        %v3676 = vrot.slane %v3660, 1
        %v3677 = vsel %vm1304, %v3675, %v3676
        %v3678 = vrot.slane %v3661, 1
        %v3679 = vrot.slane %v3662, 1
        %v3680 = vsel %vm1304, %v3678, %v3679
        %v3681 = vrot.slane %v3663, 1
        %v3682 = vrot.slane %v3664, 1
        %v3683 = vsel %vm1304, %v3681, %v3682
        %v3684 = vrot.slane %v3665, 1
        %v3685 = vrot.slane %v3666, 1
        %v3686 = vsel %vm1304, %v3684, %v3685
        %3687 = vrot.lane.b32.xlu0 %v3677, 126
        %v3688 = vpop.permute.xlu0 %3687
        %3689 = vrot.lane.b32.xlu0 %v3680, 126
        %v3690 = vpop.permute.xlu0 %3689
        %3691 = vrot.lane.b32.xlu0 %v3683, 126
        %v3692 = vpop.permute.xlu0 %3691
        %3693 = vrot.lane.b32.xlu0 %v3686, 126
        %v3694 = vpop.permute.xlu0 %3693
        %v3699 = vadd.f32 %v3653, %v3688
        %v3700 = vadd.f32 %v3654, %v3690
        %v3701 = vadd.f32 %v3655, %v3692
        %v3702 = vadd.f32 %v3656, %v3694
        %s3703 = sld [smem:[#allocation7 + $0x10f]]
        %v3704 = vstv %s3703
        %v3705 = vmul.f32 %v3704, %v983
        %v3706 = vmul.f32 %v3704, %v984
        %v3707 = vmul.f32 %v3704, %v985
        %v3708 = vmul.f32 %v3704, %v986
        %v3709 = vmul.f32 %v3704, %v987
        %v3710 = vmul.f32 %v3704, %v988
        %v3711 = vmul.f32 %v3704, %v989
        %v3712 = vmul.f32 %v3704, %v990
        %v3721 = vrot.slane %v3705, 2
        %v3722 = vrot.slane %v3706, 2
        %v3723 = vsel %vm1435, %v3721, %v3722
        %v3724 = vrot.slane %v3707, 2
        %v3725 = vrot.slane %v3708, 2
        %v3726 = vsel %vm1435, %v3724, %v3725
        %v3727 = vrot.slane %v3709, 2
        %v3728 = vrot.slane %v3710, 2
        %v3729 = vsel %vm1435, %v3727, %v3728
        %v3730 = vrot.slane %v3711, 2
        %v3731 = vrot.slane %v3712, 2
        %v3732 = vsel %vm1435, %v3730, %v3731
        %v3737 = vadd.f32 %v3699, %v3723
        %v3738 = vadd.f32 %v3700, %v3726
        %v3739 = vadd.f32 %v3701, %v3729
        %v3740 = vadd.f32 %v3702, %v3732
        %s3741 = sld [smem:[#allocation7 + $0x110]]
        %v3742 = vstv %s3741
        %v3743 = vmul.f32 %v3742, %v983
        %v3744 = vmul.f32 %v3742, %v984
        %v3745 = vmul.f32 %v3742, %v985
        %v3746 = vmul.f32 %v3742, %v986
        %v3747 = vmul.f32 %v3742, %v987
        %v3748 = vmul.f32 %v3742, %v988
        %v3749 = vmul.f32 %v3742, %v989
        %v3750 = vmul.f32 %v3742, %v990
        %v3759 = vrot.slane %v3743, 2
        %v3760 = vrot.slane %v3744, 2
        %v3761 = vsel %vm1435, %v3759, %v3760
        %v3762 = vrot.slane %v3745, 2
        %v3763 = vrot.slane %v3746, 2
        %v3764 = vsel %vm1435, %v3762, %v3763
        %v3765 = vrot.slane %v3747, 2
        %v3766 = vrot.slane %v3748, 2
        %v3767 = vsel %vm1435, %v3765, %v3766
        %v3768 = vrot.slane %v3749, 2
        %v3769 = vrot.slane %v3750, 2
        %v3770 = vsel %vm1435, %v3768, %v3769
        %3771 = vrot.lane.b32.xlu0 %v3761, 127
        %v3772 = vpop.permute.xlu0 %3771
        %3773 = vrot.lane.b32.xlu0 %v3764, 127
        %v3774 = vpop.permute.xlu0 %3773
        %3775 = vrot.lane.b32.xlu0 %v3767, 127
        %v3776 = vpop.permute.xlu0 %3775
        %3777 = vrot.lane.b32.xlu0 %v3770, 127
        %v3778 = vpop.permute.xlu0 %3777
        %v3783 = vadd.f32 %v3737, %v3772
        %v3784 = vadd.f32 %v3738, %v3774
        %v3785 = vadd.f32 %v3739, %v3776
        %v3786 = vadd.f32 %v3740, %v3778
        %s3787 = sld [smem:[#allocation7 + $0x111]]
        %v3788 = vstv %s3787
        %v3789 = vmul.f32 %v3788, %v983
        %v3790 = vmul.f32 %v3788, %v984
        %v3791 = vmul.f32 %v3788, %v985
        %v3792 = vmul.f32 %v3788, %v986
        %v3793 = vmul.f32 %v3788, %v987
        %v3794 = vmul.f32 %v3788, %v988
        %v3795 = vmul.f32 %v3788, %v989
        %v3796 = vmul.f32 %v3788, %v990
        %v3805 = vrot.slane %v3789, 2
        %v3806 = vrot.slane %v3790, 2
        %v3807 = vsel %vm1435, %v3805, %v3806
        %v3808 = vrot.slane %v3791, 2
        %v3809 = vrot.slane %v3792, 2
        %v3810 = vsel %vm1435, %v3808, %v3809
        %v3811 = vrot.slane %v3793, 2
        %v3812 = vrot.slane %v3794, 2
        %v3813 = vsel %vm1435, %v3811, %v3812
        %v3814 = vrot.slane %v3795, 2
        %v3815 = vrot.slane %v3796, 2
        %v3816 = vsel %vm1435, %v3814, %v3815
        %3817 = vrot.lane.b32.xlu0 %v3807, 126
        %v3818 = vpop.permute.xlu0 %3817
        %3819 = vrot.lane.b32.xlu0 %v3810, 126
        %v3820 = vpop.permute.xlu0 %3819
        %3821 = vrot.lane.b32.xlu0 %v3813, 126
        %v3822 = vpop.permute.xlu0 %3821
        %3823 = vrot.lane.b32.xlu0 %v3816, 126
        %v3824 = vpop.permute.xlu0 %3823
        %v3829 = vadd.f32 %v3783, %v3818
        %v3830 = vadd.f32 %v3784, %v3820
        %v3831 = vadd.f32 %v3785, %v3822
        %v3832 = vadd.f32 %v3786, %v3824
        %s3833 = sld [smem:[#allocation7 + $0x112]]
        %v3834 = vstv %s3833
        %v3835 = vmul.f32 %v3834, %v985
        %v3836 = vmul.f32 %v3834, %v987
        %v3837 = vmul.f32 %v3834, %v989
        %v3838 = vmul.f32 %v3834, %v991
        %v3839 = vadd.f32 %v3829, %v3835
        %v3840 = vadd.f32 %v3830, %v3836
        %v3841 = vadd.f32 %v3831, %v3837
        %v3842 = vadd.f32 %v3832, %v3838
        %s3843 = sld [smem:[#allocation7 + $0x113]]
        %v3844 = vstv %s3843
        %v3845 = vmul.f32 %v3844, %v985
        %v3846 = vmul.f32 %v3844, %v987
        %v3847 = vmul.f32 %v3844, %v989
        %v3848 = vmul.f32 %v3844, %v991
        %3853 = vrot.lane.b32.xlu0 %v3845, 127
        %v3854 = vpop.permute.xlu0 %3853
        %3855 = vrot.lane.b32.xlu0 %v3846, 127
        %v3856 = vpop.permute.xlu0 %3855
        %3857 = vrot.lane.b32.xlu0 %v3847, 127
        %v3858 = vpop.permute.xlu0 %3857
        %3859 = vrot.lane.b32.xlu0 %v3848, 127
        %v3860 = vpop.permute.xlu0 %3859
        %v3865 = vadd.f32 %v3839, %v3854
        %v3866 = vadd.f32 %v3840, %v3856
        %v3867 = vadd.f32 %v3841, %v3858
        %v3868 = vadd.f32 %v3842, %v3860
        %s3869 = sld [smem:[#allocation7 + $0x114]]
        %v3870 = vstv %s3869
        %v3871 = vmul.f32 %v3870, %v985
        %v3872 = vmul.f32 %v3870, %v987
        %v3873 = vmul.f32 %v3870, %v989
        %v3874 = vmul.f32 %v3870, %v991
        %3879 = vrot.lane.b32.xlu0 %v3871, 126
        %v3880 = vpop.permute.xlu0 %3879
        %3881 = vrot.lane.b32.xlu0 %v3872, 126
        %v3882 = vpop.permute.xlu0 %3881
        %3883 = vrot.lane.b32.xlu0 %v3873, 126
        %v3884 = vpop.permute.xlu0 %3883
        %3885 = vrot.lane.b32.xlu0 %v3874, 126
        %v3886 = vpop.permute.xlu0 %3885
        %v3891 = vadd.f32 %v3865, %v3880
        %v3892 = vadd.f32 %v3866, %v3882
        %v3893 = vadd.f32 %v3867, %v3884
        %v3894 = vadd.f32 %v3868, %v3886
        %s3895 = sld [smem:[#allocation7 + $0x115]]
        %v3896 = vstv %s3895
        %v3897 = vmul.f32 %v3896, %v985
        %v3898 = vmul.f32 %v3896, %v986
        %v3899 = vmul.f32 %v3896, %v987
        %v3900 = vmul.f32 %v3896, %v988
        %v3901 = vmul.f32 %v3896, %v989
        %v3902 = vmul.f32 %v3896, %v990
        %v3903 = vmul.f32 %v3896, %v991
        %v3904 = vmul.f32 %v3896, %v992
        %v3913 = vrot.slane %v3897, 1
        %v3914 = vrot.slane %v3898, 1
        %v3915 = vsel %vm1304, %v3913, %v3914
        %v3916 = vrot.slane %v3899, 1
        %v3917 = vrot.slane %v3900, 1
        %v3918 = vsel %vm1304, %v3916, %v3917
        %v3919 = vrot.slane %v3901, 1
        %v3920 = vrot.slane %v3902, 1
        %v3921 = vsel %vm1304, %v3919, %v3920
        %v3922 = vrot.slane %v3903, 1
        %v3923 = vrot.slane %v3904, 1
        %v3924 = vsel %vm1304, %v3922, %v3923
        %v3929 = vadd.f32 %v3891, %v3915
        %v3930 = vadd.f32 %v3892, %v3918
        %v3931 = vadd.f32 %v3893, %v3921
        %v3932 = vadd.f32 %v3894, %v3924
        %s3933 = sld [smem:[#allocation7 + $0x116]]
        %v3934 = vstv %s3933
        %v3935 = vmul.f32 %v3934, %v985
        %v3936 = vmul.f32 %v3934, %v986
        %v3937 = vmul.f32 %v3934, %v987
        %v3938 = vmul.f32 %v3934, %v988
        %v3939 = vmul.f32 %v3934, %v989
        %v3940 = vmul.f32 %v3934, %v990
        %v3941 = vmul.f32 %v3934, %v991
        %v3942 = vmul.f32 %v3934, %v992
        %v3951 = vrot.slane %v3935, 1
        %v3952 = vrot.slane %v3936, 1
        %v3953 = vsel %vm1304, %v3951, %v3952
        %v3954 = vrot.slane %v3937, 1
        %v3955 = vrot.slane %v3938, 1
        %v3956 = vsel %vm1304, %v3954, %v3955
        %v3957 = vrot.slane %v3939, 1
        %v3958 = vrot.slane %v3940, 1
        %v3959 = vsel %vm1304, %v3957, %v3958
        %v3960 = vrot.slane %v3941, 1
        %v3961 = vrot.slane %v3942, 1
        %v3962 = vsel %vm1304, %v3960, %v3961
        %3963 = vrot.lane.b32.xlu0 %v3953, 127
        %v3964 = vpop.permute.xlu0 %3963
        %3965 = vrot.lane.b32.xlu0 %v3956, 127
        %v3966 = vpop.permute.xlu0 %3965
        %3967 = vrot.lane.b32.xlu0 %v3959, 127
        %v3968 = vpop.permute.xlu0 %3967
        %3969 = vrot.lane.b32.xlu0 %v3962, 127
        %v3970 = vpop.permute.xlu0 %3969
        %v3975 = vadd.f32 %v3929, %v3964
        %v3976 = vadd.f32 %v3930, %v3966
        %v3977 = vadd.f32 %v3931, %v3968
        %v3978 = vadd.f32 %v3932, %v3970
        %s3979 = sld [smem:[#allocation7 + $0x117]]
        %v3980 = vstv %s3979
        %v3981 = vmul.f32 %v3980, %v985
        %v3982 = vmul.f32 %v3980, %v986
        %v3983 = vmul.f32 %v3980, %v987
        %v3984 = vmul.f32 %v3980, %v988
        %v3985 = vmul.f32 %v3980, %v989
        %v3986 = vmul.f32 %v3980, %v990
        %v3987 = vmul.f32 %v3980, %v991
        %v3988 = vmul.f32 %v3980, %v992
        %v3997 = vrot.slane %v3981, 1
        %v3998 = vrot.slane %v3982, 1
        %v3999 = vsel %vm1304, %v3997, %v3998
        %v4000 = vrot.slane %v3983, 1
        %v4001 = vrot.slane %v3984, 1
        %v4002 = vsel %vm1304, %v4000, %v4001
        %v4003 = vrot.slane %v3985, 1
        %v4004 = vrot.slane %v3986, 1
        %v4005 = vsel %vm1304, %v4003, %v4004
        %v4006 = vrot.slane %v3987, 1
        %v4007 = vrot.slane %v3988, 1
        %v4008 = vsel %vm1304, %v4006, %v4007
        %4009 = vrot.lane.b32.xlu0 %v3999, 126
        %v4010 = vpop.permute.xlu0 %4009
        %4011 = vrot.lane.b32.xlu0 %v4002, 126
        %v4012 = vpop.permute.xlu0 %4011
        %4013 = vrot.lane.b32.xlu0 %v4005, 126
        %v4014 = vpop.permute.xlu0 %4013
        %4015 = vrot.lane.b32.xlu0 %v4008, 126
        %v4016 = vpop.permute.xlu0 %4015
        %v4021 = vadd.f32 %v3975, %v4010
        %v4022 = vadd.f32 %v3976, %v4012
        %v4023 = vadd.f32 %v3977, %v4014
        %v4024 = vadd.f32 %v3978, %v4016
        %s4025 = sld [smem:[#allocation7 + $0x118]]
        %v4026 = vstv %s4025
        %v4027 = vmul.f32 %v4026, %v985
        %v4028 = vmul.f32 %v4026, %v986
        %v4029 = vmul.f32 %v4026, %v987
        %v4030 = vmul.f32 %v4026, %v988
        %v4031 = vmul.f32 %v4026, %v989
        %v4032 = vmul.f32 %v4026, %v990
        %v4033 = vmul.f32 %v4026, %v991
        %v4034 = vmul.f32 %v4026, %v992
        %v4043 = vrot.slane %v4027, 2
        %v4044 = vrot.slane %v4028, 2
        %v4045 = vsel %vm1435, %v4043, %v4044
        %v4046 = vrot.slane %v4029, 2
        %v4047 = vrot.slane %v4030, 2
        %v4048 = vsel %vm1435, %v4046, %v4047
        %v4049 = vrot.slane %v4031, 2
        %v4050 = vrot.slane %v4032, 2
        %v4051 = vsel %vm1435, %v4049, %v4050
        %v4052 = vrot.slane %v4033, 2
        %v4053 = vrot.slane %v4034, 2
        %v4054 = vsel %vm1435, %v4052, %v4053
        %v4059 = vadd.f32 %v4021, %v4045
        %v4060 = vadd.f32 %v4022, %v4048
        %v4061 = vadd.f32 %v4023, %v4051
        %v4062 = vadd.f32 %v4024, %v4054
        %s4063 = sld [smem:[#allocation7 + $0x119]]
        %v4064 = vstv %s4063
        %v4065 = vmul.f32 %v4064, %v985
        %v4066 = vmul.f32 %v4064, %v986
        %v4067 = vmul.f32 %v4064, %v987
        %v4068 = vmul.f32 %v4064, %v988
        %v4069 = vmul.f32 %v4064, %v989
        %v4070 = vmul.f32 %v4064, %v990
        %v4071 = vmul.f32 %v4064, %v991
        %v4072 = vmul.f32 %v4064, %v992
        %v4081 = vrot.slane %v4065, 2
        %v4082 = vrot.slane %v4066, 2
        %v4083 = vsel %vm1435, %v4081, %v4082
        %v4084 = vrot.slane %v4067, 2
        %v4085 = vrot.slane %v4068, 2
        %v4086 = vsel %vm1435, %v4084, %v4085
        %v4087 = vrot.slane %v4069, 2
        %v4088 = vrot.slane %v4070, 2
        %v4089 = vsel %vm1435, %v4087, %v4088
        %v4090 = vrot.slane %v4071, 2
        %v4091 = vrot.slane %v4072, 2
        %v4092 = vsel %vm1435, %v4090, %v4091
        %4093 = vrot.lane.b32.xlu0 %v4083, 127
        %v4094 = vpop.permute.xlu0 %4093
        %4095 = vrot.lane.b32.xlu0 %v4086, 127
        %v4096 = vpop.permute.xlu0 %4095
        %4097 = vrot.lane.b32.xlu0 %v4089, 127
        %v4098 = vpop.permute.xlu0 %4097
        %4099 = vrot.lane.b32.xlu0 %v4092, 127
        %v4100 = vpop.permute.xlu0 %4099
        %v4105 = vadd.f32 %v4059, %v4094
        %v4106 = vadd.f32 %v4060, %v4096
        %v4107 = vadd.f32 %v4061, %v4098
        %v4108 = vadd.f32 %v4062, %v4100
        %s4109 = sld [smem:[#allocation7 + $0x11a]]
        %v4110 = vstv %s4109
        %v4111 = vmul.f32 %v4110, %v985
        %v4112 = vmul.f32 %v4110, %v986
        %v4113 = vmul.f32 %v4110, %v987
        %v4114 = vmul.f32 %v4110, %v988
        %v4115 = vmul.f32 %v4110, %v989
        %v4116 = vmul.f32 %v4110, %v990
        %v4117 = vmul.f32 %v4110, %v991
        %v4118 = vmul.f32 %v4110, %v992
        %v4127 = vrot.slane %v4111, 2
        %v4128 = vrot.slane %v4112, 2
        %v4129 = vsel %vm1435, %v4127, %v4128
        %v4130 = vrot.slane %v4113, 2
        %v4131 = vrot.slane %v4114, 2
        %v4132 = vsel %vm1435, %v4130, %v4131
        %v4133 = vrot.slane %v4115, 2
        %v4134 = vrot.slane %v4116, 2
        %v4135 = vsel %vm1435, %v4133, %v4134
        %v4136 = vrot.slane %v4117, 2
        %v4137 = vrot.slane %v4118, 2
        %v4138 = vsel %vm1435, %v4136, %v4137
        %4139 = vrot.lane.b32.xlu0 %v4129, 126
        %v4140 = vpop.permute.xlu0 %4139
        %4141 = vrot.lane.b32.xlu0 %v4132, 126
        %v4142 = vpop.permute.xlu0 %4141
        %4143 = vrot.lane.b32.xlu0 %v4135, 126
        %v4144 = vpop.permute.xlu0 %4143
        %4145 = vrot.lane.b32.xlu0 %v4138, 126
        %v4146 = vpop.permute.xlu0 %4145
        %v4151 = vadd.f32 %v4105, %v4140
        %v4152 = vadd.f32 %v4106, %v4142
        %v4153 = vadd.f32 %v4107, %v4144
        %v4154 = vadd.f32 %v4108, %v4146
        %s4155 = sld [smem:[#allocation8 + $0x2]]
        %v4156 = vstv %s4155
        %v4157 = vadd.f32 %v4151, %v4156
        %v4158 = vadd.f32 %v4152, %v4156
        %v4159 = vadd.f32 %v4153, %v4156
        %v4160 = vadd.f32 %v4154, %v4156
        %v4161 = vmax.f32 %v4157, 0.0
        %v4162 = vmax.f32 %v4158, 0.0
        %v4163 = vmax.f32 %v4159, 0.0
        %v4164 = vmax.f32 %v4160, 0.0
        %s4165 = scalar_lea.vmem %s269, 192 [#allocation10]
        %4166 = vst.msk [vmem:[%s4165] sm:$0xff] %vm2203, %v4161
        %4167 = vst.msk [vmem:[%s4165 + $0x8] sm:$0xff] %vm2203, %v4162
        %4168 = vst.msk [vmem:[%s4165 + $0x10] sm:$0xff] %vm2203, %v4163
        %4169 = vst.msk [vmem:[%s4165 + $0x18] sm:$0xff] %vm2203, %v4164
        %s4170 = sld [smem:[#allocation7 + $0x180]]
        %v4171 = vstv %s4170
        %v4172 = vmul.f32 %v4171, %v1212
        %v4173 = vmul.f32 %v4171, %v1214
        %v4174 = vmul.f32 %v4171, %v1216
        %v4175 = vmul.f32 %v4171, %v1218
        %v4176 = vadd.f32 %v4172, 0.0
        %v4177 = vadd.f32 %v4173, 0.0
        %v4178 = vadd.f32 %v4174, 0.0
        %v4179 = vadd.f32 %v4175, 0.0
        %s4180 = sld [smem:[#allocation7 + $0x181]]
        %v4181 = vstv %s4180
        %v4182 = vmul.f32 %v4181, %v1212
        %v4183 = vmul.f32 %v4181, %v1214
        %v4184 = vmul.f32 %v4181, %v1216
        %v4185 = vmul.f32 %v4181, %v1218
        %4190 = vrot.lane.b32.xlu0 %v4182, 127
        %v4191 = vpop.permute.xlu0 %4190
        %4192 = vrot.lane.b32.xlu0 %v4183, 127
        %v4193 = vpop.permute.xlu0 %4192
        %4194 = vrot.lane.b32.xlu0 %v4184, 127
        %v4195 = vpop.permute.xlu0 %4194
        %4196 = vrot.lane.b32.xlu0 %v4185, 127
        %v4197 = vpop.permute.xlu0 %4196
        %v4202 = vadd.f32 %v4176, %v4191
        %v4203 = vadd.f32 %v4177, %v4193
        %v4204 = vadd.f32 %v4178, %v4195
        %v4205 = vadd.f32 %v4179, %v4197
        %s4206 = sld [smem:[#allocation7 + $0x182]]
        %v4207 = vstv %s4206
        %v4208 = vmul.f32 %v4207, %v1212
        %v4209 = vmul.f32 %v4207, %v1214
        %v4210 = vmul.f32 %v4207, %v1216
        %v4211 = vmul.f32 %v4207, %v1218
        %4216 = vrot.lane.b32.xlu0 %v4208, 126
        %v4217 = vpop.permute.xlu0 %4216
        %4218 = vrot.lane.b32.xlu0 %v4209, 126
        %v4219 = vpop.permute.xlu0 %4218
        %4220 = vrot.lane.b32.xlu0 %v4210, 126
        %v4221 = vpop.permute.xlu0 %4220
        %4222 = vrot.lane.b32.xlu0 %v4211, 126
        %v4223 = vpop.permute.xlu0 %4222
        %v4228 = vadd.f32 %v4202, %v4217
        %v4229 = vadd.f32 %v4203, %v4219
        %v4230 = vadd.f32 %v4204, %v4221
        %v4231 = vadd.f32 %v4205, %v4223
        %s4232 = sld [smem:[#allocation7 + $0x183]]
        %v4233 = vstv %s4232
        %v4234 = vmul.f32 %v4233, %v1212
        %v4235 = vmul.f32 %v4233, %v1213
        %v4236 = vmul.f32 %v4233, %v1214
        %v4237 = vmul.f32 %v4233, %v1215
        %v4238 = vmul.f32 %v4233, %v1216
        %v4239 = vmul.f32 %v4233, %v1217
        %v4240 = vmul.f32 %v4233, %v1218
        %v4241 = vmul.f32 %v4233, %v1219
        %v4250 = vrot.slane %v4234, 1
        %v4251 = vrot.slane %v4235, 1
        %v4252 = vsel %vm1304, %v4250, %v4251
        %v4253 = vrot.slane %v4236, 1
        %v4254 = vrot.slane %v4237, 1
        %v4255 = vsel %vm1304, %v4253, %v4254
        %v4256 = vrot.slane %v4238, 1
        %v4257 = vrot.slane %v4239, 1
        %v4258 = vsel %vm1304, %v4256, %v4257
        %v4259 = vrot.slane %v4240, 1
        %v4260 = vrot.slane %v4241, 1
        %v4261 = vsel %vm1304, %v4259, %v4260
        %v4266 = vadd.f32 %v4228, %v4252
        %v4267 = vadd.f32 %v4229, %v4255
        %v4268 = vadd.f32 %v4230, %v4258
        %v4269 = vadd.f32 %v4231, %v4261
        %s4270 = sld [smem:[#allocation7 + $0x184]]
        %v4271 = vstv %s4270
        %v4272 = vmul.f32 %v4271, %v1212
        %v4273 = vmul.f32 %v4271, %v1213
        %v4274 = vmul.f32 %v4271, %v1214
        %v4275 = vmul.f32 %v4271, %v1215
        %v4276 = vmul.f32 %v4271, %v1216
        %v4277 = vmul.f32 %v4271, %v1217
        %v4278 = vmul.f32 %v4271, %v1218
        %v4279 = vmul.f32 %v4271, %v1219
        %v4288 = vrot.slane %v4272, 1
        %v4289 = vrot.slane %v4273, 1
        %v4290 = vsel %vm1304, %v4288, %v4289
        %v4291 = vrot.slane %v4274, 1
        %v4292 = vrot.slane %v4275, 1
        %v4293 = vsel %vm1304, %v4291, %v4292
        %v4294 = vrot.slane %v4276, 1
        %v4295 = vrot.slane %v4277, 1
        %v4296 = vsel %vm1304, %v4294, %v4295
        %v4297 = vrot.slane %v4278, 1
        %v4298 = vrot.slane %v4279, 1
        %v4299 = vsel %vm1304, %v4297, %v4298
        %4300 = vrot.lane.b32.xlu0 %v4290, 127
        %v4301 = vpop.permute.xlu0 %4300
        %4302 = vrot.lane.b32.xlu0 %v4293, 127
        %v4303 = vpop.permute.xlu0 %4302
        %4304 = vrot.lane.b32.xlu0 %v4296, 127
        %v4305 = vpop.permute.xlu0 %4304
        %4306 = vrot.lane.b32.xlu0 %v4299, 127
        %v4307 = vpop.permute.xlu0 %4306
        %v4312 = vadd.f32 %v4266, %v4301
        %v4313 = vadd.f32 %v4267, %v4303
        %v4314 = vadd.f32 %v4268, %v4305
        %v4315 = vadd.f32 %v4269, %v4307
        %s4316 = sld [smem:[#allocation7 + $0x185]]
        %v4317 = vstv %s4316
        %v4318 = vmul.f32 %v4317, %v1212
        %v4319 = vmul.f32 %v4317, %v1213
        %v4320 = vmul.f32 %v4317, %v1214
        %v4321 = vmul.f32 %v4317, %v1215
        %v4322 = vmul.f32 %v4317, %v1216
        %v4323 = vmul.f32 %v4317, %v1217
        %v4324 = vmul.f32 %v4317, %v1218
        %v4325 = vmul.f32 %v4317, %v1219
        %v4334 = vrot.slane %v4318, 1
        %v4335 = vrot.slane %v4319, 1
        %v4336 = vsel %vm1304, %v4334, %v4335
        %v4337 = vrot.slane %v4320, 1
        %v4338 = vrot.slane %v4321, 1
        %v4339 = vsel %vm1304, %v4337, %v4338
        %v4340 = vrot.slane %v4322, 1
        %v4341 = vrot.slane %v4323, 1
        %v4342 = vsel %vm1304, %v4340, %v4341
        %v4343 = vrot.slane %v4324, 1
        %v4344 = vrot.slane %v4325, 1
        %v4345 = vsel %vm1304, %v4343, %v4344
        %4346 = vrot.lane.b32.xlu0 %v4336, 126
        %v4347 = vpop.permute.xlu0 %4346
        %4348 = vrot.lane.b32.xlu0 %v4339, 126
        %v4349 = vpop.permute.xlu0 %4348
        %4350 = vrot.lane.b32.xlu0 %v4342, 126
        %v4351 = vpop.permute.xlu0 %4350
        %4352 = vrot.lane.b32.xlu0 %v4345, 126
        %v4353 = vpop.permute.xlu0 %4352
        %v4358 = vadd.f32 %v4312, %v4347
        %v4359 = vadd.f32 %v4313, %v4349
        %v4360 = vadd.f32 %v4314, %v4351
        %v4361 = vadd.f32 %v4315, %v4353
        %s4362 = sld [smem:[#allocation7 + $0x186]]
        %v4363 = vstv %s4362
        %v4364 = vmul.f32 %v4363, %v1212
        %v4365 = vmul.f32 %v4363, %v1213
        %v4366 = vmul.f32 %v4363, %v1214
        %v4367 = vmul.f32 %v4363, %v1215
        %v4368 = vmul.f32 %v4363, %v1216
        %v4369 = vmul.f32 %v4363, %v1217
        %v4370 = vmul.f32 %v4363, %v1218
        %v4371 = vmul.f32 %v4363, %v1219
        %v4380 = vrot.slane %v4364, 2
        %v4381 = vrot.slane %v4365, 2
        %v4382 = vsel %vm1435, %v4380, %v4381
        %v4383 = vrot.slane %v4366, 2
        %v4384 = vrot.slane %v4367, 2
        %v4385 = vsel %vm1435, %v4383, %v4384
        %v4386 = vrot.slane %v4368, 2
        %v4387 = vrot.slane %v4369, 2
        %v4388 = vsel %vm1435, %v4386, %v4387
        %v4389 = vrot.slane %v4370, 2
        %v4390 = vrot.slane %v4371, 2
        %v4391 = vsel %vm1435, %v4389, %v4390
        %v4396 = vadd.f32 %v4358, %v4382
        %v4397 = vadd.f32 %v4359, %v4385
        %v4398 = vadd.f32 %v4360, %v4388
        %v4399 = vadd.f32 %v4361, %v4391
        %s4400 = sld [smem:[#allocation7 + $0x187]]
        %v4401 = vstv %s4400
        %v4402 = vmul.f32 %v4401, %v1212
        %v4403 = vmul.f32 %v4401, %v1213
        %v4404 = vmul.f32 %v4401, %v1214
        %v4405 = vmul.f32 %v4401, %v1215
        %v4406 = vmul.f32 %v4401, %v1216
        %v4407 = vmul.f32 %v4401, %v1217
        %v4408 = vmul.f32 %v4401, %v1218
        %v4409 = vmul.f32 %v4401, %v1219
        %v4418 = vrot.slane %v4402, 2
        %v4419 = vrot.slane %v4403, 2
        %v4420 = vsel %vm1435, %v4418, %v4419
        %v4421 = vrot.slane %v4404, 2
        %v4422 = vrot.slane %v4405, 2
        %v4423 = vsel %vm1435, %v4421, %v4422
        %v4424 = vrot.slane %v4406, 2
        %v4425 = vrot.slane %v4407, 2
        %v4426 = vsel %vm1435, %v4424, %v4425
        %v4427 = vrot.slane %v4408, 2
        %v4428 = vrot.slane %v4409, 2
        %v4429 = vsel %vm1435, %v4427, %v4428
        %4430 = vrot.lane.b32.xlu0 %v4420, 127
        %v4431 = vpop.permute.xlu0 %4430
        %4432 = vrot.lane.b32.xlu0 %v4423, 127
        %v4433 = vpop.permute.xlu0 %4432
        %4434 = vrot.lane.b32.xlu0 %v4426, 127
        %v4435 = vpop.permute.xlu0 %4434
        %4436 = vrot.lane.b32.xlu0 %v4429, 127
        %v4437 = vpop.permute.xlu0 %4436
        %v4442 = vadd.f32 %v4396, %v4431
        %v4443 = vadd.f32 %v4397, %v4433
        %v4444 = vadd.f32 %v4398, %v4435
        %v4445 = vadd.f32 %v4399, %v4437
        %s4446 = sld [smem:[#allocation7 + $0x188]]
        %v4447 = vstv %s4446
        %v4448 = vmul.f32 %v4447, %v1212
        %v4449 = vmul.f32 %v4447, %v1213
        %v4450 = vmul.f32 %v4447, %v1214
        %v4451 = vmul.f32 %v4447, %v1215
        %v4452 = vmul.f32 %v4447, %v1216
        %v4453 = vmul.f32 %v4447, %v1217
        %v4454 = vmul.f32 %v4447, %v1218
        %v4455 = vmul.f32 %v4447, %v1219
        %v4464 = vrot.slane %v4448, 2
        %v4465 = vrot.slane %v4449, 2
        %v4466 = vsel %vm1435, %v4464, %v4465
        %v4467 = vrot.slane %v4450, 2
        %v4468 = vrot.slane %v4451, 2
        %v4469 = vsel %vm1435, %v4467, %v4468
        %v4470 = vrot.slane %v4452, 2
        %v4471 = vrot.slane %v4453, 2
        %v4472 = vsel %vm1435, %v4470, %v4471
        %v4473 = vrot.slane %v4454, 2
        %v4474 = vrot.slane %v4455, 2
        %v4475 = vsel %vm1435, %v4473, %v4474
        %4476 = vrot.lane.b32.xlu0 %v4466, 126
        %v4477 = vpop.permute.xlu0 %4476
        %4478 = vrot.lane.b32.xlu0 %v4469, 126
        %v4479 = vpop.permute.xlu0 %4478
        %4480 = vrot.lane.b32.xlu0 %v4472, 126
        %v4481 = vpop.permute.xlu0 %4480
        %4482 = vrot.lane.b32.xlu0 %v4475, 126
        %v4483 = vpop.permute.xlu0 %4482
        %v4488 = vadd.f32 %v4442, %v4477
        %v4489 = vadd.f32 %v4443, %v4479
        %v4490 = vadd.f32 %v4444, %v4481
        %v4491 = vadd.f32 %v4445, %v4483
        %s4492 = sld [smem:[#allocation7 + $0x189]]
        %v4493 = vstv %s4492
        %v4494 = vmul.f32 %v4493, %v1214
        %v4495 = vmul.f32 %v4493, %v1216
        %v4496 = vmul.f32 %v4493, %v1218
        %v4497 = vmul.f32 %v4493, %v1220
        %v4498 = vadd.f32 %v4488, %v4494
        %v4499 = vadd.f32 %v4489, %v4495
        %v4500 = vadd.f32 %v4490, %v4496
        %v4501 = vadd.f32 %v4491, %v4497
        %s4502 = sld [smem:[#allocation7 + $0x18a]]
        %v4503 = vstv %s4502
        %v4504 = vmul.f32 %v4503, %v1214
        %v4505 = vmul.f32 %v4503, %v1216
        %v4506 = vmul.f32 %v4503, %v1218
        %v4507 = vmul.f32 %v4503, %v1220
        %4512 = vrot.lane.b32.xlu0 %v4504, 127
        %v4513 = vpop.permute.xlu0 %4512
        %4514 = vrot.lane.b32.xlu0 %v4505, 127
        %v4515 = vpop.permute.xlu0 %4514
        %4516 = vrot.lane.b32.xlu0 %v4506, 127
        %v4517 = vpop.permute.xlu0 %4516
        %4518 = vrot.lane.b32.xlu0 %v4507, 127
        %v4519 = vpop.permute.xlu0 %4518
        %v4524 = vadd.f32 %v4498, %v4513
        %v4525 = vadd.f32 %v4499, %v4515
        %v4526 = vadd.f32 %v4500, %v4517
        %v4527 = vadd.f32 %v4501, %v4519
        %s4528 = sld [smem:[#allocation7 + $0x18b]]
        %v4529 = vstv %s4528
        %v4530 = vmul.f32 %v4529, %v1214
        %v4531 = vmul.f32 %v4529, %v1216
        %v4532 = vmul.f32 %v4529, %v1218
        %v4533 = vmul.f32 %v4529, %v1220
        %4538 = vrot.lane.b32.xlu0 %v4530, 126
        %v4539 = vpop.permute.xlu0 %4538
        %4540 = vrot.lane.b32.xlu0 %v4531, 126
        %v4541 = vpop.permute.xlu0 %4540
        %4542 = vrot.lane.b32.xlu0 %v4532, 126
        %v4543 = vpop.permute.xlu0 %4542
        %4544 = vrot.lane.b32.xlu0 %v4533, 126
        %v4545 = vpop.permute.xlu0 %4544
        %v4550 = vadd.f32 %v4524, %v4539
        %v4551 = vadd.f32 %v4525, %v4541
        %v4552 = vadd.f32 %v4526, %v4543
        %v4553 = vadd.f32 %v4527, %v4545
        %s4554 = sld [smem:[#allocation7 + $0x18c]]
        %v4555 = vstv %s4554
        %v4556 = vmul.f32 %v4555, %v1214
        %v4557 = vmul.f32 %v4555, %v1215
        %v4558 = vmul.f32 %v4555, %v1216
        %v4559 = vmul.f32 %v4555, %v1217
        %v4560 = vmul.f32 %v4555, %v1218
        %v4561 = vmul.f32 %v4555, %v1219
        %v4562 = vmul.f32 %v4555, %v1220
        %v4563 = vmul.f32 %v4555, %v1221
        %v4572 = vrot.slane %v4556, 1
        %v4573 = vrot.slane %v4557, 1
        %v4574 = vsel %vm1304, %v4572, %v4573
        %v4575 = vrot.slane %v4558, 1
        %v4576 = vrot.slane %v4559, 1
        %v4577 = vsel %vm1304, %v4575, %v4576
        %v4578 = vrot.slane %v4560, 1
        %v4579 = vrot.slane %v4561, 1
        %v4580 = vsel %vm1304, %v4578, %v4579
        %v4581 = vrot.slane %v4562, 1
        %v4582 = vrot.slane %v4563, 1
        %v4583 = vsel %vm1304, %v4581, %v4582
        %v4588 = vadd.f32 %v4550, %v4574
        %v4589 = vadd.f32 %v4551, %v4577
        %v4590 = vadd.f32 %v4552, %v4580
        %v4591 = vadd.f32 %v4553, %v4583
        %s4592 = sld [smem:[#allocation7 + $0x18d]]
        %v4593 = vstv %s4592
        %v4594 = vmul.f32 %v4593, %v1214
        %v4595 = vmul.f32 %v4593, %v1215
        %v4596 = vmul.f32 %v4593, %v1216
        %v4597 = vmul.f32 %v4593, %v1217
        %v4598 = vmul.f32 %v4593, %v1218
        %v4599 = vmul.f32 %v4593, %v1219
        %v4600 = vmul.f32 %v4593, %v1220
        %v4601 = vmul.f32 %v4593, %v1221
        %v4610 = vrot.slane %v4594, 1
        %v4611 = vrot.slane %v4595, 1
        %v4612 = vsel %vm1304, %v4610, %v4611
        %v4613 = vrot.slane %v4596, 1
        %v4614 = vrot.slane %v4597, 1
        %v4615 = vsel %vm1304, %v4613, %v4614
        %v4616 = vrot.slane %v4598, 1
        %v4617 = vrot.slane %v4599, 1
        %v4618 = vsel %vm1304, %v4616, %v4617
        %v4619 = vrot.slane %v4600, 1
        %v4620 = vrot.slane %v4601, 1
        %v4621 = vsel %vm1304, %v4619, %v4620
        %4622 = vrot.lane.b32.xlu0 %v4612, 127
        %v4623 = vpop.permute.xlu0 %4622
        %4624 = vrot.lane.b32.xlu0 %v4615, 127
        %v4625 = vpop.permute.xlu0 %4624
        %4626 = vrot.lane.b32.xlu0 %v4618, 127
        %v4627 = vpop.permute.xlu0 %4626
        %4628 = vrot.lane.b32.xlu0 %v4621, 127
        %v4629 = vpop.permute.xlu0 %4628
        %v4634 = vadd.f32 %v4588, %v4623
        %v4635 = vadd.f32 %v4589, %v4625
        %v4636 = vadd.f32 %v4590, %v4627
        %v4637 = vadd.f32 %v4591, %v4629
        %s4638 = sld [smem:[#allocation7 + $0x18e]]
        %v4639 = vstv %s4638
        %v4640 = vmul.f32 %v4639, %v1214
        %v4641 = vmul.f32 %v4639, %v1215
        %v4642 = vmul.f32 %v4639, %v1216
        %v4643 = vmul.f32 %v4639, %v1217
        %v4644 = vmul.f32 %v4639, %v1218
        %v4645 = vmul.f32 %v4639, %v1219
        %v4646 = vmul.f32 %v4639, %v1220
        %v4647 = vmul.f32 %v4639, %v1221
        %v4656 = vrot.slane %v4640, 1
        %v4657 = vrot.slane %v4641, 1
        %v4658 = vsel %vm1304, %v4656, %v4657
        %v4659 = vrot.slane %v4642, 1
        %v4660 = vrot.slane %v4643, 1
        %v4661 = vsel %vm1304, %v4659, %v4660
        %v4662 = vrot.slane %v4644, 1
        %v4663 = vrot.slane %v4645, 1
        %v4664 = vsel %vm1304, %v4662, %v4663
        %v4665 = vrot.slane %v4646, 1
        %v4666 = vrot.slane %v4647, 1
        %v4667 = vsel %vm1304, %v4665, %v4666
        %4668 = vrot.lane.b32.xlu0 %v4658, 126
        %v4669 = vpop.permute.xlu0 %4668
        %4670 = vrot.lane.b32.xlu0 %v4661, 126
        %v4671 = vpop.permute.xlu0 %4670
        %4672 = vrot.lane.b32.xlu0 %v4664, 126
        %v4673 = vpop.permute.xlu0 %4672
        %4674 = vrot.lane.b32.xlu0 %v4667, 126
        %v4675 = vpop.permute.xlu0 %4674
        %v4680 = vadd.f32 %v4634, %v4669
        %v4681 = vadd.f32 %v4635, %v4671
        %v4682 = vadd.f32 %v4636, %v4673
        %v4683 = vadd.f32 %v4637, %v4675
        %s4684 = sld [smem:[#allocation7 + $0x18f]]
        %v4685 = vstv %s4684
        %v4686 = vmul.f32 %v4685, %v1214
        %v4687 = vmul.f32 %v4685, %v1215
        %v4688 = vmul.f32 %v4685, %v1216
        %v4689 = vmul.f32 %v4685, %v1217
        %v4690 = vmul.f32 %v4685, %v1218
        %v4691 = vmul.f32 %v4685, %v1219
        %v4692 = vmul.f32 %v4685, %v1220
        %v4693 = vmul.f32 %v4685, %v1221
        %v4702 = vrot.slane %v4686, 2
        %v4703 = vrot.slane %v4687, 2
        %v4704 = vsel %vm1435, %v4702, %v4703
        %v4705 = vrot.slane %v4688, 2
        %v4706 = vrot.slane %v4689, 2
        %v4707 = vsel %vm1435, %v4705, %v4706
        %v4708 = vrot.slane %v4690, 2
        %v4709 = vrot.slane %v4691, 2
        %v4710 = vsel %vm1435, %v4708, %v4709
        %v4711 = vrot.slane %v4692, 2
        %v4712 = vrot.slane %v4693, 2
        %v4713 = vsel %vm1435, %v4711, %v4712
        %v4718 = vadd.f32 %v4680, %v4704
        %v4719 = vadd.f32 %v4681, %v4707
        %v4720 = vadd.f32 %v4682, %v4710
        %v4721 = vadd.f32 %v4683, %v4713
        %s4722 = sld [smem:[#allocation7 + $0x190]]
        %v4723 = vstv %s4722
        %v4724 = vmul.f32 %v4723, %v1214
        %v4725 = vmul.f32 %v4723, %v1215
        %v4726 = vmul.f32 %v4723, %v1216
        %v4727 = vmul.f32 %v4723, %v1217
        %v4728 = vmul.f32 %v4723, %v1218
        %v4729 = vmul.f32 %v4723, %v1219
        %v4730 = vmul.f32 %v4723, %v1220
        %v4731 = vmul.f32 %v4723, %v1221
        %v4740 = vrot.slane %v4724, 2
        %v4741 = vrot.slane %v4725, 2
        %v4742 = vsel %vm1435, %v4740, %v4741
        %v4743 = vrot.slane %v4726, 2
        %v4744 = vrot.slane %v4727, 2
        %v4745 = vsel %vm1435, %v4743, %v4744
        %v4746 = vrot.slane %v4728, 2
        %v4747 = vrot.slane %v4729, 2
        %v4748 = vsel %vm1435, %v4746, %v4747
        %v4749 = vrot.slane %v4730, 2
        %v4750 = vrot.slane %v4731, 2
        %v4751 = vsel %vm1435, %v4749, %v4750
        %4752 = vrot.lane.b32.xlu0 %v4742, 127
        %v4753 = vpop.permute.xlu0 %4752
        %4754 = vrot.lane.b32.xlu0 %v4745, 127
        %v4755 = vpop.permute.xlu0 %4754
        %4756 = vrot.lane.b32.xlu0 %v4748, 127
        %v4757 = vpop.permute.xlu0 %4756
        %4758 = vrot.lane.b32.xlu0 %v4751, 127
        %v4759 = vpop.permute.xlu0 %4758
        %v4764 = vadd.f32 %v4718, %v4753
        %v4765 = vadd.f32 %v4719, %v4755
        %v4766 = vadd.f32 %v4720, %v4757
        %v4767 = vadd.f32 %v4721, %v4759
        %s4768 = sld [smem:[#allocation7 + $0x191]]
        %v4769 = vstv %s4768
        %v4770 = vmul.f32 %v4769, %v1214
        %v4771 = vmul.f32 %v4769, %v1215
        %v4772 = vmul.f32 %v4769, %v1216
        %v4773 = vmul.f32 %v4769, %v1217
        %v4774 = vmul.f32 %v4769, %v1218
        %v4775 = vmul.f32 %v4769, %v1219
        %v4776 = vmul.f32 %v4769, %v1220
        %v4777 = vmul.f32 %v4769, %v1221
        %v4786 = vrot.slane %v4770, 2
        %v4787 = vrot.slane %v4771, 2
        %v4788 = vsel %vm1435, %v4786, %v4787
        %v4789 = vrot.slane %v4772, 2
        %v4790 = vrot.slane %v4773, 2
        %v4791 = vsel %vm1435, %v4789, %v4790
        %v4792 = vrot.slane %v4774, 2
        %v4793 = vrot.slane %v4775, 2
        %v4794 = vsel %vm1435, %v4792, %v4793
        %v4795 = vrot.slane %v4776, 2
        %v4796 = vrot.slane %v4777, 2
        %v4797 = vsel %vm1435, %v4795, %v4796
        %4798 = vrot.lane.b32.xlu0 %v4788, 126
        %v4799 = vpop.permute.xlu0 %4798
        %4800 = vrot.lane.b32.xlu0 %v4791, 126
        %v4801 = vpop.permute.xlu0 %4800
        %4802 = vrot.lane.b32.xlu0 %v4794, 126
        %v4803 = vpop.permute.xlu0 %4802
        %4804 = vrot.lane.b32.xlu0 %v4797, 126
        %v4805 = vpop.permute.xlu0 %4804
        %v4810 = vadd.f32 %v4764, %v4799
        %v4811 = vadd.f32 %v4765, %v4801
        %v4812 = vadd.f32 %v4766, %v4803
        %v4813 = vadd.f32 %v4767, %v4805
        %s4814 = sld [smem:[#allocation7 + $0x192]]
        %v4815 = vstv %s4814
        %v4816 = vmul.f32 %v4815, %v1216
        %v4817 = vmul.f32 %v4815, %v1218
        %v4818 = vmul.f32 %v4815, %v1220
        %v4819 = vmul.f32 %v4815, %v1222
        %v4820 = vadd.f32 %v4810, %v4816
        %v4821 = vadd.f32 %v4811, %v4817
        %v4822 = vadd.f32 %v4812, %v4818
        %v4823 = vadd.f32 %v4813, %v4819
        %s4824 = sld [smem:[#allocation7 + $0x193]]
        %v4825 = vstv %s4824
        %v4826 = vmul.f32 %v4825, %v1216
        %v4827 = vmul.f32 %v4825, %v1218
        %v4828 = vmul.f32 %v4825, %v1220
        %v4829 = vmul.f32 %v4825, %v1222
        %4834 = vrot.lane.b32.xlu0 %v4826, 127
        %v4835 = vpop.permute.xlu0 %4834
        %4836 = vrot.lane.b32.xlu0 %v4827, 127
        %v4837 = vpop.permute.xlu0 %4836
        %4838 = vrot.lane.b32.xlu0 %v4828, 127
        %v4839 = vpop.permute.xlu0 %4838
        %4840 = vrot.lane.b32.xlu0 %v4829, 127
        %v4841 = vpop.permute.xlu0 %4840
        %v4846 = vadd.f32 %v4820, %v4835
        %v4847 = vadd.f32 %v4821, %v4837
        %v4848 = vadd.f32 %v4822, %v4839
        %v4849 = vadd.f32 %v4823, %v4841
        %s4850 = sld [smem:[#allocation7 + $0x194]]
        %v4851 = vstv %s4850
        %v4852 = vmul.f32 %v4851, %v1216
        %v4853 = vmul.f32 %v4851, %v1218
        %v4854 = vmul.f32 %v4851, %v1220
        %v4855 = vmul.f32 %v4851, %v1222
        %4860 = vrot.lane.b32.xlu0 %v4852, 126
        %v4861 = vpop.permute.xlu0 %4860
        %4862 = vrot.lane.b32.xlu0 %v4853, 126
        %v4863 = vpop.permute.xlu0 %4862
        %4864 = vrot.lane.b32.xlu0 %v4854, 126
        %v4865 = vpop.permute.xlu0 %4864
        %4866 = vrot.lane.b32.xlu0 %v4855, 126
        %v4867 = vpop.permute.xlu0 %4866
        %v4872 = vadd.f32 %v4846, %v4861
        %v4873 = vadd.f32 %v4847, %v4863
        %v4874 = vadd.f32 %v4848, %v4865
        %v4875 = vadd.f32 %v4849, %v4867
        %s4876 = sld [smem:[#allocation7 + $0x195]]
        %v4877 = vstv %s4876
        %v4878 = vmul.f32 %v4877, %v1216
        %v4879 = vmul.f32 %v4877, %v1217
        %v4880 = vmul.f32 %v4877, %v1218
        %v4881 = vmul.f32 %v4877, %v1219
        %v4882 = vmul.f32 %v4877, %v1220
        %v4883 = vmul.f32 %v4877, %v1221
        %v4884 = vmul.f32 %v4877, %v1222
        %v4885 = vmul.f32 %v4877, %v1223
        %v4894 = vrot.slane %v4878, 1
        %v4895 = vrot.slane %v4879, 1
        %v4896 = vsel %vm1304, %v4894, %v4895
        %v4897 = vrot.slane %v4880, 1
        %v4898 = vrot.slane %v4881, 1
        %v4899 = vsel %vm1304, %v4897, %v4898
        %v4900 = vrot.slane %v4882, 1
        %v4901 = vrot.slane %v4883, 1
        %v4902 = vsel %vm1304, %v4900, %v4901
        %v4903 = vrot.slane %v4884, 1
        %v4904 = vrot.slane %v4885, 1
        %v4905 = vsel %vm1304, %v4903, %v4904
        %v4910 = vadd.f32 %v4872, %v4896
        %v4911 = vadd.f32 %v4873, %v4899
        %v4912 = vadd.f32 %v4874, %v4902
        %v4913 = vadd.f32 %v4875, %v4905
        %s4914 = sld [smem:[#allocation7 + $0x196]]
        %v4915 = vstv %s4914
        %v4916 = vmul.f32 %v4915, %v1216
        %v4917 = vmul.f32 %v4915, %v1217
        %v4918 = vmul.f32 %v4915, %v1218
        %v4919 = vmul.f32 %v4915, %v1219
        %v4920 = vmul.f32 %v4915, %v1220
        %v4921 = vmul.f32 %v4915, %v1221
        %v4922 = vmul.f32 %v4915, %v1222
        %v4923 = vmul.f32 %v4915, %v1223
        %v4932 = vrot.slane %v4916, 1
        %v4933 = vrot.slane %v4917, 1
        %v4934 = vsel %vm1304, %v4932, %v4933
        %v4935 = vrot.slane %v4918, 1
        %v4936 = vrot.slane %v4919, 1
        %v4937 = vsel %vm1304, %v4935, %v4936
        %v4938 = vrot.slane %v4920, 1
        %v4939 = vrot.slane %v4921, 1
        %v4940 = vsel %vm1304, %v4938, %v4939
        %v4941 = vrot.slane %v4922, 1
        %v4942 = vrot.slane %v4923, 1
        %v4943 = vsel %vm1304, %v4941, %v4942
        %4944 = vrot.lane.b32.xlu0 %v4934, 127
        %v4945 = vpop.permute.xlu0 %4944
        %4946 = vrot.lane.b32.xlu0 %v4937, 127
        %v4947 = vpop.permute.xlu0 %4946
        %4948 = vrot.lane.b32.xlu0 %v4940, 127
        %v4949 = vpop.permute.xlu0 %4948
        %4950 = vrot.lane.b32.xlu0 %v4943, 127
        %v4951 = vpop.permute.xlu0 %4950
        %v4956 = vadd.f32 %v4910, %v4945
        %v4957 = vadd.f32 %v4911, %v4947
        %v4958 = vadd.f32 %v4912, %v4949
        %v4959 = vadd.f32 %v4913, %v4951
        %s4960 = sld [smem:[#allocation7 + $0x197]]
        %v4961 = vstv %s4960
        %v4962 = vmul.f32 %v4961, %v1216
        %v4963 = vmul.f32 %v4961, %v1217
        %v4964 = vmul.f32 %v4961, %v1218
        %v4965 = vmul.f32 %v4961, %v1219
        %v4966 = vmul.f32 %v4961, %v1220
        %v4967 = vmul.f32 %v4961, %v1221
        %v4968 = vmul.f32 %v4961, %v1222
        %v4969 = vmul.f32 %v4961, %v1223
        %v4978 = vrot.slane %v4962, 1
        %v4979 = vrot.slane %v4963, 1
        %v4980 = vsel %vm1304, %v4978, %v4979
        %v4981 = vrot.slane %v4964, 1
        %v4982 = vrot.slane %v4965, 1
        %v4983 = vsel %vm1304, %v4981, %v4982
        %v4984 = vrot.slane %v4966, 1
        %v4985 = vrot.slane %v4967, 1
        %v4986 = vsel %vm1304, %v4984, %v4985
        %v4987 = vrot.slane %v4968, 1
        %v4988 = vrot.slane %v4969, 1
        %v4989 = vsel %vm1304, %v4987, %v4988
        %4990 = vrot.lane.b32.xlu0 %v4980, 126
        %v4991 = vpop.permute.xlu0 %4990
        %4992 = vrot.lane.b32.xlu0 %v4983, 126
        %v4993 = vpop.permute.xlu0 %4992
        %4994 = vrot.lane.b32.xlu0 %v4986, 126
        %v4995 = vpop.permute.xlu0 %4994
        %4996 = vrot.lane.b32.xlu0 %v4989, 126
        %v4997 = vpop.permute.xlu0 %4996
        %v5002 = vadd.f32 %v4956, %v4991
        %v5003 = vadd.f32 %v4957, %v4993
        %v5004 = vadd.f32 %v4958, %v4995
        %v5005 = vadd.f32 %v4959, %v4997
        %s5006 = sld [smem:[#allocation7 + $0x198]]
        %v5007 = vstv %s5006
        %v5008 = vmul.f32 %v5007, %v1216
        %v5009 = vmul.f32 %v5007, %v1217
        %v5010 = vmul.f32 %v5007, %v1218
        %v5011 = vmul.f32 %v5007, %v1219
        %v5012 = vmul.f32 %v5007, %v1220
        %v5013 = vmul.f32 %v5007, %v1221
        %v5014 = vmul.f32 %v5007, %v1222
        %v5015 = vmul.f32 %v5007, %v1223
        %v5024 = vrot.slane %v5008, 2
        %v5025 = vrot.slane %v5009, 2
        %v5026 = vsel %vm1435, %v5024, %v5025
        %v5027 = vrot.slane %v5010, 2
        %v5028 = vrot.slane %v5011, 2
        %v5029 = vsel %vm1435, %v5027, %v5028
        %v5030 = vrot.slane %v5012, 2
        %v5031 = vrot.slane %v5013, 2
        %v5032 = vsel %vm1435, %v5030, %v5031
        %v5033 = vrot.slane %v5014, 2
        %v5034 = vrot.slane %v5015, 2
        %v5035 = vsel %vm1435, %v5033, %v5034
        %v5040 = vadd.f32 %v5002, %v5026
        %v5041 = vadd.f32 %v5003, %v5029
        %v5042 = vadd.f32 %v5004, %v5032
        %v5043 = vadd.f32 %v5005, %v5035
        %s5044 = sld [smem:[#allocation7 + $0x199]]
        %v5045 = vstv %s5044
        %v5046 = vmul.f32 %v5045, %v1216
        %v5047 = vmul.f32 %v5045, %v1217
        %v5048 = vmul.f32 %v5045, %v1218
        %v5049 = vmul.f32 %v5045, %v1219
        %v5050 = vmul.f32 %v5045, %v1220
        %v5051 = vmul.f32 %v5045, %v1221
        %v5052 = vmul.f32 %v5045, %v1222
        %v5053 = vmul.f32 %v5045, %v1223
        %v5062 = vrot.slane %v5046, 2
        %v5063 = vrot.slane %v5047, 2
        %v5064 = vsel %vm1435, %v5062, %v5063
        %v5065 = vrot.slane %v5048, 2
        %v5066 = vrot.slane %v5049, 2
        %v5067 = vsel %vm1435, %v5065, %v5066
        %v5068 = vrot.slane %v5050, 2
        %v5069 = vrot.slane %v5051, 2
        %v5070 = vsel %vm1435, %v5068, %v5069
        %v5071 = vrot.slane %v5052, 2
        %v5072 = vrot.slane %v5053, 2
        %v5073 = vsel %vm1435, %v5071, %v5072
        %5074 = vrot.lane.b32.xlu0 %v5064, 127
        %v5075 = vpop.permute.xlu0 %5074
        %5076 = vrot.lane.b32.xlu0 %v5067, 127
        %v5077 = vpop.permute.xlu0 %5076
        %5078 = vrot.lane.b32.xlu0 %v5070, 127
        %v5079 = vpop.permute.xlu0 %5078
        %5080 = vrot.lane.b32.xlu0 %v5073, 127
        %v5081 = vpop.permute.xlu0 %5080
        %v5086 = vadd.f32 %v5040, %v5075
        %v5087 = vadd.f32 %v5041, %v5077
        %v5088 = vadd.f32 %v5042, %v5079
        %v5089 = vadd.f32 %v5043, %v5081
        %s5090 = sld [smem:[#allocation7 + $0x19a]]
        %v5091 = vstv %s5090
        %v5092 = vmul.f32 %v5091, %v1216
        %v5093 = vmul.f32 %v5091, %v1217
        %v5094 = vmul.f32 %v5091, %v1218
        %v5095 = vmul.f32 %v5091, %v1219
        %v5096 = vmul.f32 %v5091, %v1220
        %v5097 = vmul.f32 %v5091, %v1221
        %v5098 = vmul.f32 %v5091, %v1222
        %v5099 = vmul.f32 %v5091, %v1223
        %v5108 = vrot.slane %v5092, 2
        %v5109 = vrot.slane %v5093, 2
        %v5110 = vsel %vm1435, %v5108, %v5109
        %v5111 = vrot.slane %v5094, 2
        %v5112 = vrot.slane %v5095, 2
        %v5113 = vsel %vm1435, %v5111, %v5112
        %v5114 = vrot.slane %v5096, 2
        %v5115 = vrot.slane %v5097, 2
        %v5116 = vsel %vm1435, %v5114, %v5115
        %v5117 = vrot.slane %v5098, 2
        %v5118 = vrot.slane %v5099, 2
        %v5119 = vsel %vm1435, %v5117, %v5118
        %5120 = vrot.lane.b32.xlu0 %v5110, 126
        %v5121 = vpop.permute.xlu0 %5120
        %5122 = vrot.lane.b32.xlu0 %v5113, 126
        %v5123 = vpop.permute.xlu0 %5122
        %5124 = vrot.lane.b32.xlu0 %v5116, 126
        %v5125 = vpop.permute.xlu0 %5124
        %5126 = vrot.lane.b32.xlu0 %v5119, 126
        %v5127 = vpop.permute.xlu0 %5126
        %v5132 = vadd.f32 %v5086, %v5121
        %v5133 = vadd.f32 %v5087, %v5123
        %v5134 = vadd.f32 %v5088, %v5125
        %v5135 = vadd.f32 %v5089, %v5127
        %s5136 = sld [smem:[#allocation8 + $0x3]]
        %v5137 = vstv %s5136
        %v5138 = vadd.f32 %v5132, %v5137
        %v5139 = vadd.f32 %v5133, %v5137
        %v5140 = vadd.f32 %v5134, %v5137
        %v5141 = vadd.f32 %v5135, %v5137
        %v5142 = vmax.f32 %v5138, 0.0
        %v5143 = vmax.f32 %v5139, 0.0
        %v5144 = vmax.f32 %v5140, 0.0
        %v5145 = vmax.f32 %v5141, 0.0
        %s5146 = scalar_lea.vmem %s269, 224 [#allocation10]
        %5147 = vst.msk [vmem:[%s5146] sm:$0xff] %vm2203, %v5142
        %5148 = vst.msk [vmem:[%s5146 + $0x8] sm:$0xff] %vm2203, %v5143
        %5149 = vst.msk [vmem:[%s5146 + $0x10] sm:$0xff] %vm2203, %v5144
        %5150 = vst.msk [vmem:[%s5146 + $0x18] sm:$0xff] %vm2203, %v5145
        %s5151 = sand.u32 %s140, 1
        %s5152 = scalar_lea.sflag [#allocation3], %s5151
        %s5153 = sand.u32 %s140, 1
        %s5154 = smul.addr %s5153, 256
        %s5155 = scalar_lea.vmem [#allocation10], %s5154
        // Predicated region
        $region57: #{ghost_module_forward.1} parent=39 // pred_check
          %p5156 = pneg %p150
        $region58: #{ghost_module_forward.1} parent=39 // pred_check_branch
          %5158 = sbr.rel (%p5156) target = $region60
        $region59: #{ghost_module_forward.1} parent=39 // pred_region
          %5160 = vsyncadd %s5152, 0
          %s5161 = smul.addr %s22, 32
          %s5162 = smul.addr %s5161, 8
          %s5163 = scalar_lea.hbm %s5, %s5162
          %s5164 = sshll.u32 %s5155, 4
          %s5165 = int_to_ptr.vmem [resolvable:$true] %s5164
          %s5166 = sshll.u32 %s5163, 4
          %s5167 = int_to_ptr.hbm [resolvable:$true] %s5166
          %5172 = dma.vmem_to_hbm [thread:$0]  %s5165, 4096, %s5167, %s5152, 128, 128, 8
        $region60: #{ghost_module_forward.1} parent=39 // pred_fallthru
          _
      $region40: #{ghost_module_forward.1} parent=5 // pred_fallthru
        _
      %p5173 = scmp.le.s32.totalorder 2, %s17
      // Predicated region
      $region61: #{ghost_module_forward.1} parent=5 // pred_check
        %p5174 = pneg %p5173
      $region62: #{ghost_module_forward.1} parent=5 // pred_check_branch
        %5176 = sbr.rel (%p5174) target = $region64
      $region63: #{ghost_module_forward.1} parent=5 // pred_region
        %s5177 = ssub.s32 %s17, 2
        // Predicated region
        $region65: #{ghost_module_forward.1} parent=63 // pred_check
          %p5178 = pneg %p156
        $region66: #{ghost_module_forward.1} parent=63 // pred_check_branch
          %5180 = sbr.rel (%p5178) target = $region68
        $region67: #{ghost_module_forward.1} parent=63 // pred_region
          %s5181 = sand.u32 %s141, 1
          %s5182 = scalar_lea.sflag [#allocation3], %s5181
          %s5183 = sand.u32 %s141, 1
          %s5184 = smul.addr %s5183, 256
          %s5185 = scalar_lea.vmem [#allocation10], %s5184
          %5187 = dma.done %s5182, 4096
        $region68: #{ghost_module_forward.1} parent=63 // pred_fallthru
          _
      $region64: #{ghost_module_forward.1} parent=5 // pred_fallthru
        _
    $region6: #{ghost_module_forward.1} parent=1 // loop_footer
      %s21 = sadd.s32 1, %s17
    $region7: #{ghost_module_forward.1} parent=1 // loop_footer_branch
      %16 = sbr.rel target = $region3
    $region8: #{ghost_module_forward.1} parent=1 // loop_exit
      _
    %5188 = vsyncpa [#allocation3], 1
    %s5189 = scalar_lea.sflag [#allocation3], 1
    %5190 = vsyncpa %s5189, 1
    %5191 = vsyncpa [#allocation4], 1
    %s5192 = scalar_lea.sflag [#allocation4], 1
    %5193 = vsyncpa %s5192, 1
    %5194 = vsyncpa [#allocation6], 1
    %5195 = vsyncpa [#allocation9], 1

</llo_original>
